<compile_context>
chip_gen: v7x
topology: tpu7x:2x2x1
jax: 0.10.0
libtpu: 0.0.40
codegen_flags: <defaults>
</compile_context>

<pallas_src>
import jax
import jax.numpy as jnp
from jax.experimental import pallas as pl
from jax.experimental.pallas import tpu as pltpu

N_CH = 256
N_CLASSES = 10
EPS = 2e-5          # the module explicitly sets eps=2e-5 (not the BatchNorm1d default 1e-5)
K1 = 80             # c1 kernel size
K1P = 128           # c1 contraction padded to a full lane width
PAD1 = 40           # c1 padding
STRIDE1 = 4         # c1 stride

_COMPILER_PARAMS = pltpu.CompilerParams(
    dimension_semantics=("parallel",),
    vmem_limit_bytes=32 * 1024 * 1024,
)


# --------------------------------------------------------------------------------------
# Pallas kernels
# --------------------------------------------------------------------------------------

def _conv1(patches, w1p):
    """c1 (as 4 phase matmuls) + bn1 batch-statistic side outputs.

    patches: [B, 4, G1, 128] f32, patches[b,p,g,k] = xpad[b, 16g+4p+k]; rows with 4g+p >= L1
             and lanes k >= 80 are exactly zero (so they add 0 to the bn1 stats).
    w1p:     [128, 256] f32, rows 0..79 = W1_torch[co,0,k].T, rows 80..127 = 0.
    returns  y1 [B,4,G1,256] bf16, sum [B,1,256] f32, sumsq [B,1,256] f32.
    """
    b, nph, g1, kp = patches.shape
    _, c_out = w1p.shape

    def kernel(x_ref, w_ref, y_ref, s_ref, ss_ref):
        w = w_ref[...]
        s = jnp.zeros((1, c_out), jnp.float32)
        ss = jnp.zeros((1, c_out), jnp.float32)
        for p in range(nph):                                              # static unroll (4)
            out = jnp.dot(x_ref[0, p], w, preferred_element_type=jnp.float32)   # (G1, 256)
            y_ref[0, p] = out.astype(y_ref.dtype)
            s = s + jnp.sum(out, axis=0, keepdims=True)
            ss = ss + jnp.sum(out * out, axis=0, keepdims=True)
        s_ref[0] = s
        ss_ref[0] = ss

    return pl.pallas_call(
        kernel,
        out_shape=(jax.ShapeDtypeStruct((b, nph, g1, c_out), jnp.bfloat16),
                   jax.ShapeDtypeStruct((b, 1, c_out), jnp.float32),
                   jax.ShapeDtypeStruct((b, 1, c_out), jnp.float32)),
        grid=(b,),
        in_specs=[pl.BlockSpec((1, nph, g1, kp), lambda i: (i, 0, 0, 0)),
                  pl.BlockSpec((kp, c_out), lambda i: (0, 0))],
        out_specs=(pl.BlockSpec((1, nph, g1, c_out), lambda i: (i, 0, 0, 0)),
                   pl.BlockSpec((1, 1, c_out), lambda i: (i, 0, 0)),
                   pl.BlockSpec((1, 1, c_out), lambda i: (i, 0, 0))),
        compiler_params=_COMPILER_PARAMS,
    )(patches, w1p)


def _stage2(y1, s1, ss1, w2, t2, count1, eps):
    """bn1 (batch-stat reduction fused in) + ReLU + maxpool4 + c2 + bn2 stat side outputs.

    y1: [B, 4, G1, 256] bf16 (phase-separated)   s1/ss1: [B, 1, 256] f32 per-batch bn1 stats
    w2: [768, 256] f32, w2[k*256+ci, co] = W2_torch[co, ci, k]
    """
    b, nph, g1, c = y1.shape
    kc, c_out = w2.shape

    def kernel(x_ref, s1_ref, ss1_ref, w_ref, y_ref, s_ref, ss_ref):
        # bn1 scale/shift from the global (all-batch) statistics; tiny, recomputed per step.
        tot, tot2 = s1_ref[0], ss1_ref[0]                                 # (1, 256)
        for bi in range(1, b):
            tot = tot + s1_ref[bi]
            tot2 = tot2 + ss1_ref[bi]
        mean = tot * (1.0 / count1)
        var = jnp.maximum(tot2 * (1.0 / count1) - mean * mean, 0.0)
        inv = jax.lax.rsqrt(var + eps)                                    # EUP
        scale, shift = inv, -mean * inv                                   # (1, 256)

        v = jnp.maximum(x_ref[0].astype(jnp.float32) * scale + shift, 0.0)   # (4, G1, 256)
        # non-overlapping maxpool(4,4): elementwise max over the phase axis (complete groups)
        vp = jnp.maximum(jnp.maximum(v[0, :t2], v[1, :t2]),
                         jnp.maximum(v[2, :t2], v[3, :t2]))                  # (t2, 256)
        # c2 (k=3, pad=1) as one matmul over the (tap, channel) contraction
        zero = jnp.zeros((1, c), jnp.float32)
        left = jnp.concatenate([zero, vp[:-1]], axis=0)                   # row t holds vp[t-1]
        right = jnp.concatenate([vp[1:], zero], axis=0)                   # row t holds vp[t+1]
        patches = jnp.concatenate([left, vp, right], axis=1)              # (t2, 768)
        out = jnp.dot(patches, w_ref[...], preferred_element_type=jnp.float32)   # (t2, 256)
        y_ref[0] = out.astype(y_ref.dtype)
        s_ref[0] = jnp.sum(out, axis=0, keepdims=True)                    # bn2 batch stats
        ss_ref[0] = jnp.sum(out * out, axis=0, keepdims=True)

    return pl.pallas_call(
        kernel,
        out_shape=(jax.ShapeDtypeStruct((b, t2, c_out), jnp.bfloat16),
                   jax.ShapeDtypeStruct((b, 1, c_out), jnp.float32),
                   jax.ShapeDtypeStruct((b, 1, c_out), jnp.float32)),
        grid=(b,),
        in_specs=[pl.BlockSpec((1, nph, g1, c), lambda i: (i, 0, 0, 0)),
                  pl.BlockSpec((b, 1, c), lambda i: (0, 0, 0)),
                  pl.BlockSpec((b, 1, c), lambda i: (0, 0, 0)),
                  pl.BlockSpec((kc, c_out), lambda i: (0, 0))],
        out_specs=(pl.BlockSpec((1, t2, c_out), lambda i: (i, 0, 0)),
                   pl.BlockSpec((1, 1, c_out), lambda i: (i, 0, 0)),
                   pl.BlockSpec((1, 1, c_out), lambda i: (i, 0, 0))),
        compiler_params=_COMPILER_PARAMS,
    )(y1, s1, ss1, w2)


def _stage3(y2, s2, ss2, msel, w3, count2, eps):
    """bn2 (stats fused) + ReLU + maxpool4 + mean over time + c3 -> logits [B, 1, 10].

    msel: [1, 4*t3-3] f32, value 1/t3 at columns 4i (picks each pool group's window max and
          averages -> maxpool(4,4) followed by the time mean, as one tiny matvec).
    w3:   [256, 10] f32, w3[ci, co] = W3_torch[co, ci, 0].
    """
    b, t2, c = y2.shape
    _, n_cls = w3.shape
    _, n3 = msel.shape

    def kernel(x_ref, s2_ref, ss2_ref, ms_ref, w_ref, o_ref):
        tot, tot2 = s2_ref[0], ss2_ref[0]                                 # (1, 256)
        for bi in range(1, b):
            tot = tot + s2_ref[bi]
            tot2 = tot2 + ss2_ref[bi]
        mean = tot * (1.0 / count2)
        var = jnp.maximum(tot2 * (1.0 / count2) - mean * mean, 0.0)
        inv = jax.lax.rsqrt(var + eps)

        z = jnp.maximum(x_ref[0].astype(jnp.float32) * inv + (-mean * inv), 0.0)   # (t2, 256)
        # sliding max of width 4 via contiguous shifted slices; msel keeps every 4th window.
        q = jnp.maximum(jnp.maximum(z[0:n3], z[1:n3 + 1]),
                        jnp.maximum(z[2:n3 + 2], z[3:n3 + 3]))                     # (n3, 256)
        m = jnp.dot(ms_ref[...], q, preferred_element_type=jnp.float32)            # (1, 256)
        o_ref[0] = jnp.dot(m, w_ref[...], preferred_element_type=jnp.float32)      # (1, 10)

    return pl.pallas_call(
        kernel,
        out_shape=jax.ShapeDtypeStruct((b, 1, n_cls), jnp.float32),
        grid=(b,),
        in_specs=[pl.BlockSpec((1, t2, c), lambda i: (i, 0, 0)),
                  pl.BlockSpec((b, 1, c), lambda i: (0, 0, 0)),
                  pl.BlockSpec((b, 1, c), lambda i: (0, 0, 0)),
                  pl.BlockSpec((1, n3), lambda i: (0, 0)),
                  pl.BlockSpec((c, n_cls), lambda i: (0, 0))],
        out_specs=pl.BlockSpec((1, 1, n_cls), lambda i: (i, 0, 0)),
        compiler_params=_COMPILER_PARAMS,
    )(y2, s2, ss2, msel, w3)


# --------------------------------------------------------------------------------------
# Wrapper (tiny XLA: 1-D padding + im2col gather of the raw signal, constants)
# --------------------------------------------------------------------------------------

def _c1_patches(x):
    """Phase-separated, lane-padded im2col of the c1 input."""
    b, cin, t = x.shape
    assert cin == 1 and t % STRIDE1 == 0
    l1 = t // STRIDE1 + 1                    # c1 output length
    g1 = -(-l1 // 4)                         # pool groups, incl. the (possibly partial) last one

    xpad = jnp.pad(x[:, 0, :], ((0, 0), (PAD1, PAD1)))                    # (B, T+80)
    need = 16 * (g1 - 1) + 4 * 3 + K1
    if need > xpad.shape[1]:
        xpad = jnp.pad(xpad, ((0, 0), (0, need - xpad.shape[1])))

    p_idx = jnp.arange(4)[:, None, None]
    g_idx = jnp.arange(g1)[None, :, None]
    k_idx = jnp.arange(K1)[None, None, :]
    idx = 16 * g_idx + 4 * p_idx + k_idx                                  # (4, g1, 80)
    patches = xpad[:, idx]                                                # (B, 4, g1, 80)
    # zero rows with 4g+p >= L1 so they contribute exactly 0 to the bn1 batch statistics
    valid = (4 * jnp.arange(g1)[None, :] + jnp.arange(4)[:, None]) < l1   # (4, g1)
    patches = patches * valid[None, :, :, None].astype(patches.dtype)
    patches = jnp.pad(patches, ((0, 0), (0, 0), (0, 0), (0, K1P - K1)))   # lane-pad 80 -> 128
    return patches, l1, g1


def forward(params, x, eps=EPS):
    b = x.shape[0]
    patches, l1, _ = _c1_patches(x)
    w1p = jnp.pad(params["w1"], ((0, K1P - K1), (0, 0)))                  # (128, 256)

    y1, s1, ss1 = _conv1(patches, w1p)                                    # c1 + bn1 stats

    t2 = (l1 - 4) // 4 + 1                                                # after maxpool(4,4)
    y2, s2, ss2 = _stage2(y1, s1, ss1, params["w2"], t2, b * l1, eps)

    t3 = (t2 - 4) // 4 + 1                                                # after maxpool(4,4)
    n3 = 4 * t3 - 3
    msel = ((jnp.arange(n3) % 4) == 0).astype(jnp.float32).reshape(1, n3) / t3

    out = _stage3(y2, s2, ss2, msel, params["w3"], b * t2, eps)           # (B, 1, 10)
    return out.reshape(b, N_CLASSES)


def init_params(key):
    # PyTorch init: weight ~ N(0, prod(weight.shape[1:]) ** -0.5), no bias.
    # Layouts (to load torch weights): w1 = W1[:,0,:].T ; w2 = W2.transpose(2,1,0).reshape(768,256)
    #                                  w3 = W3[:,:,0].T
    k1, k2, k3 = jax.random.split(key, 3)
    w1 = jax.random.normal(k1, (K1, N_CH), jnp.float32) * (1 * K1) ** -0.5
    w2 = jax.random.normal(k2, (3 * N_CH, N_CH), jnp.float32) * (N_CH * 3) ** -0.5
    w3 = jax.random.normal(k3, (N_CH, N_CLASSES), jnp.float32) * (N_CH * 1) ** -0.5
    return {"w1": w1, "w2": w2, "w3": w3}


# --------------------------------------------------------------------------------------
# Pure-JAX reference (for a loose numerical sanity check; bf16 activations => ~1e-2 error)
# --------------------------------------------------------------------------------------

def reference_forward(params, x, eps=EPS):
    b, _, t = x.shape
    l1 = t // STRIDE1 + 1
    xpad = jnp.pad(x[:, 0, :], ((0, 0), (PAD1, PAD1)))
    idx = 4 * jnp.arange(l1)[:, None] + jnp.arange(K1)[None, :]
    y = jnp.einsum("blk,kc->blc", xpad[:, idx], params["w1"])             # c1

    def bn_relu(y):
        mean = jnp.mean(y, axis=(0, 1), keepdims=True)
        var = jnp.mean(y * y, axis=(0, 1), keepdims=True) - mean * mean
        return jnp.maximum((y - mean) * jax.lax.rsqrt(var + eps), 0.0)

    def pool4(y):
        tl = (y.shape[1] - 4) // 4 + 1
        return jnp.max(y[:, :4 * tl, :].reshape(y.shape[0], tl, 4, y.shape[2]), axis=2)

    y = pool4(bn_relu(y))
    w2 = params["w2"].reshape(3, N_CH, N_CH)
    ypad = jnp.pad(y, ((0, 0), (1, 1), (0, 0)))
    y = (jnp.einsum("blc,cd->bld", ypad[:, :-2], w2[0]) +
         jnp.einsum("blc,cd->bld", ypad[:, 1:-1], w2[1]) +
         jnp.einsum("blc,cd->bld", ypad[:, 2:], w2[2]))                   # c2
    y = pool4(bn_relu(y))
    return jnp.mean(y, axis=1) @ params["w3"]                             # mean + c3


if __name__ == "__main__":
    key = jax.random.PRNGKey(0)
    kx, kp = jax.random.split(key)
    B, T = 2, 1024                    # T=1024 -> L1=257 -> pool 64 -> pool 16 -> mean -> logits
    x = jax.random.normal(kx, (B, 1, T), dtype=jnp.float32)
    params = init_params(kp)

    fwd = jax.jit(forward)
    out = jax.block_until_ready(fwd(params, x))
    assert out.shape == (B, N_CLASSES), out.shape
    assert bool(jnp.all(jnp.isfinite(out)))

    ref = jax.block_until_ready(jax.jit(reference_forward)(params, x))
    assert bool(jnp.allclose(out, ref, atol=1e-1, rtol=1e-1)), (out, ref)
    print("KERNEL_OK")
</pallas_src>

<mosaic_0001>
module attributes {stable_mosaic.version = 11 : i64} {
  func.func @kernel(%arg0: i32, %arg1: memref<1x4x65x128xf32, #tpu.memory_space<vmem>>, %arg2: memref<128x256xf32, #tpu.memory_space<vmem>>, %arg3: memref<1x4x65x256xbf16, #tpu.memory_space<vmem>>, %arg4: memref<1x1x256xf32, #tpu.memory_space<vmem>>, %arg5: memref<1x1x256xf32, #tpu.memory_space<vmem>>) attributes {dimension_semantics = [#tpu.dimension_semantics<parallel>], iteration_bounds = array<i64: 2>, scalar_prefetch = 0 : i64, scratch_operands = 0 : i64, tpu.core_type = #tpu.core_type<tc>, window_params = [{transform_indices = @transform_0, window_bounds = array<i64: 1, 4, 65, 128>}, {pipeline_mode = #tpu.pipeline_mode<synchronous>, transform_indices = @transform_1, window_bounds = array<i64: 128, 256>}, {transform_indices = @transform_2, window_bounds = array<i64: 1, 4, 65, 256>}, {transform_indices = @transform_3, window_bounds = array<i64: 1, 1, 256>}, {transform_indices = @transform_4, window_bounds = array<i64: 1, 1, 256>}]} {
    %c0 = arith.constant 0 : index
    %c0_0 = arith.constant 0 : index
    %0 = vector.load %arg2[%c0, %c0_0] : memref<128x256xf32, #tpu.memory_space<vmem>>, vector<128x256xf32>
    %cst = arith.constant 0.000000e+00 : f32
    %1 = vector.broadcast %cst : f32 to vector<1x256xf32>
    %cst_1 = arith.constant 0.000000e+00 : f32
    %2 = vector.broadcast %cst_1 : f32 to vector<1x256xf32>
    %c0_2 = arith.constant 0 : index
    %c0_3 = arith.constant 0 : index
    %c0_4 = arith.constant 0 : index
    %c0_5 = arith.constant 0 : index
    %3 = vector.load %arg1[%c0_2, %c0_3, %c0_4, %c0_5] : memref<1x4x65x128xf32, #tpu.memory_space<vmem>>, vector<1x1x65x128xf32>
    %4 = vector.shape_cast %3 : vector<1x1x65x128xf32> to vector<65x128xf32>
    %cst_6 = arith.constant dense<0.000000e+00> : vector<65x256xf32>
    %5 = tpu.matmul %4, %0, %cst_6 {dimension_numbers = #tpu.dot_dimension_numbers<[1], [0], [0], [1], [0, 0, 1, 1], [], []>} : vector<65x128xf32>, vector<128x256xf32>, vector<65x256xf32> -> vector<65x256xf32>
    %6 = arith.truncf %5 : vector<65x256xf32> to vector<65x256xbf16>
    %c0_7 = arith.constant 0 : index
    %c0_8 = arith.constant 0 : index
    %c0_9 = arith.constant 0 : index
    %c0_10 = arith.constant 0 : index
    %7 = vector.load %arg3[%c0_7, %c0_8, %c0_9, %c0_10] : memref<1x4x65x256xbf16, #tpu.memory_space<vmem>>, vector<1x1x65x256xbf16>
    %8 = vector.shape_cast %7 : vector<1x1x65x256xbf16> to vector<65x256xbf16>
    %9 = vector.shape_cast %6 : vector<65x256xbf16> to vector<1x1x65x256xbf16>
    tpu.vector_store %arg3[%c0_7, %c0_8, %c0_9, %c0_10], %9 {strides = array<i32>} : memref<1x4x65x256xbf16, #tpu.memory_space<vmem>>, vector<1x1x65x256xbf16>,
    %cst_11 = arith.constant dense<0.000000e+00> : vector<256xf32>
    %10 = vector.multi_reduction <add>, %5, %cst_11 [0] : vector<65x256xf32> to vector<256xf32>
    %11 = vector.shape_cast %10 : vector<256xf32> to vector<1x256xf32>
    %12 = arith.addf %1, %11 : vector<1x256xf32>
    %13 = arith.mulf %5, %5 : vector<65x256xf32>
    %cst_12 = arith.constant dense<0.000000e+00> : vector<256xf32>
    %14 = vector.multi_reduction <add>, %13, %cst_12 [0] : vector<65x256xf32> to vector<256xf32>
    %15 = vector.shape_cast %14 : vector<256xf32> to vector<1x256xf32>
    %16 = arith.addf %2, %15 : vector<1x256xf32>
    %c0_13 = arith.constant 0 : index
    %c1 = arith.constant 1 : index
    %c0_14 = arith.constant 0 : index
    %c0_15 = arith.constant 0 : index
    %17 = vector.load %arg1[%c0_13, %c1, %c0_14, %c0_15] : memref<1x4x65x128xf32, #tpu.memory_space<vmem>>, vector<1x1x65x128xf32>
    %18 = vector.shape_cast %17 : vector<1x1x65x128xf32> to vector<65x128xf32>
    %cst_16 = arith.constant dense<0.000000e+00> : vector<65x256xf32>
    %19 = tpu.matmul %18, %0, %cst_16 {dimension_numbers = #tpu.dot_dimension_numbers<[1], [0], [0], [1], [0, 0, 1, 1], [], []>} : vector<65x128xf32>, vector<128x256xf32>, vector<65x256xf32> -> vector<65x256xf32>
    %20 = arith.truncf %19 : vector<65x256xf32> to vector<65x256xbf16>
    %c0_17 = arith.constant 0 : index
    %c1_18 = arith.constant 1 : index
    %c0_19 = arith.constant 0 : index
    %c0_20 = arith.constant 0 : index
    %21 = vector.load %arg3[%c0_17, %c1_18, %c0_19, %c0_20] : memref<1x4x65x256xbf16, #tpu.memory_space<vmem>>, vector<1x1x65x256xbf16>
    %22 = vector.shape_cast %21 : vector<1x1x65x256xbf16> to vector<65x256xbf16>
    %23 = vector.shape_cast %20 : vector<65x256xbf16> to vector<1x1x65x256xbf16>
    tpu.vector_store %arg3[%c0_17, %c1_18, %c0_19, %c0_20], %23 {strides = array<i32>} : memref<1x4x65x256xbf16, #tpu.memory_space<vmem>>, vector<1x1x65x256xbf16>,
    %cst_21 = arith.constant dense<0.000000e+00> : vector<256xf32>
    %24 = vector.multi_reduction <add>, %19, %cst_21 [0] : vector<65x256xf32> to vector<256xf32>
    %25 = vector.shape_cast %24 : vector<256xf32> to vector<1x256xf32>
    %26 = arith.addf %12, %25 : vector<1x256xf32>
    %27 = arith.mulf %19, %19 : vector<65x256xf32>
    %cst_22 = arith.constant dense<0.000000e+00> : vector<256xf32>
    %28 = vector.multi_reduction <add>, %27, %cst_22 [0] : vector<65x256xf32> to vector<256xf32>
    %29 = vector.shape_cast %28 : vector<256xf32> to vector<1x256xf32>
    %30 = arith.addf %16, %29 : vector<1x256xf32>
    %c0_23 = arith.constant 0 : index
    %c2 = arith.constant 2 : index
    %c0_24 = arith.constant 0 : index
    %c0_25 = arith.constant 0 : index
    %31 = vector.load %arg1[%c0_23, %c2, %c0_24, %c0_25] : memref<1x4x65x128xf32, #tpu.memory_space<vmem>>, vector<1x1x65x128xf32>
    %32 = vector.shape_cast %31 : vector<1x1x65x128xf32> to vector<65x128xf32>
    %cst_26 = arith.constant dense<0.000000e+00> : vector<65x256xf32>
    %33 = tpu.matmul %32, %0, %cst_26 {dimension_numbers = #tpu.dot_dimension_numbers<[1], [0], [0], [1], [0, 0, 1, 1], [], []>} : vector<65x128xf32>, vector<128x256xf32>, vector<65x256xf32> -> vector<65x256xf32>
    %34 = arith.truncf %33 : vector<65x256xf32> to vector<65x256xbf16>
    %c0_27 = arith.constant 0 : index
    %c2_28 = arith.constant 2 : index
    %c0_29 = arith.constant 0 : index
    %c0_30 = arith.constant 0 : index
    %35 = vector.load %arg3[%c0_27, %c2_28, %c0_29, %c0_30] : memref<1x4x65x256xbf16, #tpu.memory_space<vmem>>, vector<1x1x65x256xbf16>
    %36 = vector.shape_cast %35 : vector<1x1x65x256xbf16> to vector<65x256xbf16>
    %37 = vector.shape_cast %34 : vector<65x256xbf16> to vector<1x1x65x256xbf16>
    tpu.vector_store %arg3[%c0_27, %c2_28, %c0_29, %c0_30], %37 {strides = array<i32>} : memref<1x4x65x256xbf16, #tpu.memory_space<vmem>>, vector<1x1x65x256xbf16>,
    %cst_31 = arith.constant dense<0.000000e+00> : vector<256xf32>
    %38 = vector.multi_reduction <add>, %33, %cst_31 [0] : vector<65x256xf32> to vector<256xf32>
    %39 = vector.shape_cast %38 : vector<256xf32> to vector<1x256xf32>
    %40 = arith.addf %26, %39 : vector<1x256xf32>
    %41 = arith.mulf %33, %33 : vector<65x256xf32>
    %cst_32 = arith.constant dense<0.000000e+00> : vector<256xf32>
    %42 = vector.multi_reduction <add>, %41, %cst_32 [0] : vector<65x256xf32> to vector<256xf32>
    %43 = vector.shape_cast %42 : vector<256xf32> to vector<1x256xf32>
    %44 = arith.addf %30, %43 : vector<1x256xf32>
    %c0_33 = arith.constant 0 : index
    %c3 = arith.constant 3 : index
    %c0_34 = arith.constant 0 : index
    %c0_35 = arith.constant 0 : index
    %45 = vector.load %arg1[%c0_33, %c3, %c0_34, %c0_35] : memref<1x4x65x128xf32, #tpu.memory_space<vmem>>, vector<1x1x65x128xf32>
    %46 = vector.shape_cast %45 : vector<1x1x65x128xf32> to vector<65x128xf32>
    %cst_36 = arith.constant dense<0.000000e+00> : vector<65x256xf32>
    %47 = tpu.matmul %46, %0, %cst_36 {dimension_numbers = #tpu.dot_dimension_numbers<[1], [0], [0], [1], [0, 0, 1, 1], [], []>} : vector<65x128xf32>, vector<128x256xf32>, vector<65x256xf32> -> vector<65x256xf32>
    %48 = arith.truncf %47 : vector<65x256xf32> to vector<65x256xbf16>
    %c0_37 = arith.constant 0 : index
    %c3_38 = arith.constant 3 : index
    %c0_39 = arith.constant 0 : index
    %c0_40 = arith.constant 0 : index
    %49 = vector.load %arg3[%c0_37, %c3_38, %c0_39, %c0_40] : memref<1x4x65x256xbf16, #tpu.memory_space<vmem>>, vector<1x1x65x256xbf16>
    %50 = vector.shape_cast %49 : vector<1x1x65x256xbf16> to vector<65x256xbf16>
    %51 = vector.shape_cast %48 : vector<65x256xbf16> to vector<1x1x65x256xbf16>
    tpu.vector_store %arg3[%c0_37, %c3_38, %c0_39, %c0_40], %51 {strides = array<i32>} : memref<1x4x65x256xbf16, #tpu.memory_space<vmem>>, vector<1x1x65x256xbf16>,
    %cst_41 = arith.constant dense<0.000000e+00> : vector<256xf32>
    %52 = vector.multi_reduction <add>, %47, %cst_41 [0] : vector<65x256xf32> to vector<256xf32>
    %53 = vector.shape_cast %52 : vector<256xf32> to vector<1x256xf32>
    %54 = arith.addf %40, %53 : vector<1x256xf32>
    %55 = arith.mulf %47, %47 : vector<65x256xf32>
    %cst_42 = arith.constant dense<0.000000e+00> : vector<256xf32>
    %56 = vector.multi_reduction <add>, %55, %cst_42 [0] : vector<65x256xf32> to vector<256xf32>
    %57 = vector.shape_cast %56 : vector<256xf32> to vector<1x256xf32>
    %58 = arith.addf %44, %57 : vector<1x256xf32>
    %c0_43 = arith.constant 0 : index
    %c0_44 = arith.constant 0 : index
    %c0_45 = arith.constant 0 : index
    %59 = vector.load %arg4[%c0_43, %c0_44, %c0_45] : memref<1x1x256xf32, #tpu.memory_space<vmem>>, vector<1x1x256xf32>
    %60 = vector.shape_cast %59 : vector<1x1x256xf32> to vector<1x256xf32>
    %61 = vector.shape_cast %54 : vector<1x256xf32> to vector<1x1x256xf32>
    tpu.vector_store %arg4[%c0_43, %c0_44, %c0_45], %61 {strides = array<i32>} : memref<1x1x256xf32, #tpu.memory_space<vmem>>, vector<1x1x256xf32>,
    %c0_46 = arith.constant 0 : index
    %c0_47 = arith.constant 0 : index
    %c0_48 = arith.constant 0 : index
    %62 = vector.load %arg5[%c0_46, %c0_47, %c0_48] : memref<1x1x256xf32, #tpu.memory_space<vmem>>, vector<1x1x256xf32>
    %63 = vector.shape_cast %62 : vector<1x1x256xf32> to vector<1x256xf32>
    %64 = vector.shape_cast %58 : vector<1x256xf32> to vector<1x1x256xf32>
    tpu.vector_store %arg5[%c0_46, %c0_47, %c0_48], %64 {strides = array<i32>} : memref<1x1x256xf32, #tpu.memory_space<vmem>>, vector<1x1x256xf32>,
    return
  }
  func.func @transform_0(%arg0: i32) -> (i32, i32, i32, i32) {
    %c0_i32 = arith.constant 0 : i32
    %c0_i32_0 = arith.constant 0 : i32
    %c0_i32_1 = arith.constant 0 : i32
    %c0_i32_2 = arith.constant 0 : i32
    return %arg0, %c0_i32, %c0_i32_0, %c0_i32_1 : i32, i32, i32, i32
  }
  func.func @transform_1(%arg0: i32) -> (i32, i32) {
    %c0_i32 = arith.constant 0 : i32
    %c0_i32_0 = arith.constant 0 : i32
    %c0_i32_1 = arith.constant 0 : i32
    return %c0_i32, %c0_i32_0 : i32, i32
  }
  func.func @transform_2(%arg0: i32) -> (i32, i32, i32, i32) {
    %c0_i32 = arith.constant 0 : i32
    %c0_i32_0 = arith.constant 0 : i32
    %c0_i32_1 = arith.constant 0 : i32
    %c0_i32_2 = arith.constant 0 : i32
    return %arg0, %c0_i32, %c0_i32_0, %c0_i32_1 : i32, i32, i32, i32
  }
  func.func @transform_3(%arg0: i32) -> (i32, i32, i32) {
    %c0_i32 = arith.constant 0 : i32
    %c0_i32_0 = arith.constant 0 : i32
    %c0_i32_1 = arith.constant 0 : i32
    return %arg0, %c0_i32, %c0_i32_0 : i32, i32, i32
  }
  func.func @transform_4(%arg0: i32) -> (i32, i32, i32) {
    %c0_i32 = arith.constant 0 : i32
    %c0_i32_0 = arith.constant 0 : i32
    %c0_i32_1 = arith.constant 0 : i32
    return %arg0, %c0_i32, %c0_i32_0 : i32, i32, i32
  }
}

module attributes {stable_mosaic.version = 11 : i64} {
  func.func @kernel(%arg0: i32, %arg1: memref<1x4x65x256xbf16, #tpu.memory_space<vmem>>, %arg2: memref<2x1x256xf32, #tpu.memory_space<vmem>>, %arg3: memref<2x1x256xf32, #tpu.memory_space<vmem>>, %arg4: memref<768x256xf32, #tpu.memory_space<vmem>>, %arg5: memref<1x64x256xbf16, #tpu.memory_space<vmem>>, %arg6: memref<1x1x256xf32, #tpu.memory_space<vmem>>, %arg7: memref<1x1x256xf32, #tpu.memory_space<vmem>>) attributes {dimension_semantics = [#tpu.dimension_semantics<parallel>], iteration_bounds = array<i64: 2>, scalar_prefetch = 0 : i64, scratch_operands = 0 : i64, tpu.core_type = #tpu.core_type<tc>, window_params = [{transform_indices = @transform_0, window_bounds = array<i64: 1, 4, 65, 256>}, {pipeline_mode = #tpu.pipeline_mode<synchronous>, transform_indices = @transform_1, window_bounds = array<i64: 2, 1, 256>}, {pipeline_mode = #tpu.pipeline_mode<synchronous>, transform_indices = @transform_2, window_bounds = array<i64: 2, 1, 256>}, {pipeline_mode = #tpu.pipeline_mode<synchronous>, transform_indices = @transform_3, window_bounds = array<i64: 768, 256>}, {transform_indices = @transform_4, window_bounds = array<i64: 1, 64, 256>}, {transform_indices = @transform_5, window_bounds = array<i64: 1, 1, 256>}, {transform_indices = @transform_6, window_bounds = array<i64: 1, 1, 256>}]} {
    %c0 = arith.constant 0 : index
    %c0_0 = arith.constant 0 : index
    %c0_1 = arith.constant 0 : index
    %0 = vector.load %arg2[%c0, %c0_0, %c0_1] : memref<2x1x256xf32, #tpu.memory_space<vmem>>, vector<1x1x256xf32>
    %1 = vector.shape_cast %0 : vector<1x1x256xf32> to vector<1x256xf32>
    %c0_2 = arith.constant 0 : index
    %c0_3 = arith.constant 0 : index
    %c0_4 = arith.constant 0 : index
    %2 = vector.load %arg3[%c0_2, %c0_3, %c0_4] : memref<2x1x256xf32, #tpu.memory_space<vmem>>, vector<1x1x256xf32>
    %3 = vector.shape_cast %2 : vector<1x1x256xf32> to vector<1x256xf32>
    %c1 = arith.constant 1 : index
    %c0_5 = arith.constant 0 : index
    %c0_6 = arith.constant 0 : index
    %4 = vector.load %arg2[%c1, %c0_5, %c0_6] : memref<2x1x256xf32, #tpu.memory_space<vmem>>, vector<1x1x256xf32>
    %5 = vector.shape_cast %4 : vector<1x1x256xf32> to vector<1x256xf32>
    %6 = arith.addf %1, %5 : vector<1x256xf32>
    %c1_7 = arith.constant 1 : index
    %c0_8 = arith.constant 0 : index
    %c0_9 = arith.constant 0 : index
    %7 = vector.load %arg3[%c1_7, %c0_8, %c0_9] : memref<2x1x256xf32, #tpu.memory_space<vmem>>, vector<1x1x256xf32>
    %8 = vector.shape_cast %7 : vector<1x1x256xf32> to vector<1x256xf32>
    %9 = arith.addf %3, %8 : vector<1x256xf32>
    %cst = arith.constant 0.00194552529 : f32
    %10 = vector.broadcast %cst : f32 to vector<1x256xf32>
    %11 = arith.mulf %6, %10 : vector<1x256xf32>
    %cst_10 = arith.constant 0.00194552529 : f32
    %12 = vector.broadcast %cst_10 : f32 to vector<1x256xf32>
    %13 = arith.mulf %9, %12 : vector<1x256xf32>
    %14 = arith.mulf %11, %11 : vector<1x256xf32>
    %15 = arith.subf %13, %14 : vector<1x256xf32>
    %cst_11 = arith.constant 0.000000e+00 : f32
    %16 = vector.broadcast %cst_11 : f32 to vector<1x256xf32>
    %17 = arith.maximumf %15, %16 : vector<1x256xf32>
    %cst_12 = arith.constant 2.000000e-05 : f32
    %18 = vector.broadcast %cst_12 : f32 to vector<1x256xf32>
    %19 = arith.addf %17, %18 : vector<1x256xf32>
    %20 = math.rsqrt %19 : vector<1x256xf32>
    %cst_13 = arith.constant 0.000000e+00 : f32
    %21 = vector.broadcast %cst_13 : f32 to vector<1x256xf32>
    %22 = arith.subf %21, %11 : vector<1x256xf32>
    %23 = arith.mulf %22, %20 : vector<1x256xf32>
    %c0_14 = arith.constant 0 : index
    %c0_15 = arith.constant 0 : index
    %c0_16 = arith.constant 0 : index
    %c0_17 = arith.constant 0 : index
    %24 = vector.load %arg1[%c0_14, %c0_15, %c0_16, %c0_17] : memref<1x4x65x256xbf16, #tpu.memory_space<vmem>>, vector<1x4x65x256xbf16>
    %25 = vector.shape_cast %24 : vector<1x4x65x256xbf16> to vector<4x65x256xbf16>
    %26 = arith.extf %25 : vector<4x65x256xbf16> to vector<4x65x256xf32>
    %27 = vector.shape_cast %20 : vector<1x256xf32> to vector<1x1x256xf32>
    %28 = vector.broadcast %27 : vector<1x1x256xf32> to vector<4x65x256xf32>
    %29 = arith.mulf %26, %28 : vector<4x65x256xf32>
    %30 = vector.shape_cast %23 : vector<1x256xf32> to vector<1x1x256xf32>
    %31 = vector.broadcast %30 : vector<1x1x256xf32> to vector<4x65x256xf32>
    %32 = arith.addf %29, %31 : vector<4x65x256xf32>
    %cst_18 = arith.constant 0.000000e+00 : f32
    %33 = vector.broadcast %cst_18 : f32 to vector<4x65x256xf32>
    %34 = arith.maximumf %32, %33 : vector<4x65x256xf32>
    %35 = vector.extract_strided_slice %34 {offsets = [0, 0, 0], sizes = [1, 64, 256], strides = [1, 1, 1]} : vector<4x65x256xf32> to vector<1x64x256xf32>
    %36 = vector.shape_cast %35 : vector<1x64x256xf32> to vector<64x256xf32>
    %37 = vector.extract_strided_slice %34 {offsets = [1, 0, 0], sizes = [1, 64, 256], strides = [1, 1, 1]} : vector<4x65x256xf32> to vector<1x64x256xf32>
    %38 = vector.shape_cast %37 : vector<1x64x256xf32> to vector<64x256xf32>
    %39 = arith.maximumf %36, %38 : vector<64x256xf32>
    %40 = vector.extract_strided_slice %34 {offsets = [2, 0, 0], sizes = [1, 64, 256], strides = [1, 1, 1]} : vector<4x65x256xf32> to vector<1x64x256xf32>
    %41 = vector.shape_cast %40 : vector<1x64x256xf32> to vector<64x256xf32>
    %42 = vector.extract_strided_slice %34 {offsets = [3, 0, 0], sizes = [1, 64, 256], strides = [1, 1, 1]} : vector<4x65x256xf32> to vector<1x64x256xf32>
    %43 = vector.shape_cast %42 : vector<1x64x256xf32> to vector<64x256xf32>
    %44 = arith.maximumf %41, %43 : vector<64x256xf32>
    %45 = arith.maximumf %39, %44 : vector<64x256xf32>
    %cst_19 = arith.constant 0.000000e+00 : f32
    %46 = vector.broadcast %cst_19 : f32 to vector<1x256xf32>
    %47 = vector.extract_strided_slice %45 {offsets = [0, 0], sizes = [63, 256], strides = [1, 1]} : vector<64x256xf32> to vector<63x256xf32>
    %48 = tpu.concatenate %46, %47 in 0 : vector<1x256xf32>, vector<63x256xf32> -> vector<64x256xf32>
    %49 = vector.extract_strided_slice %45 {offsets = [1, 0], sizes = [63, 256], strides = [1, 1]} : vector<64x256xf32> to vector<63x256xf32>
    %50 = tpu.concatenate %49, %46 in 0 : vector<63x256xf32>, vector<1x256xf32> -> vector<64x256xf32>
    %51 = tpu.concatenate %48, %45, %50 in 1 : vector<64x256xf32>, vector<64x256xf32>, vector<64x256xf32> -> vector<64x768xf32>
    %c0_20 = arith.constant 0 : index
    %c0_21 = arith.constant 0 : index
    %52 = vector.load %arg4[%c0_20, %c0_21] : memref<768x256xf32, #tpu.memory_space<vmem>>, vector<768x256xf32>
    %cst_22 = arith.constant dense<0.000000e+00> : vector<64x256xf32>
    %53 = tpu.matmul %51, %52, %cst_22 {dimension_numbers = #tpu.dot_dimension_numbers<[1], [0], [0], [1], [0, 0, 1, 1], [], []>} : vector<64x768xf32>, vector<768x256xf32>, vector<64x256xf32> -> vector<64x256xf32>
    %54 = arith.truncf %53 : vector<64x256xf32> to vector<64x256xbf16>
    %c0_23 = arith.constant 0 : index
    %c0_24 = arith.constant 0 : index
    %c0_25 = arith.constant 0 : index
    %55 = vector.load %arg5[%c0_23, %c0_24, %c0_25] : memref<1x64x256xbf16, #tpu.memory_space<vmem>>, vector<1x64x256xbf16>
    %56 = vector.shape_cast %55 : vector<1x64x256xbf16> to vector<64x256xbf16>
    %57 = vector.shape_cast %54 : vector<64x256xbf16> to vector<1x64x256xbf16>
    tpu.vector_store %arg5[%c0_23, %c0_24, %c0_25], %57 {strides = array<i32>} : memref<1x64x256xbf16, #tpu.memory_space<vmem>>, vector<1x64x256xbf16>,
    %cst_26 = arith.constant dense<0.000000e+00> : vector<256xf32>
    %58 = vector.multi_reduction <add>, %53, %cst_26 [0] : vector<64x256xf32> to vector<256xf32>
    %59 = vector.shape_cast %58 : vector<256xf32> to vector<1x256xf32>
    %c0_27 = arith.constant 0 : index
    %c0_28 = arith.constant 0 : index
    %c0_29 = arith.constant 0 : index
    %60 = vector.load %arg6[%c0_27, %c0_28, %c0_29] : memref<1x1x256xf32, #tpu.memory_space<vmem>>, vector<1x1x256xf32>
    %61 = vector.shape_cast %60 : vector<1x1x256xf32> to vector<1x256xf32>
    %62 = vector.shape_cast %59 : vector<1x256xf32> to vector<1x1x256xf32>
    tpu.vector_store %arg6[%c0_27, %c0_28, %c0_29], %62 {strides = array<i32>} : memref<1x1x256xf32, #tpu.memory_space<vmem>>, vector<1x1x256xf32>,
    %63 = arith.mulf %53, %53 : vector<64x256xf32>
    %cst_30 = arith.constant dense<0.000000e+00> : vector<256xf32>
    %64 = vector.multi_reduction <add>, %63, %cst_30 [0] : vector<64x256xf32> to vector<256xf32>
    %65 = vector.shape_cast %64 : vector<256xf32> to vector<1x256xf32>
    %c0_31 = arith.constant 0 : index
    %c0_32 = arith.constant 0 : index
    %c0_33 = arith.constant 0 : index
    %66 = vector.load %arg7[%c0_31, %c0_32, %c0_33] : memref<1x1x256xf32, #tpu.memory_space<vmem>>, vector<1x1x256xf32>
    %67 = vector.shape_cast %66 : vector<1x1x256xf32> to vector<1x256xf32>
    %68 = vector.shape_cast %65 : vector<1x256xf32> to vector<1x1x256xf32>
    tpu.vector_store %arg7[%c0_31, %c0_32, %c0_33], %68 {strides = array<i32>} : memref<1x1x256xf32, #tpu.memory_space<vmem>>, vector<1x1x256xf32>,
    return
  }
  func.func @transform_0(%arg0: i32) -> (i32, i32, i32, i32) {
    %c0_i32 = arith.constant 0 : i32
    %c0_i32_0 = arith.constant 0 : i32
    %c0_i32_1 = arith.constant 0 : i32
    %c0_i32_2 = arith.constant 0 : i32
    return %arg0, %c0_i32, %c0_i32_0, %c0_i32_1 : i32, i32, i32, i32
  }
  func.func @transform_1(%arg0: i32) -> (i32, i32, i32) {
    %c0_i32 = arith.constant 0 : i32
    %c0_i32_0 = arith.constant 0 : i32
    %c0_i32_1 = arith.constant 0 : i32
    %c0_i32_2 = arith.constant 0 : i32
    return %c0_i32, %c0_i32_0, %c0_i32_1 : i32, i32, i32
  }
  func.func @transform_2(%arg0: i32) -> (i32, i32, i32) {
    %c0_i32 = arith.constant 0 : i32
    %c0_i32_0 = arith.constant 0 : i32
    %c0_i32_1 = arith.constant 0 : i32
    %c0_i32_2 = arith.constant 0 : i32
    return %c0_i32, %c0_i32_0, %c0_i32_1 : i32, i32, i32
  }
  func.func @transform_3(%arg0: i32) -> (i32, i32) {
    %c0_i32 = arith.constant 0 : i32
    %c0_i32_0 = arith.constant 0 : i32
    %c0_i32_1 = arith.constant 0 : i32
    return %c0_i32, %c0_i32_0 : i32, i32
  }
  func.func @transform_4(%arg0: i32) -> (i32, i32, i32) {
    %c0_i32 = arith.constant 0 : i32
    %c0_i32_0 = arith.constant 0 : i32
    %c0_i32_1 = arith.constant 0 : i32
    return %arg0, %c0_i32, %c0_i32_0 : i32, i32, i32
  }
  func.func @transform_5(%arg0: i32) -> (i32, i32, i32) {
    %c0_i32 = arith.constant 0 : i32
    %c0_i32_0 = arith.constant 0 : i32
    %c0_i32_1 = arith.constant 0 : i32
    return %arg0, %c0_i32, %c0_i32_0 : i32, i32, i32
  }
  func.func @transform_6(%arg0: i32) -> (i32, i32, i32) {
    %c0_i32 = arith.constant 0 : i32
    %c0_i32_0 = arith.constant 0 : i32
    %c0_i32_1 = arith.constant 0 : i32
    return %arg0, %c0_i32, %c0_i32_0 : i32, i32, i32
  }
}

module attributes {stable_mosaic.version = 11 : i64} {
  func.func @kernel(%arg0: i32, %arg1: memref<1x64x256xbf16, #tpu.memory_space<vmem>>, %arg2: memref<2x1x256xf32, #tpu.memory_space<vmem>>, %arg3: memref<2x1x256xf32, #tpu.memory_space<vmem>>, %arg4: memref<1x61xf32, #tpu.memory_space<vmem>>, %arg5: memref<256x10xf32, #tpu.memory_space<vmem>>, %arg6: memref<1x1x10xf32, #tpu.memory_space<vmem>>) attributes {dimension_semantics = [#tpu.dimension_semantics<parallel>], iteration_bounds = array<i64: 2>, scalar_prefetch = 0 : i64, scratch_operands = 0 : i64, tpu.core_type = #tpu.core_type<tc>, window_params = [{transform_indices = @transform_0, window_bounds = array<i64: 1, 64, 256>}, {pipeline_mode = #tpu.pipeline_mode<synchronous>, transform_indices = @transform_1, window_bounds = array<i64: 2, 1, 256>}, {pipeline_mode = #tpu.pipeline_mode<synchronous>, transform_indices = @transform_2, window_bounds = array<i64: 2, 1, 256>}, {pipeline_mode = #tpu.pipeline_mode<synchronous>, transform_indices = @transform_3, window_bounds = array<i64: 1, 61>}, {pipeline_mode = #tpu.pipeline_mode<synchronous>, transform_indices = @transform_4, window_bounds = array<i64: 256, 10>}, {transform_indices = @transform_5, window_bounds = array<i64: 1, 1, 10>}]} {
    %c0 = arith.constant 0 : index
    %c0_0 = arith.constant 0 : index
    %c0_1 = arith.constant 0 : index
    %0 = vector.load %arg2[%c0, %c0_0, %c0_1] : memref<2x1x256xf32, #tpu.memory_space<vmem>>, vector<1x1x256xf32>
    %1 = vector.shape_cast %0 : vector<1x1x256xf32> to vector<1x256xf32>
    %c0_2 = arith.constant 0 : index
    %c0_3 = arith.constant 0 : index
    %c0_4 = arith.constant 0 : index
    %2 = vector.load %arg3[%c0_2, %c0_3, %c0_4] : memref<2x1x256xf32, #tpu.memory_space<vmem>>, vector<1x1x256xf32>
    %3 = vector.shape_cast %2 : vector<1x1x256xf32> to vector<1x256xf32>
    %c1 = arith.constant 1 : index
    %c0_5 = arith.constant 0 : index
    %c0_6 = arith.constant 0 : index
    %4 = vector.load %arg2[%c1, %c0_5, %c0_6] : memref<2x1x256xf32, #tpu.memory_space<vmem>>, vector<1x1x256xf32>
    %5 = vector.shape_cast %4 : vector<1x1x256xf32> to vector<1x256xf32>
    %6 = arith.addf %1, %5 : vector<1x256xf32>
    %c1_7 = arith.constant 1 : index
    %c0_8 = arith.constant 0 : index
    %c0_9 = arith.constant 0 : index
    %7 = vector.load %arg3[%c1_7, %c0_8, %c0_9] : memref<2x1x256xf32, #tpu.memory_space<vmem>>, vector<1x1x256xf32>
    %8 = vector.shape_cast %7 : vector<1x1x256xf32> to vector<1x256xf32>
    %9 = arith.addf %3, %8 : vector<1x256xf32>
    %cst = arith.constant 7.812500e-03 : f32
    %10 = vector.broadcast %cst : f32 to vector<1x256xf32>
    %11 = arith.mulf %6, %10 : vector<1x256xf32>
    %cst_10 = arith.constant 7.812500e-03 : f32
    %12 = vector.broadcast %cst_10 : f32 to vector<1x256xf32>
    %13 = arith.mulf %9, %12 : vector<1x256xf32>
    %14 = arith.mulf %11, %11 : vector<1x256xf32>
    %15 = arith.subf %13, %14 : vector<1x256xf32>
    %cst_11 = arith.constant 0.000000e+00 : f32
    %16 = vector.broadcast %cst_11 : f32 to vector<1x256xf32>
    %17 = arith.maximumf %15, %16 : vector<1x256xf32>
    %cst_12 = arith.constant 2.000000e-05 : f32
    %18 = vector.broadcast %cst_12 : f32 to vector<1x256xf32>
    %19 = arith.addf %17, %18 : vector<1x256xf32>
    %20 = math.rsqrt %19 : vector<1x256xf32>
    %c0_13 = arith.constant 0 : index
    %c0_14 = arith.constant 0 : index
    %c0_15 = arith.constant 0 : index
    %21 = vector.load %arg1[%c0_13, %c0_14, %c0_15] : memref<1x64x256xbf16, #tpu.memory_space<vmem>>, vector<1x64x256xbf16>
    %22 = vector.shape_cast %21 : vector<1x64x256xbf16> to vector<64x256xbf16>
    %23 = arith.extf %22 : vector<64x256xbf16> to vector<64x256xf32>
    %24 = vector.broadcast %20 : vector<1x256xf32> to vector<64x256xf32>
    %25 = arith.mulf %23, %24 : vector<64x256xf32>
    %cst_16 = arith.constant 0.000000e+00 : f32
    %26 = vector.broadcast %cst_16 : f32 to vector<1x256xf32>
    %27 = arith.subf %26, %11 : vector<1x256xf32>
    %28 = arith.mulf %27, %20 : vector<1x256xf32>
    %29 = vector.broadcast %28 : vector<1x256xf32> to vector<64x256xf32>
    %30 = arith.addf %25, %29 : vector<64x256xf32>
    %cst_17 = arith.constant 0.000000e+00 : f32
    %31 = vector.broadcast %cst_17 : f32 to vector<64x256xf32>
    %32 = arith.maximumf %30, %31 : vector<64x256xf32>
    %33 = vector.extract_strided_slice %32 {offsets = [0, 0], sizes = [61, 256], strides = [1, 1]} : vector<64x256xf32> to vector<61x256xf32>
    %34 = vector.extract_strided_slice %32 {offsets = [1, 0], sizes = [61, 256], strides = [1, 1]} : vector<64x256xf32> to vector<61x256xf32>
    %35 = arith.maximumf %33, %34 : vector<61x256xf32>
    %36 = vector.extract_strided_slice %32 {offsets = [2, 0], sizes = [61, 256], strides = [1, 1]} : vector<64x256xf32> to vector<61x256xf32>
    %37 = vector.extract_strided_slice %32 {offsets = [3, 0], sizes = [61, 256], strides = [1, 1]} : vector<64x256xf32> to vector<61x256xf32>
    %38 = arith.maximumf %36, %37 : vector<61x256xf32>
    %39 = arith.maximumf %35, %38 : vector<61x256xf32>
    %c0_18 = arith.constant 0 : index
    %c0_19 = arith.constant 0 : index
    %40 = vector.load %arg4[%c0_18, %c0_19] : memref<1x61xf32, #tpu.memory_space<vmem>>, vector<1x61xf32>
    %cst_20 = arith.constant dense<0.000000e+00> : vector<1x256xf32>
    %41 = tpu.matmul %40, %39, %cst_20 {dimension_numbers = #tpu.dot_dimension_numbers<[1], [0], [0], [1], [0, 0, 1, 1], [], []>} : vector<1x61xf32>, vector<61x256xf32>, vector<1x256xf32> -> vector<1x256xf32>
    %c0_21 = arith.constant 0 : index
    %c0_22 = arith.constant 0 : index
    %42 = vector.load %arg5[%c0_21, %c0_22] : memref<256x10xf32, #tpu.memory_space<vmem>>, vector<256x10xf32>
    %cst_23 = arith.constant dense<0.000000e+00> : vector<1x10xf32>
    %43 = tpu.matmul %41, %42, %cst_23 {dimension_numbers = #tpu.dot_dimension_numbers<[1], [0], [0], [1], [0, 0, 1, 1], [], []>} : vector<1x256xf32>, vector<256x10xf32>, vector<1x10xf32> -> vector<1x10xf32>
    %c0_24 = arith.constant 0 : index
    %c0_25 = arith.constant 0 : index
    %c0_26 = arith.constant 0 : index
    %44 = vector.load %arg6[%c0_24, %c0_25, %c0_26] : memref<1x1x10xf32, #tpu.memory_space<vmem>>, vector<1x1x10xf32>
    %45 = vector.shape_cast %44 : vector<1x1x10xf32> to vector<1x10xf32>
    %46 = vector.shape_cast %43 : vector<1x10xf32> to vector<1x1x10xf32>
    tpu.vector_store %arg6[%c0_24, %c0_25, %c0_26], %46 {strides = array<i32>} : memref<1x1x10xf32, #tpu.memory_space<vmem>>, vector<1x1x10xf32>,
    return
  }
  func.func @transform_0(%arg0: i32) -> (i32, i32, i32) {
    %c0_i32 = arith.constant 0 : i32
    %c0_i32_0 = arith.constant 0 : i32
    %c0_i32_1 = arith.constant 0 : i32
    return %arg0, %c0_i32, %c0_i32_0 : i32, i32, i32
  }
  func.func @transform_1(%arg0: i32) -> (i32, i32, i32) {
    %c0_i32 = arith.constant 0 : i32
    %c0_i32_0 = arith.constant 0 : i32
    %c0_i32_1 = arith.constant 0 : i32
    %c0_i32_2 = arith.constant 0 : i32
    return %c0_i32, %c0_i32_0, %c0_i32_1 : i32, i32, i32
  }
  func.func @transform_2(%arg0: i32) -> (i32, i32, i32) {
    %c0_i32 = arith.constant 0 : i32
    %c0_i32_0 = arith.constant 0 : i32
    %c0_i32_1 = arith.constant 0 : i32
    %c0_i32_2 = arith.constant 0 : i32
    return %c0_i32, %c0_i32_0, %c0_i32_1 : i32, i32, i32
  }
  func.func @transform_3(%arg0: i32) -> (i32, i32) {
    %c0_i32 = arith.constant 0 : i32
    %c0_i32_0 = arith.constant 0 : i32
    %c0_i32_1 = arith.constant 0 : i32
    return %c0_i32, %c0_i32_0 : i32, i32
  }
  func.func @transform_4(%arg0: i32) -> (i32, i32) {
    %c0_i32 = arith.constant 0 : i32
    %c0_i32_0 = arith.constant 0 : i32
    %c0_i32_1 = arith.constant 0 : i32
    return %c0_i32, %c0_i32_0 : i32, i32
  }
  func.func @transform_5(%arg0: i32) -> (i32, i32, i32) {
    %c0_i32 = arith.constant 0 : i32
    %c0_i32_0 = arith.constant 0 : i32
    %c0_i32_1 = arith.constant 0 : i32
    return %arg0, %c0_i32, %c0_i32_0 : i32, i32, i32
  }
}

</mosaic_0001>

<llo_original>
// kernel: forward.5
$region0: #{forward.5}
  #allocation0 [shape = 'u32[]', space=smem, size = 0x4, offset = 0x4, fixed_abs, tag = 'smem constant byte address 0x4 - core index']
  #allocation1 [shape = 'u32[144,128]{1,0:T(1,128)}', space=vmem, size = 0x12000, scoped, tag = 'internal scratch']
  %s0 = inlined_call_operand.vmem [shape: bf16[2,64,256], index: 0, kind: input, shape index: {}]
  %s1 = inlined_call_operand.vmem [shape: f32[2,1,256], index: 1, kind: input, shape index: {}]
  %s2 = inlined_call_operand.vmem [shape: f32[2,1,256], index: 2, kind: input, shape index: {}]
  %s3 = inlined_call_operand.vmem [shape: f32[1,61], index: 3, kind: input, shape index: {}]
  %s4 = inlined_call_operand.vmem [shape: f32[256,10], index: 4, kind: input, shape index: {}]
  %s5 = inlined_call_operand.hbm [shape: f32[2,1,10], index: 5, kind: output, shape index: {}]
  %s6 = sld [smem:[#allocation0]]
  $region53: #{forward.5} parent=0
    _
  %s8 = ssub.s32 1, %s6
  %s9 = scalar_select 0, %s8, %s6
  $region1: #{forward.5} parent=0
    #allocation2 [shape = 'u8[1024]{0}', space=vmem, size = 0x400, scoped, tag = 'output window, operand 0']
    #allocation3 [shape = 's32[2]{0}', space=sflag, size = 0x8, scoped, tag = 'scoped memory for forward.5']
    %10 = vsyncpa [#allocation3], 0
    %s11 = scalar_lea.sflag [#allocation3], 1
    %12 = vsyncpa %s11, 0
    loop: start=0, step=1, limit=4
    $region2: #{forward.5} parent=1 // loop_pre_header
      _
    $region3: #{forward.5} parent=1 // loop_header
      %s14 = sphi 0, %s18
      %p15 = scmp.ge.s32.totalorder %s14, 4
      %s24 = sphi 0, %s26
      %s27 = sphi 0, %s24
      %s28 = sphi 0, %s27
      %s44 = sphi 0, %s28
      %s48 = sphi 0, %s48
      %s50 = sphi 0, %s48
      %s51 = sphi 0, %s50
      %s65 = sphi 0, %s51
      %s69 = sphi 0, %s69
      %s71 = sphi 0, %s69
      %s72 = sphi 0, %s71
      %s86 = sphi 0, %s72
      %s90 = sphi 0, %s90
      %s92 = sphi 0, %s90
      %s93 = sphi 0, %s92
      %s107 = sphi 0, %s93
      %s111 = sphi 0, %s111
      %s113 = sphi 0, %s111
      %s114 = sphi 0, %s113
      %s128 = sphi 0, %s114
      %s134 = sphi 0, %s136
      %s137 = sphi 0, %s134
      %s138 = sphi 0, %s137
      %s154 = sphi 0, %s138
    $region4: #{forward.5} parent=1 // loop_header_branch
      %17 = sbr.rel (%p15) target = $region8
    $region5: #{forward.5} parent=1 // loop_body
      %s19 = ssub.s32 %s14, 1
      %s20 = ssub.s32 %s14, 2
      %s21 = sadd.s32 %s14, 1
      %s22 = ssub.s32 %s14, %s21
      %p23 = scmp.eq.s32.totalorder %s22, 0
      %s25 = sadd.s32 %s24, 1
      %s26 = scalar_select %p23, %s24, %s25
      %p29 = pneg %p23
      %p30 = scmp.eq.s32.totalorder %s14, 1
      %p31 = por %p29, %p30
      %p32 = scmp.ne.s32.totalorder %s24, %s27
      %p33 = scmp.eq.s32.totalorder %s14, 0
      %p34 = por %p32, %p33
      %p35 = scmp.ne.s32.totalorder %s24, %s27
      %p36 = scmp.eq.s32.totalorder %s19, 1
      %p37 = por %p35, %p36
      %p38 = scmp.ne.s32.totalorder %s27, %s28
      %p39 = scmp.eq.s32.totalorder %s19, 0
      %p40 = por %p38, %p39
      %p41 = scmp.ne.s32.totalorder %s27, %s28
      %p42 = scmp.eq.s32.totalorder %s20, 1
      %p43 = por %p41, %p42
      %p45 = scmp.ne.s32.totalorder %s28, %s44
      %p46 = scmp.eq.s32.totalorder %s20, 0
      %p47 = por %p45, %p46
      %s49 = sadd.s32 %s48, 1
      %p52 = scmp.eq.s32.totalorder %s14, 1
      %p53 = scmp.ne.s32.totalorder %s48, %s50
      %p54 = scmp.eq.s32.totalorder %s14, 0
      %p55 = por %p53, %p54
      %p56 = scmp.ne.s32.totalorder %s48, %s50
      %p57 = scmp.eq.s32.totalorder %s19, 1
      %p58 = por %p56, %p57
      %p59 = scmp.ne.s32.totalorder %s50, %s51
      %p60 = scmp.eq.s32.totalorder %s19, 0
      %p61 = por %p59, %p60
      %p62 = scmp.ne.s32.totalorder %s50, %s51
      %p63 = scmp.eq.s32.totalorder %s20, 1
      %p64 = por %p62, %p63
      %p66 = scmp.ne.s32.totalorder %s51, %s65
      %p67 = scmp.eq.s32.totalorder %s20, 0
      %p68 = por %p66, %p67
      %s70 = sadd.s32 %s69, 1
      %p73 = scmp.eq.s32.totalorder %s14, 1
      %p74 = scmp.ne.s32.totalorder %s69, %s71
      %p75 = scmp.eq.s32.totalorder %s14, 0
      %p76 = por %p74, %p75
      %p77 = scmp.ne.s32.totalorder %s69, %s71
      %p78 = scmp.eq.s32.totalorder %s19, 1
      %p79 = por %p77, %p78
      %p80 = scmp.ne.s32.totalorder %s71, %s72
      %p81 = scmp.eq.s32.totalorder %s19, 0
      %p82 = por %p80, %p81
      %p83 = scmp.ne.s32.totalorder %s71, %s72
      %p84 = scmp.eq.s32.totalorder %s20, 1
      %p85 = por %p83, %p84
      %p87 = scmp.ne.s32.totalorder %s72, %s86
      %p88 = scmp.eq.s32.totalorder %s20, 0
      %p89 = por %p87, %p88
      %s91 = sadd.s32 %s90, 1
      %p94 = scmp.eq.s32.totalorder %s14, 1
      %p95 = scmp.ne.s32.totalorder %s90, %s92
      %p96 = scmp.eq.s32.totalorder %s14, 0
      %p97 = por %p95, %p96
      %p98 = scmp.ne.s32.totalorder %s90, %s92
      %p99 = scmp.eq.s32.totalorder %s19, 1
      %p100 = por %p98, %p99
      %p101 = scmp.ne.s32.totalorder %s92, %s93
      %p102 = scmp.eq.s32.totalorder %s19, 0
      %p103 = por %p101, %p102
      %p104 = scmp.ne.s32.totalorder %s92, %s93
      %p105 = scmp.eq.s32.totalorder %s20, 1
      %p106 = por %p104, %p105
      %p108 = scmp.ne.s32.totalorder %s93, %s107
      %p109 = scmp.eq.s32.totalorder %s20, 0
      %p110 = por %p108, %p109
      %s112 = sadd.s32 %s111, 1
      %p115 = scmp.eq.s32.totalorder %s14, 1
      %p116 = scmp.ne.s32.totalorder %s111, %s113
      %p117 = scmp.eq.s32.totalorder %s14, 0
      %p118 = por %p116, %p117
      %p119 = scmp.ne.s32.totalorder %s111, %s113
      %p120 = scmp.eq.s32.totalorder %s19, 1
      %p121 = por %p119, %p120
      %p122 = scmp.ne.s32.totalorder %s113, %s114
      %p123 = scmp.eq.s32.totalorder %s19, 0
      %p124 = por %p122, %p123
      %p125 = scmp.ne.s32.totalorder %s113, %s114
      %p126 = scmp.eq.s32.totalorder %s20, 1
      %p127 = por %p125, %p126
      %p129 = scmp.ne.s32.totalorder %s114, %s128
      %p130 = scmp.eq.s32.totalorder %s20, 0
      %p131 = por %p129, %p130
      %s132 = ssub.s32 %s14, %s21
      %p133 = scmp.eq.s32.totalorder %s132, 0
      %s135 = sadd.s32 %s134, 1
      %s136 = scalar_select %p133, %s134, %s135
      %p139 = pneg %p133
      %p140 = scmp.eq.s32.totalorder %s14, 1
      %p141 = por %p139, %p140
      %p142 = scmp.ne.s32.totalorder %s134, %s137
      %p143 = scmp.eq.s32.totalorder %s14, 0
      %p144 = por %p142, %p143
      %p145 = scmp.ne.s32.totalorder %s134, %s137
      %p146 = scmp.eq.s32.totalorder %s19, 1
      %p147 = por %p145, %p146
      %p148 = scmp.ne.s32.totalorder %s137, %s138
      %p149 = scmp.eq.s32.totalorder %s19, 0
      %p150 = por %p148, %p149
      %p151 = scmp.ne.s32.totalorder %s137, %s138
      %p152 = scmp.eq.s32.totalorder %s20, 1
      %p153 = por %p151, %p152
      %p155 = scmp.ne.s32.totalorder %s138, %s154
      %p156 = scmp.eq.s32.totalorder %s20, 0
      %p157 = por %p155, %p156
      %p158 = scmp.le.s32.totalorder 1, %s14
      %p159 = scmp.lt.s32.totalorder %s14, 3
      %p160 = pnand %p158, %p159
      %p161 = pneg %p160
      // Predicated region
      $region9: #{forward.5} parent=5 // pred_check
        _
      $region10: #{forward.5} parent=5 // pred_check_branch
        %163 = sbr.rel (%p160) target = $region12
      $region11: #{forward.5} parent=5 // pred_region
        %s164 = ssub.s32 %s14, 1
        // Predicated region
        $region13: #{forward.5} parent=11 // pred_check
          %p165 = pneg %p61
        $region14: #{forward.5} parent=11 // pred_check_branch
          %167 = sbr.rel (%p165) target = $region16
        $region15: #{forward.5} parent=11 // pred_region
          _
        $region16: #{forward.5} parent=11 // pred_fallthru
          _
        // Predicated region
        $region17: #{forward.5} parent=11 // pred_check
          %p168 = pneg %p82
        $region18: #{forward.5} parent=11 // pred_check_branch
          %170 = sbr.rel (%p168) target = $region20
        $region19: #{forward.5} parent=11 // pred_region
          _
        $region20: #{forward.5} parent=11 // pred_fallthru
          _
        // Predicated region
        $region21: #{forward.5} parent=11 // pred_check
          %p171 = pneg %p103
        $region22: #{forward.5} parent=11 // pred_check_branch
          %173 = sbr.rel (%p171) target = $region24
        $region23: #{forward.5} parent=11 // pred_region
          _
        $region24: #{forward.5} parent=11 // pred_fallthru
          _
        // Predicated region
        $region25: #{forward.5} parent=11 // pred_check
          %p174 = pneg %p124
        $region26: #{forward.5} parent=11 // pred_check_branch
          %176 = sbr.rel (%p174) target = $region28
        $region27: #{forward.5} parent=11 // pred_region
          _
        $region28: #{forward.5} parent=11 // pred_fallthru
          _
      $region12: #{forward.5} parent=5 // pred_fallthru
        _
      %p177 = scmp.lt.s32.totalorder %s14, 2
      // Predicated region
      $region29: #{forward.5} parent=5 // pred_check
        %p178 = pneg %p177
      $region30: #{forward.5} parent=5 // pred_check_branch
        %180 = sbr.rel (%p178) target = $region32
      $region31: #{forward.5} parent=5 // pred_region
        // Predicated region
        $region33: #{forward.5} parent=31 // pred_check
          %p181 = pneg %p34
        $region34: #{forward.5} parent=31 // pred_check_branch
          %183 = sbr.rel (%p181) target = $region36
        $region35: #{forward.5} parent=31 // pred_region
          %p184 = scmp.lt.s32.totalorder %s14, 1
          %s185 = scalar_select %p184, %s14, 1
          %s186 = smul.addr %s185, 16
          %s187 = smul.addr %s186, 4
          %s188 = scalar_lea.vmem %s0, %s187
        $region36: #{forward.5} parent=31 // pred_fallthru
          _
      $region32: #{forward.5} parent=5 // pred_fallthru
        _
      %p189 = scmp.le.s32.totalorder 1, %s14
      %p190 = scmp.lt.s32.totalorder %s14, 3
      %p191 = pnand %p189, %p190
      %p192 = pneg %p191
      // Predicated region
      $region37: #{forward.5} parent=5 // pred_check
        _
      $region38: #{forward.5} parent=5 // pred_check_branch
        %194 = sbr.rel (%p191) target = $region40
      $region39: #{forward.5} parent=5 // pred_region
        %s195 = ssub.s32 %s14, 1
        %p196 = scmp.lt.s32.totalorder %s19, 1
        %s197 = scalar_select %p196, %s19, 1
        %s198 = smul.addr %s197, 16
        %s199 = smul.addr %s198, 4
        %s200 = scalar_lea.vmem %s0, %s199
        %p201 = pneg %p40
        %p202 = pneg %p37
        %p203 = pneg %p61
        %p204 = pneg %p58
        %p205 = pneg %p82
        %p206 = pneg %p79
        %p207 = pneg %p103
        %p208 = pneg %p100
        %p209 = pneg %p124
        %p210 = pneg %p121
        %p211 = pneg %p150
        %p212 = pneg %p147
        %s213 = sand.u32 %s137, 1
        %s214 = scalar_lea.sflag [#allocation3], %s213
        %s215 = sand.u32 %s137, 1
        %s216 = scalar_lea.vmem [#allocation2], %s215
        %p217 = scmp.lt.s32.totalorder %s19, 1
        %s218 = scalar_select %p217, %s19, 1
        %s219 = smul.addr %s218, 16
        %s220 = smul.addr %s219, 4
        %s221 = scalar_lea.vmem %s0, %s220
        %v222 = vld [vmem:[%s1] sm:$0x3]
        %v223 = vld [vmem:[%s2] sm:$0x3]
        %s224 = scalar_lea.vmem %s1, 2
        %v225 = vld [vmem:[%s224] sm:$0x3]
        %v226 = vadd.f32 %v222, %v225
        %s227 = scalar_lea.vmem %s2, 2
        %v228 = vld [vmem:[%s227] sm:$0x3]
        %v229 = vadd.f32 %v223, %v228
        %v230 = vmul.f32 %v226, 0.0078125
        %v231 = vmul.f32 %v229, 0.0078125
        %v232 = vmul.f32 %v230, %v230
        %v233 = vsub.f32 %v231, %v232
        %v234 = vmax.f32 %v233, 0.0
        %v235 = vadd.f32 %v234, 2e-05
        %v236 = vrsqrt.pop %v235
        %v237 = vld [vmem:[%s221] sm:$0xff]
        %v238 = vld [vmem:[%s221 + $0x8] sm:$0xff]
        %v239 = vld [vmem:[%s221 + $0x10] sm:$0xff]
        %v240 = vld [vmem:[%s221 + $0x18] sm:$0xff]
        %v241 = vld [vmem:[%s221 + $0x20] sm:$0xff]
        %v242 = vld [vmem:[%s221 + $0x28] sm:$0xff]
        %v243 = vld [vmem:[%s221 + $0x30] sm:$0xff]
        %v244 = vld [vmem:[%s221 + $0x38] sm:$0xff]
        %v245 = vunpack.c.l.bf16 %v237
        %v246 = vunpack.c.h.bf16 %v237
        %v247 = vunpack.c.l.bf16 %v238
        %v248 = vunpack.c.h.bf16 %v238
        %v249 = vunpack.c.l.bf16 %v239
        %v250 = vunpack.c.h.bf16 %v239
        %v251 = vunpack.c.l.bf16 %v240
        %v252 = vunpack.c.h.bf16 %v240
        %v253 = vunpack.c.l.bf16 %v241
        %v254 = vunpack.c.h.bf16 %v241
        %v255 = vunpack.c.l.bf16 %v242
        %v256 = vunpack.c.h.bf16 %v242
        %v257 = vunpack.c.l.bf16 %v243
        %v258 = vunpack.c.h.bf16 %v243
        %v259 = vunpack.c.l.bf16 %v244
        %v260 = vunpack.c.h.bf16 %v244
        %v262 = vlaneseq
        %v263 = vshrl.u32 %v262, 7
        %v264 = vsub.s32 0, %v263
        %v265 = vrot.slane %v236, %v264
        %v266 = vlaneseq
        %v267 = vshrl.u32 %v266, 7
        %v268 = vsub.s32 1, %v267
        %v269 = vrot.slane %v236, %v268
        %v272 = vmul.f32 %v245, %v265
        %v273 = vmul.f32 %v246, %v269
        %v274 = vmul.f32 %v247, %v265
        %v275 = vmul.f32 %v248, %v269
        %v276 = vmul.f32 %v249, %v265
        %v277 = vmul.f32 %v250, %v269
        %v278 = vmul.f32 %v251, %v265
        %v279 = vmul.f32 %v252, %v269
        %v280 = vmul.f32 %v253, %v265
        %v281 = vmul.f32 %v254, %v269
        %v282 = vmul.f32 %v255, %v265
        %v283 = vmul.f32 %v256, %v269
        %v284 = vmul.f32 %v257, %v265
        %v285 = vmul.f32 %v258, %v269
        %v286 = vmul.f32 %v259, %v265
        %v287 = vmul.f32 %v260, %v269
        %v288 = vsub.f32 0.0, %v230
        %v289 = vmul.f32 %v288, %v236
        %v291 = vlaneseq
        %v292 = vshrl.u32 %v291, 7
        %v293 = vsub.s32 0, %v292
        %v294 = vrot.slane %v289, %v293
        %v295 = vlaneseq
        %v296 = vshrl.u32 %v295, 7
        %v297 = vsub.s32 1, %v296
        %v298 = vrot.slane %v289, %v297
        %v301 = vadd.f32 %v272, %v294
        %v302 = vadd.f32 %v273, %v298
        %v303 = vadd.f32 %v274, %v294
        %v304 = vadd.f32 %v275, %v298
        %v305 = vadd.f32 %v276, %v294
        %v306 = vadd.f32 %v277, %v298
        %v307 = vadd.f32 %v278, %v294
        %v308 = vadd.f32 %v279, %v298
        %v309 = vadd.f32 %v280, %v294
        %v310 = vadd.f32 %v281, %v298
        %v311 = vadd.f32 %v282, %v294
        %v312 = vadd.f32 %v283, %v298
        %v313 = vadd.f32 %v284, %v294
        %v314 = vadd.f32 %v285, %v298
        %v315 = vadd.f32 %v286, %v294
        %v316 = vadd.f32 %v287, %v298
        %v317 = vmax.f32 %v301, 0.0
        %v318 = vmax.f32 %v302, 0.0
        %v319 = vmax.f32 %v303, 0.0
        %v320 = vmax.f32 %v304, 0.0
        %v321 = vmax.f32 %v305, 0.0
        %v322 = vmax.f32 %v306, 0.0
        %v323 = vmax.f32 %v307, 0.0
        %v324 = vmax.f32 %v308, 0.0
        %v325 = vmax.f32 %v309, 0.0
        %v326 = vmax.f32 %v310, 0.0
        %v327 = vmax.f32 %v311, 0.0
        %v328 = vmax.f32 %v312, 0.0
        %v329 = vmax.f32 %v313, 0.0
        %v330 = vmax.f32 %v314, 0.0
        %v331 = vmax.f32 %v315, 0.0
        %v332 = vmax.f32 %v316, 0.0
        %vm349 = vcmask 1046528
        %v350 = vrot.slane %v317, 1
        %v351 = vrot.slane %v319, 1
        %v352 = vsel %vm349, %v350, %v351
        %v353 = vrot.slane %v318, 1
        %v354 = vrot.slane %v320, 1
        %v355 = vsel %vm349, %v353, %v354
        %v356 = vrot.slane %v321, 1
        %v357 = vsel %vm349, %v351, %v356
        %v358 = vrot.slane %v322, 1
        %v359 = vsel %vm349, %v354, %v358
        %v360 = vrot.slane %v323, 1
        %v361 = vsel %vm349, %v356, %v360
        %v362 = vrot.slane %v324, 1
        %v363 = vsel %vm349, %v358, %v362
        %v364 = vrot.slane %v325, 1
        %v365 = vsel %vm349, %v360, %v364
        %v366 = vrot.slane %v326, 1
        %v367 = vsel %vm349, %v362, %v366
        %v368 = vrot.slane %v327, 1
        %v369 = vsel %vm349, %v364, %v368
        %v370 = vrot.slane %v328, 1
        %v371 = vsel %vm349, %v366, %v370
        %v372 = vrot.slane %v329, 1
        %v373 = vsel %vm349, %v368, %v372
        %v374 = vrot.slane %v330, 1
        %v375 = vsel %vm349, %v370, %v374
        %v376 = vrot.slane %v331, 1
        %v377 = vsel %vm349, %v372, %v376
        %v378 = vrot.slane %v332, 1
        %v379 = vsel %vm349, %v374, %v378
        %v396 = vmax.f32 %v317, %v352
        %v397 = vmax.f32 %v318, %v355
        %v398 = vmax.f32 %v319, %v357
        %v399 = vmax.f32 %v320, %v359
        %v400 = vmax.f32 %v321, %v361
        %v401 = vmax.f32 %v322, %v363
        %v402 = vmax.f32 %v323, %v365
        %v403 = vmax.f32 %v324, %v367
        %v404 = vmax.f32 %v325, %v369
        %v405 = vmax.f32 %v326, %v371
        %v406 = vmax.f32 %v327, %v373
        %v407 = vmax.f32 %v328, %v375
        %v408 = vmax.f32 %v329, %v377
        %v409 = vmax.f32 %v330, %v379
        %v410 = vmax.f32 %v331, %v376
        %v411 = vmax.f32 %v332, %v378
        %vm428 = vcmask 1045504
        %v429 = vrot.slane %v396, 2
        %v430 = vrot.slane %v398, 2
        %v431 = vsel %vm428, %v429, %v430
        %v432 = vrot.slane %v397, 2
        %v433 = vrot.slane %v399, 2
        %v434 = vsel %vm428, %v432, %v433
        %v435 = vrot.slane %v400, 2
        %v436 = vsel %vm428, %v430, %v435
        %v437 = vrot.slane %v401, 2
        %v438 = vsel %vm428, %v433, %v437
        %v439 = vrot.slane %v402, 2
        %v440 = vsel %vm428, %v435, %v439
        %v441 = vrot.slane %v403, 2
        %v442 = vsel %vm428, %v437, %v441
        %v443 = vrot.slane %v404, 2
        %v444 = vsel %vm428, %v439, %v443
        %v445 = vrot.slane %v405, 2
        %v446 = vsel %vm428, %v441, %v445
        %v447 = vrot.slane %v406, 2
        %v448 = vsel %vm428, %v443, %v447
        %v449 = vrot.slane %v407, 2
        %v450 = vsel %vm428, %v445, %v449
        %v451 = vrot.slane %v408, 2
        %v452 = vsel %vm428, %v447, %v451
        %v453 = vrot.slane %v409, 2
        %v454 = vsel %vm428, %v449, %v453
        %v455 = vrot.slane %v410, 2
        %v456 = vsel %vm428, %v451, %v455
        %v457 = vrot.slane %v411, 2
        %v458 = vsel %vm428, %v453, %v457
        %v475 = vmax.f32 %v396, %v431
        %v476 = vmax.f32 %v397, %v434
        %v477 = vmax.f32 %v398, %v436
        %v478 = vmax.f32 %v399, %v438
        %v479 = vmax.f32 %v400, %v440
        %v480 = vmax.f32 %v401, %v442
        %v481 = vmax.f32 %v402, %v444
        %v482 = vmax.f32 %v403, %v446
        %v483 = vmax.f32 %v404, %v448
        %v484 = vmax.f32 %v405, %v450
        %v485 = vmax.f32 %v406, %v452
        %v486 = vmax.f32 %v407, %v454
        %v487 = vmax.f32 %v408, %v456
        %v488 = vmax.f32 %v409, %v458
        %v489 = vmax.f32 %v410, %v455
        %v490 = vmax.f32 %v411, %v457
        %v491 = vld [vmem:[%s3] sm:$0x1]
        %vm492 = vcmask 498688
        %v494 = vsel %vm492, %v491, 0
        %vm496 = vcmask 1044480
        %v498 = vsel %vm496, %v489, 0
        %v501 = vsel %vm496, %v490, 0
        %503 = vmatprep.subr.mxu0 %v476
        %504 = vmatpush1.msra.mxu0 %v475
        %505 = vmatprep.subr.mxu0 %v478
        %506 = vmatpush1.msra.mxu0 %v477
        %507 = vmatprep.subr.mxu0 %v480
        %508 = vmatpush1.msra.mxu0 %v479
        %509 = vmatprep.subr.mxu0 %v482
        %510 = vmatpush1.msra.mxu0 %v481
        %511 = vmatprep.subr.mxu0 %v484
        %512 = vmatpush1.msra.mxu0 %v483
        %513 = vmatprep.subr.mxu0 %v486
        %514 = vmatpush1.msra.mxu0 %v485
        %515 = vmatprep.subr.mxu0 %v488
        %516 = vmatpush1.msra.mxu0 %v487
        %517 = vmatprep.subr.mxu0 %v501
        %518 = vmatpush1.msra.mxu0 %v498
        %519 = vmatprep.subr.mxu0 0.0
        %520 = vmatpush1.msra.mxu0 0.0
        %521 = vmatprep.subr.mxu0 0.0
        %522 = vmatpush1.msra.mxu0 0.0
        %523 = vmatprep.subr.mxu0 0.0
        %524 = vmatpush1.msra.mxu0 0.0
        %525 = vmatprep.subr.mxu0 0.0
        %526 = vmatpush1.msra.mxu0 0.0
        %527 = vmatprep.subr.mxu0 0.0
        %528 = vmatpush1.msra.mxu0 0.0
        %529 = vmatprep.subr.mxu0 0.0
        %530 = vmatpush1.msra.mxu0 0.0
        %531 = vmatprep.subr.mxu0 0.0
        %532 = vmatpush1.msra.mxu0 0.0
        %533 = vmatprep.subr.mxu0 0.0
        %534 = vmatpush1.msra.mxu0 0.0
        %535 = vmatprep.subr.mxu0 0.0
        %536 = vmatpush1.msra.mxu0 0.0
        %537 = vmatprep.subr.mxu0 0.0
        %538 = vmatpush1.msra.mxu0 0.0
        %539 = vmatprep.subr.mxu0 0.0
        %540 = vmatpush1.msra.mxu0 0.0
        %541 = vmatprep.subr.mxu0 0.0
        %542 = vmatpush1.msra.mxu0 0.0
        %543 = vmatprep.subr.mxu0 0.0
        %544 = vmatpush1.msra.mxu0 0.0
        %545 = vmatprep.subr.mxu0 0.0
        %546 = vmatpush1.msra.mxu0 0.0
        %547 = vmatprep.subr.mxu0 0.0
        %548 = vmatpush1.msra.mxu0 0.0
        %549 = vmatprep.subr.mxu0 0.0
        %550 = vmatpush1.msra.mxu0 0.0
        %551 = vmatprep.subr.mxu0 0.0
        %552 = vmatpush1.msra.mxu0 0.0
        %553 = vmatprep.subr.mxu0 0.0
        %554 = vmatpush1.msra.mxu0 0.0
        %555 = vmatprep.subr.mxu0 0.0
        %556 = vmatpush1.msra.mxu0 0.0
        %557 = vmatprep.subr.mxu0 0.0
        %558 = vmatpush1.msra.mxu0 0.0
        %559 = vmatprep.subr.mxu0 0.0
        %560 = vmatpush1.msra.mxu0 0.0
        %561 = vmatprep.subr.mxu0 0.0
        %562 = vmatpush1.msra.mxu0 0.0
        %563 = vmatprep.subr.mxu0 0.0
        %564 = vmatpush1.msra.mxu0 0.0
        %565 = vmatprep.subr.mxu0 0.0
        %566 = vmatpush1.msra.mxu0 0.0
        %567 = vmatprep.mubr.f32.mxu0 0.0
        %568 = vmatmul.mubr.f32.gmra.mrb[0].mxu0 %v494
        %v569 = vpop.f32.mrb[0].mxu0
        %v570 = vadd.f32 0.0, %v569
        %v571 = vpop.f32.mrb[0].mxu0
        %v572 = vadd.f32 0.0, %v571
        %573 = vdwg.mxu0
        %v574 = vld [vmem:[%s4] sm:$0xff]
        %v575 = vld [vmem:[%s4 + $0x8] sm:$0xff]
        %v576 = vld [vmem:[%s4 + $0x10] sm:$0xff]
        %v577 = vld [vmem:[%s4 + $0x18] sm:$0xff]
        %v578 = vld [vmem:[%s4 + $0x20] sm:$0xff]
        %v579 = vld [vmem:[%s4 + $0x28] sm:$0xff]
        %v580 = vld [vmem:[%s4 + $0x30] sm:$0xff]
        %v581 = vld [vmem:[%s4 + $0x38] sm:$0xff]
        %v582 = vld [vmem:[%s4 + $0x40] sm:$0xff]
        %v583 = vld [vmem:[%s4 + $0x48] sm:$0xff]
        %v584 = vld [vmem:[%s4 + $0x50] sm:$0xff]
        %v585 = vld [vmem:[%s4 + $0x58] sm:$0xff]
        %v586 = vld [vmem:[%s4 + $0x60] sm:$0xff]
        %v587 = vld [vmem:[%s4 + $0x68] sm:$0xff]
        %v588 = vld [vmem:[%s4 + $0x70] sm:$0xff]
        %v589 = vld [vmem:[%s4 + $0x78] sm:$0xff]
        %v590 = vld [vmem:[%s4 + $0x80] sm:$0xff]
        %v591 = vld [vmem:[%s4 + $0x88] sm:$0xff]
        %v592 = vld [vmem:[%s4 + $0x90] sm:$0xff]
        %v593 = vld [vmem:[%s4 + $0x98] sm:$0xff]
        %v594 = vld [vmem:[%s4 + $0xa0] sm:$0xff]
        %v595 = vld [vmem:[%s4 + $0xa8] sm:$0xff]
        %v596 = vld [vmem:[%s4 + $0xb0] sm:$0xff]
        %v597 = vld [vmem:[%s4 + $0xb8] sm:$0xff]
        %v598 = vld [vmem:[%s4 + $0xc0] sm:$0xff]
        %v599 = vld [vmem:[%s4 + $0xc8] sm:$0xff]
        %v600 = vld [vmem:[%s4 + $0xd0] sm:$0xff]
        %v601 = vld [vmem:[%s4 + $0xd8] sm:$0xff]
        %v602 = vld [vmem:[%s4 + $0xe0] sm:$0xff]
        %v603 = vld [vmem:[%s4 + $0xe8] sm:$0xff]
        %v604 = vld [vmem:[%s4 + $0xf0] sm:$0xff]
        %v605 = vld [vmem:[%s4 + $0xf8] sm:$0xff]
        %606 = vmatprep.subr.mxu0 0.0
        %607 = vmatpush1.msra.mxu0 %v574
        %608 = vmatprep.subr.mxu0 0.0
        %609 = vmatpush1.msra.mxu0 %v575
        %610 = vmatprep.subr.mxu0 0.0
        %611 = vmatpush1.msra.mxu0 %v576
        %612 = vmatprep.subr.mxu0 0.0
        %613 = vmatpush1.msra.mxu0 %v577
        %614 = vmatprep.subr.mxu0 0.0
        %615 = vmatpush1.msra.mxu0 %v578
        %616 = vmatprep.subr.mxu0 0.0
        %617 = vmatpush1.msra.mxu0 %v579
        %618 = vmatprep.subr.mxu0 0.0
        %619 = vmatpush1.msra.mxu0 %v580
        %620 = vmatprep.subr.mxu0 0.0
        %621 = vmatpush1.msra.mxu0 %v581
        %622 = vmatprep.subr.mxu0 0.0
        %623 = vmatpush1.msra.mxu0 %v582
        %624 = vmatprep.subr.mxu0 0.0
        %625 = vmatpush1.msra.mxu0 %v583
        %626 = vmatprep.subr.mxu0 0.0
        %627 = vmatpush1.msra.mxu0 %v584
        %628 = vmatprep.subr.mxu0 0.0
        %629 = vmatpush1.msra.mxu0 %v585
        %630 = vmatprep.subr.mxu0 0.0
        %631 = vmatpush1.msra.mxu0 %v586
        %632 = vmatprep.subr.mxu0 0.0
        %633 = vmatpush1.msra.mxu0 %v587
        %634 = vmatprep.subr.mxu0 0.0
        %635 = vmatpush1.msra.mxu0 %v588
        %636 = vmatprep.subr.mxu0 0.0
        %637 = vmatpush1.msra.mxu0 %v589
        %638 = vmatprep.subr.mxu0 0.0
        %639 = vmatpush1.msra.mxu0 %v590
        %640 = vmatprep.subr.mxu0 0.0
        %641 = vmatpush1.msra.mxu0 %v591
        %642 = vmatprep.subr.mxu0 0.0
        %643 = vmatpush1.msra.mxu0 %v592
        %644 = vmatprep.subr.mxu0 0.0
        %645 = vmatpush1.msra.mxu0 %v593
        %646 = vmatprep.subr.mxu0 0.0
        %647 = vmatpush1.msra.mxu0 %v594
        %648 = vmatprep.subr.mxu0 0.0
        %649 = vmatpush1.msra.mxu0 %v595
        %650 = vmatprep.subr.mxu0 0.0
        %651 = vmatpush1.msra.mxu0 %v596
        %652 = vmatprep.subr.mxu0 0.0
        %653 = vmatpush1.msra.mxu0 %v597
        %654 = vmatprep.subr.mxu0 0.0
        %655 = vmatpush1.msra.mxu0 %v598
        %656 = vmatprep.subr.mxu0 0.0
        %657 = vmatpush1.msra.mxu0 %v599
        %658 = vmatprep.subr.mxu0 0.0
        %659 = vmatpush1.msra.mxu0 %v600
        %660 = vmatprep.subr.mxu0 0.0
        %661 = vmatpush1.msra.mxu0 %v601
        %662 = vmatprep.subr.mxu0 0.0
        %663 = vmatpush1.msra.mxu0 %v602
        %664 = vmatprep.subr.mxu0 0.0
        %665 = vmatpush1.msra.mxu0 %v603
        %666 = vmatprep.subr.mxu0 0.0
        %667 = vmatpush1.msra.mxu0 %v604
        %668 = vmatprep.subr.mxu0 0.0
        %669 = vmatpush1.msra.mxu0 %v605
        %670 = vmatprep.mubr.f32.mxu0 %v572
        %671 = vmatmul.mubr.f32.gmra.mrb[0].mxu0 %v570
        %v672 = vpop.f32.mrb[0].mxu0
        %v673 = vadd.f32 0.0, %v672
        %v674 = vpop.f32.mrb[0].mxu0
        %675 = vdwg.mxu0
        %vm676 = vcmask 73728
        %677 = vst.msk [vmem:[%s216] sm:$0x1] %vm676, %v673
        %s678 = sand.u32 %s137, 1
        %s679 = scalar_lea.sflag [#allocation3], %s678
        %s680 = sand.u32 %s137, 1
        %s681 = scalar_lea.vmem [#allocation2], %s680
        // Predicated region
        $region41: #{forward.5} parent=39 // pred_check
          %p682 = pneg %p147
        $region42: #{forward.5} parent=39 // pred_check_branch
          %684 = sbr.rel (%p682) target = $region44
        $region43: #{forward.5} parent=39 // pred_region
          %s686 = ssub.s32 16, 16
          %687 = vsyncadd %s679, %s686
          %s688 = smul.addr %s19, 16
          %s689 = scalar_lea.hbm %s5, %s688
          %s691 = sshll.u32 %s681, 4
          %s692 = int_to_ptr.vmem [resolvable:$true] %s691
          %694 = dma.vmem_to_hbm [thread:$0]  %s692, 16, %s689, %s679
        $region44: #{forward.5} parent=39 // pred_fallthru
          _
      $region40: #{forward.5} parent=5 // pred_fallthru
        _
      %p695 = scmp.le.s32.totalorder 2, %s14
      // Predicated region
      $region45: #{forward.5} parent=5 // pred_check
        %p696 = pneg %p695
      $region46: #{forward.5} parent=5 // pred_check_branch
        %698 = sbr.rel (%p696) target = $region48
      $region47: #{forward.5} parent=5 // pred_region
        %s699 = ssub.s32 %s14, 2
        // Predicated region
        $region49: #{forward.5} parent=47 // pred_check
          %p700 = pneg %p153
        $region50: #{forward.5} parent=47 // pred_check_branch
          %702 = sbr.rel (%p700) target = $region52
        $region51: #{forward.5} parent=47 // pred_region
          %s703 = sand.u32 %s138, 1
          %s704 = scalar_lea.sflag [#allocation3], %s703
          %s705 = sand.u32 %s138, 1
          %s706 = scalar_lea.vmem [#allocation2], %s705
          %707 = dma.done %s704, 16
        $region52: #{forward.5} parent=47 // pred_fallthru
          _
      $region48: #{forward.5} parent=5 // pred_fallthru
        _
    $region6: #{forward.5} parent=1 // loop_footer
      %s18 = sadd.s32 1, %s14
    $region7: #{forward.5} parent=1 // loop_footer_branch
      %13 = sbr.rel target = $region3
    $region8: #{forward.5} parent=1 // loop_exit
      _
    %708 = vsyncpa [#allocation3], 1
    %s709 = scalar_lea.sflag [#allocation3], 1
    %710 = vsyncpa %s709, 1

// kernel: forward.4
$region0: #{forward.4}
  #allocation0 [shape = 'u32[]', space=smem, size = 0x4, offset = 0x4, fixed_abs, tag = 'smem constant byte address 0x4 - core index']
  #allocation1 [shape = 'u32[144,128]{1,0:T(1,128)}', space=vmem, size = 0x12000, scoped, tag = 'internal scratch']
  %s0 = inlined_call_operand.vmem [shape: bf16[2,4,65,256], index: 0, kind: input, shape index: {}]
  %s1 = inlined_call_operand.vmem [shape: f32[2,1,256], index: 1, kind: input, shape index: {}]
  %s2 = inlined_call_operand.vmem [shape: f32[2,1,256], index: 2, kind: input, shape index: {}]
  %s3 = inlined_call_operand.vmem [shape: f32[768,256], index: 3, kind: input, shape index: {}]
  %s4 = inlined_call_operand.vmem [shape: bf16[2,64,256], index: 4, kind: output, shape index: {0}]
  %s5 = inlined_call_operand.vmem [shape: f32[2,1,256], index: 5, kind: output, shape index: {1}]
  %s6 = inlined_call_operand.vmem [shape: f32[2,1,256], index: 6, kind: output, shape index: {2}]
  %7 = xla_tuple %s4, %s5, %s6
  %s8 = sld [smem:[#allocation0]]
  $region65: #{forward.4} parent=0
    _
  %s10 = ssub.s32 1, %s8
  %s11 = scalar_select 0, %s10, %s8
  loop: start=0, step=1, limit=4
  $region2: #{forward.4} parent=0 // loop_pre_header
    _
  $region3: #{forward.4} parent=0 // loop_header
    %s13 = sphi 0, %s17
    %p14 = scmp.ge.s32.totalorder %s13, 4
    %s23 = sphi 0, %s25
    %s26 = sphi 0, %s23
    %s27 = sphi 0, %s26
    %s43 = sphi 0, %s27
    %s47 = sphi 0, %s47
    %s49 = sphi 0, %s47
    %s50 = sphi 0, %s49
    %s64 = sphi 0, %s50
    %s68 = sphi 0, %s68
    %s70 = sphi 0, %s68
    %s71 = sphi 0, %s70
    %s85 = sphi 0, %s71
    %s89 = sphi 0, %s89
    %s91 = sphi 0, %s89
    %s92 = sphi 0, %s91
    %s106 = sphi 0, %s92
    %s112 = sphi 0, %s114
    %s115 = sphi 0, %s112
    %s116 = sphi 0, %s115
    %s132 = sphi 0, %s116
    %s138 = sphi 0, %s140
    %s141 = sphi 0, %s138
    %s142 = sphi 0, %s141
    %s158 = sphi 0, %s142
    %s164 = sphi 0, %s166
    %s167 = sphi 0, %s164
    %s168 = sphi 0, %s167
    %s184 = sphi 0, %s168
  $region4: #{forward.4} parent=0 // loop_header_branch
    %16 = sbr.rel (%p14) target = $region8
  $region5: #{forward.4} parent=0 // loop_body
    %s18 = ssub.s32 %s13, 1
    %s19 = ssub.s32 %s13, 2
    %s20 = sadd.s32 %s13, 1
    %s21 = ssub.s32 %s13, %s20
    %p22 = scmp.eq.s32.totalorder %s21, 0
    %s24 = sadd.s32 %s23, 1
    %s25 = scalar_select %p22, %s23, %s24
    %p28 = pneg %p22
    %p29 = scmp.eq.s32.totalorder %s13, 1
    %p30 = por %p28, %p29
    %p31 = scmp.ne.s32.totalorder %s23, %s26
    %p32 = scmp.eq.s32.totalorder %s13, 0
    %p33 = por %p31, %p32
    %p34 = scmp.ne.s32.totalorder %s23, %s26
    %p35 = scmp.eq.s32.totalorder %s18, 1
    %p36 = por %p34, %p35
    %p37 = scmp.ne.s32.totalorder %s26, %s27
    %p38 = scmp.eq.s32.totalorder %s18, 0
    %p39 = por %p37, %p38
    %p40 = scmp.ne.s32.totalorder %s26, %s27
    %p41 = scmp.eq.s32.totalorder %s19, 1
    %p42 = por %p40, %p41
    %p44 = scmp.ne.s32.totalorder %s27, %s43
    %p45 = scmp.eq.s32.totalorder %s19, 0
    %p46 = por %p44, %p45
    %s48 = sadd.s32 %s47, 1
    %p51 = scmp.eq.s32.totalorder %s13, 1
    %p52 = scmp.ne.s32.totalorder %s47, %s49
    %p53 = scmp.eq.s32.totalorder %s13, 0
    %p54 = por %p52, %p53
    %p55 = scmp.ne.s32.totalorder %s47, %s49
    %p56 = scmp.eq.s32.totalorder %s18, 1
    %p57 = por %p55, %p56
    %p58 = scmp.ne.s32.totalorder %s49, %s50
    %p59 = scmp.eq.s32.totalorder %s18, 0
    %p60 = por %p58, %p59
    %p61 = scmp.ne.s32.totalorder %s49, %s50
    %p62 = scmp.eq.s32.totalorder %s19, 1
    %p63 = por %p61, %p62
    %p65 = scmp.ne.s32.totalorder %s50, %s64
    %p66 = scmp.eq.s32.totalorder %s19, 0
    %p67 = por %p65, %p66
    %s69 = sadd.s32 %s68, 1
    %p72 = scmp.eq.s32.totalorder %s13, 1
    %p73 = scmp.ne.s32.totalorder %s68, %s70
    %p74 = scmp.eq.s32.totalorder %s13, 0
    %p75 = por %p73, %p74
    %p76 = scmp.ne.s32.totalorder %s68, %s70
    %p77 = scmp.eq.s32.totalorder %s18, 1
    %p78 = por %p76, %p77
    %p79 = scmp.ne.s32.totalorder %s70, %s71
    %p80 = scmp.eq.s32.totalorder %s18, 0
    %p81 = por %p79, %p80
    %p82 = scmp.ne.s32.totalorder %s70, %s71
    %p83 = scmp.eq.s32.totalorder %s19, 1
    %p84 = por %p82, %p83
    %p86 = scmp.ne.s32.totalorder %s71, %s85
    %p87 = scmp.eq.s32.totalorder %s19, 0
    %p88 = por %p86, %p87
    %s90 = sadd.s32 %s89, 1
    %p93 = scmp.eq.s32.totalorder %s13, 1
    %p94 = scmp.ne.s32.totalorder %s89, %s91
    %p95 = scmp.eq.s32.totalorder %s13, 0
    %p96 = por %p94, %p95
    %p97 = scmp.ne.s32.totalorder %s89, %s91
    %p98 = scmp.eq.s32.totalorder %s18, 1
    %p99 = por %p97, %p98
    %p100 = scmp.ne.s32.totalorder %s91, %s92
    %p101 = scmp.eq.s32.totalorder %s18, 0
    %p102 = por %p100, %p101
    %p103 = scmp.ne.s32.totalorder %s91, %s92
    %p104 = scmp.eq.s32.totalorder %s19, 1
    %p105 = por %p103, %p104
    %p107 = scmp.ne.s32.totalorder %s92, %s106
    %p108 = scmp.eq.s32.totalorder %s19, 0
    %p109 = por %p107, %p108
    %s110 = ssub.s32 %s13, %s20
    %p111 = scmp.eq.s32.totalorder %s110, 0
    %s113 = sadd.s32 %s112, 1
    %s114 = scalar_select %p111, %s112, %s113
    %p117 = pneg %p111
    %p118 = scmp.eq.s32.totalorder %s13, 1
    %p119 = por %p117, %p118
    %p120 = scmp.ne.s32.totalorder %s112, %s115
    %p121 = scmp.eq.s32.totalorder %s13, 0
    %p122 = por %p120, %p121
    %p123 = scmp.ne.s32.totalorder %s112, %s115
    %p124 = scmp.eq.s32.totalorder %s18, 1
    %p125 = por %p123, %p124
    %p126 = scmp.ne.s32.totalorder %s115, %s116
    %p127 = scmp.eq.s32.totalorder %s18, 0
    %p128 = por %p126, %p127
    %p129 = scmp.ne.s32.totalorder %s115, %s116
    %p130 = scmp.eq.s32.totalorder %s19, 1
    %p131 = por %p129, %p130
    %p133 = scmp.ne.s32.totalorder %s116, %s132
    %p134 = scmp.eq.s32.totalorder %s19, 0
    %p135 = por %p133, %p134
    %s136 = ssub.s32 %s13, %s20
    %p137 = scmp.eq.s32.totalorder %s136, 0
    %s139 = sadd.s32 %s138, 1
    %s140 = scalar_select %p137, %s138, %s139
    %p143 = pneg %p137
    %p144 = scmp.eq.s32.totalorder %s13, 1
    %p145 = por %p143, %p144
    %p146 = scmp.ne.s32.totalorder %s138, %s141
    %p147 = scmp.eq.s32.totalorder %s13, 0
    %p148 = por %p146, %p147
    %p149 = scmp.ne.s32.totalorder %s138, %s141
    %p150 = scmp.eq.s32.totalorder %s18, 1
    %p151 = por %p149, %p150
    %p152 = scmp.ne.s32.totalorder %s141, %s142
    %p153 = scmp.eq.s32.totalorder %s18, 0
    %p154 = por %p152, %p153
    %p155 = scmp.ne.s32.totalorder %s141, %s142
    %p156 = scmp.eq.s32.totalorder %s19, 1
    %p157 = por %p155, %p156
    %p159 = scmp.ne.s32.totalorder %s142, %s158
    %p160 = scmp.eq.s32.totalorder %s19, 0
    %p161 = por %p159, %p160
    %s162 = ssub.s32 %s13, %s20
    %p163 = scmp.eq.s32.totalorder %s162, 0
    %s165 = sadd.s32 %s164, 1
    %s166 = scalar_select %p163, %s164, %s165
    %p169 = pneg %p163
    %p170 = scmp.eq.s32.totalorder %s13, 1
    %p171 = por %p169, %p170
    %p172 = scmp.ne.s32.totalorder %s164, %s167
    %p173 = scmp.eq.s32.totalorder %s13, 0
    %p174 = por %p172, %p173
    %p175 = scmp.ne.s32.totalorder %s164, %s167
    %p176 = scmp.eq.s32.totalorder %s18, 1
    %p177 = por %p175, %p176
    %p178 = scmp.ne.s32.totalorder %s167, %s168
    %p179 = scmp.eq.s32.totalorder %s18, 0
    %p180 = por %p178, %p179
    %p181 = scmp.ne.s32.totalorder %s167, %s168
    %p182 = scmp.eq.s32.totalorder %s19, 1
    %p183 = por %p181, %p182
    %p185 = scmp.ne.s32.totalorder %s168, %s184
    %p186 = scmp.eq.s32.totalorder %s19, 0
    %p187 = por %p185, %p186
    %p188 = scmp.le.s32.totalorder 1, %s13
    %p189 = scmp.lt.s32.totalorder %s13, 3
    %p190 = pnand %p188, %p189
    %p191 = pneg %p190
    // Predicated region
    $region9: #{forward.4} parent=5 // pred_check
      _
    $region10: #{forward.4} parent=5 // pred_check_branch
      %193 = sbr.rel (%p190) target = $region12
    $region11: #{forward.4} parent=5 // pred_region
      %s194 = ssub.s32 %s13, 1
      // Predicated region
      $region13: #{forward.4} parent=11 // pred_check
        %p195 = pneg %p60
      $region14: #{forward.4} parent=11 // pred_check_branch
        %197 = sbr.rel (%p195) target = $region16
      $region15: #{forward.4} parent=11 // pred_region
        _
      $region16: #{forward.4} parent=11 // pred_fallthru
        _
      // Predicated region
      $region17: #{forward.4} parent=11 // pred_check
        %p198 = pneg %p81
      $region18: #{forward.4} parent=11 // pred_check_branch
        %200 = sbr.rel (%p198) target = $region20
      $region19: #{forward.4} parent=11 // pred_region
        _
      $region20: #{forward.4} parent=11 // pred_fallthru
        _
      // Predicated region
      $region21: #{forward.4} parent=11 // pred_check
        %p201 = pneg %p102
      $region22: #{forward.4} parent=11 // pred_check_branch
        %203 = sbr.rel (%p201) target = $region24
      $region23: #{forward.4} parent=11 // pred_region
        _
      $region24: #{forward.4} parent=11 // pred_fallthru
        _
    $region12: #{forward.4} parent=5 // pred_fallthru
      _
    %p204 = scmp.lt.s32.totalorder %s13, 2
    // Predicated region
    $region25: #{forward.4} parent=5 // pred_check
      %p205 = pneg %p204
    $region26: #{forward.4} parent=5 // pred_check_branch
      %207 = sbr.rel (%p205) target = $region28
    $region27: #{forward.4} parent=5 // pred_region
      // Predicated region
      $region29: #{forward.4} parent=27 // pred_check
        %p208 = pneg %p33
      $region30: #{forward.4} parent=27 // pred_check_branch
        %210 = sbr.rel (%p208) target = $region32
      $region31: #{forward.4} parent=27 // pred_region
        %p211 = scmp.lt.s32.totalorder %s13, 1
        %s212 = scalar_select %p211, %s13, 1
        %s213 = smul.addr %s212, 72
        %s214 = smul.addr %s213, 4
        %s215 = scalar_lea.vmem %s0, %s214
      $region32: #{forward.4} parent=27 // pred_fallthru
        _
    $region28: #{forward.4} parent=5 // pred_fallthru
      _
    %p216 = scmp.le.s32.totalorder 1, %s13
    %p217 = scmp.lt.s32.totalorder %s13, 3
    %p218 = pnand %p216, %p217
    %p219 = pneg %p218
    // Predicated region
    $region33: #{forward.4} parent=5 // pred_check
      _
    $region34: #{forward.4} parent=5 // pred_check_branch
      %221 = sbr.rel (%p218) target = $region36
    $region35: #{forward.4} parent=5 // pred_region
      %s222 = ssub.s32 %s13, 1
      %p223 = scmp.lt.s32.totalorder %s18, 1
      %s224 = scalar_select %p223, %s18, 1
      %s225 = smul.addr %s224, 72
      %s226 = smul.addr %s225, 4
      %s227 = scalar_lea.vmem %s0, %s226
      %p228 = pneg %p39
      %p229 = pneg %p36
      %p230 = pneg %p60
      %p231 = pneg %p57
      %p232 = pneg %p81
      %p233 = pneg %p78
      %p234 = pneg %p102
      %p235 = pneg %p99
      %p236 = pneg %p128
      %p237 = pneg %p125
      %p238 = scmp.lt.s32.totalorder %s18, 1
      %s239 = scalar_select %p238, %s18, 1
      %s240 = smul.addr %s239, 16
      %s241 = smul.addr %s240, 4
      %s242 = scalar_lea.vmem %s4, %s241
      %p243 = pneg %p154
      %p244 = pneg %p151
      %p245 = scmp.lt.s32.totalorder %s18, 1
      %s246 = scalar_select %p245, %s18, 1
      %s247 = smul.addr %s246, 2
      %s248 = scalar_lea.vmem %s5, %s247
      %p249 = pneg %p180
      %p250 = pneg %p177
      %p251 = scmp.lt.s32.totalorder %s18, 1
      %s252 = scalar_select %p251, %s18, 1
      %s253 = smul.addr %s252, 2
      %s254 = scalar_lea.vmem %s6, %s253
      %p255 = scmp.lt.s32.totalorder %s18, 1
      %s256 = scalar_select %p255, %s18, 1
      %s257 = smul.addr %s256, 72
      %s258 = smul.addr %s257, 4
      %s259 = scalar_lea.vmem %s0, %s258
      %p260 = scmp.lt.s32.totalorder %s18, 1
      %s261 = scalar_select %p260, %s18, 1
      %s262 = smul.addr %s261, 16
      %s263 = smul.addr %s262, 4
      %s264 = scalar_lea.vmem %s4, %s263
      %p265 = scmp.lt.s32.totalorder %s18, 1
      %s266 = scalar_select %p265, %s18, 1
      %s267 = smul.addr %s266, 2
      %s268 = scalar_lea.vmem %s5, %s267
      %p269 = scmp.lt.s32.totalorder %s18, 1
      %s270 = scalar_select %p269, %s18, 1
      %s271 = smul.addr %s270, 2
      %s272 = scalar_lea.vmem %s6, %s271
      %v273 = vld [vmem:[%s1] sm:$0x3]
      %v274 = vld [vmem:[%s2] sm:$0x3]
      %s275 = scalar_lea.vmem %s1, 2
      %v276 = vld [vmem:[%s275] sm:$0x3]
      %v277 = vadd.f32 %v273, %v276
      %s278 = scalar_lea.vmem %s2, 2
      %v279 = vld [vmem:[%s278] sm:$0x3]
      %v280 = vadd.f32 %v274, %v279
      %v281 = vmul.f32 %v277, 0.0019455253
      %v282 = vmul.f32 %v280, 0.0019455253
      %v283 = vmul.f32 %v281, %v281
      %v284 = vsub.f32 %v282, %v283
      %v285 = vmax.f32 %v284, 0.0
      %v286 = vadd.f32 %v285, 2e-05
      %v287 = vrsqrt.pop %v286
      %v288 = vsub.f32 0.0, %v281
      %v289 = vmul.f32 %v288, %v287
      %v290 = vld [vmem:[%s259] sm:$0xff]
      %v291 = vld [vmem:[%s259 + $0x8] sm:$0xff]
      %v292 = vld [vmem:[%s259 + $0x10] sm:$0xff]
      %v293 = vld [vmem:[%s259 + $0x18] sm:$0xff]
      %v294 = vld [vmem:[%s259 + $0x20] sm:$0xff]
      %v295 = vld [vmem:[%s259 + $0x28] sm:$0xff]
      %v296 = vld [vmem:[%s259 + $0x30] sm:$0xff]
      %v297 = vld [vmem:[%s259 + $0x38] sm:$0xff]
      %v298 = vld [vmem:[%s259 + $0x48] sm:$0xff]
      %v299 = vld [vmem:[%s259 + $0x50] sm:$0xff]
      %v300 = vld [vmem:[%s259 + $0x58] sm:$0xff]
      %v301 = vld [vmem:[%s259 + $0x60] sm:$0xff]
      %v302 = vld [vmem:[%s259 + $0x68] sm:$0xff]
      %v303 = vld [vmem:[%s259 + $0x70] sm:$0xff]
      %v304 = vld [vmem:[%s259 + $0x78] sm:$0xff]
      %v305 = vld [vmem:[%s259 + $0x80] sm:$0xff]
      %v306 = vld [vmem:[%s259 + $0x90] sm:$0xff]
      %v307 = vld [vmem:[%s259 + $0x98] sm:$0xff]
      %v308 = vld [vmem:[%s259 + $0xa0] sm:$0xff]
      %v309 = vld [vmem:[%s259 + $0xa8] sm:$0xff]
      %v310 = vld [vmem:[%s259 + $0xb0] sm:$0xff]
      %v311 = vld [vmem:[%s259 + $0xb8] sm:$0xff]
      %v312 = vld [vmem:[%s259 + $0xc0] sm:$0xff]
      %v313 = vld [vmem:[%s259 + $0xc8] sm:$0xff]
      %v314 = vld [vmem:[%s259 + $0xd8] sm:$0xff]
      %v315 = vld [vmem:[%s259 + $0xe0] sm:$0xff]
      %v316 = vld [vmem:[%s259 + $0xe8] sm:$0xff]
      %v317 = vld [vmem:[%s259 + $0xf0] sm:$0xff]
      %v318 = vld [vmem:[%s259 + $0xf8] sm:$0xff]
      %v319 = vld [vmem:[%s259 + $0x100] sm:$0xff]
      %v320 = vld [vmem:[%s259 + $0x108] sm:$0xff]
      %v321 = vld [vmem:[%s259 + $0x110] sm:$0xff]
      %v322 = vunpack.c.l.bf16 %v290
      %v323 = vunpack.c.h.bf16 %v290
      %v324 = vunpack.c.l.bf16 %v291
      %v325 = vunpack.c.h.bf16 %v291
      %v326 = vunpack.c.l.bf16 %v292
      %v327 = vunpack.c.h.bf16 %v292
      %v328 = vunpack.c.l.bf16 %v293
      %v329 = vunpack.c.h.bf16 %v293
      %v330 = vunpack.c.l.bf16 %v294
      %v331 = vunpack.c.h.bf16 %v294
      %v332 = vunpack.c.l.bf16 %v295
      %v333 = vunpack.c.h.bf16 %v295
      %v334 = vunpack.c.l.bf16 %v296
      %v335 = vunpack.c.h.bf16 %v296
      %v336 = vunpack.c.l.bf16 %v297
      %v337 = vunpack.c.h.bf16 %v297
      %v338 = vunpack.c.l.bf16 %v298
      %v339 = vunpack.c.h.bf16 %v298
      %v340 = vunpack.c.l.bf16 %v299
      %v341 = vunpack.c.h.bf16 %v299
      %v342 = vunpack.c.l.bf16 %v300
      %v343 = vunpack.c.h.bf16 %v300
      %v344 = vunpack.c.l.bf16 %v301
      %v345 = vunpack.c.h.bf16 %v301
      %v346 = vunpack.c.l.bf16 %v302
      %v347 = vunpack.c.h.bf16 %v302
      %v348 = vunpack.c.l.bf16 %v303
      %v349 = vunpack.c.h.bf16 %v303
      %v350 = vunpack.c.l.bf16 %v304
      %v351 = vunpack.c.h.bf16 %v304
      %v352 = vunpack.c.l.bf16 %v305
      %v353 = vunpack.c.h.bf16 %v305
      %v354 = vunpack.c.l.bf16 %v306
      %v355 = vunpack.c.h.bf16 %v306
      %v356 = vunpack.c.l.bf16 %v307
      %v357 = vunpack.c.h.bf16 %v307
      %v358 = vunpack.c.l.bf16 %v308
      %v359 = vunpack.c.h.bf16 %v308
      %v360 = vunpack.c.l.bf16 %v309
      %v361 = vunpack.c.h.bf16 %v309
      %v362 = vunpack.c.l.bf16 %v310
      %v363 = vunpack.c.h.bf16 %v310
      %v364 = vunpack.c.l.bf16 %v311
      %v365 = vunpack.c.h.bf16 %v311
      %v366 = vunpack.c.l.bf16 %v312
      %v367 = vunpack.c.h.bf16 %v312
      %v368 = vunpack.c.l.bf16 %v313
      %v369 = vunpack.c.h.bf16 %v313
      %v370 = vunpack.c.l.bf16 %v314
      %v371 = vunpack.c.h.bf16 %v314
      %v372 = vunpack.c.l.bf16 %v315
      %v373 = vunpack.c.h.bf16 %v315
      %v374 = vunpack.c.l.bf16 %v316
      %v375 = vunpack.c.h.bf16 %v316
      %v376 = vunpack.c.l.bf16 %v317
      %v377 = vunpack.c.h.bf16 %v317
      %v378 = vunpack.c.l.bf16 %v318
      %v379 = vunpack.c.h.bf16 %v318
      %v380 = vunpack.c.l.bf16 %v319
      %v381 = vunpack.c.h.bf16 %v319
      %v382 = vunpack.c.l.bf16 %v320
      %v383 = vunpack.c.h.bf16 %v320
      %v384 = vunpack.c.l.bf16 %v321
      %v385 = vunpack.c.h.bf16 %v321
      %v387 = vlaneseq
      %v388 = vshrl.u32 %v387, 7
      %v389 = vsub.s32 0, %v388
      %v390 = vrot.slane %v287, %v389
      %v391 = vlaneseq
      %v392 = vshrl.u32 %v391, 7
      %v393 = vsub.s32 1, %v392
      %v394 = vrot.slane %v287, %v393
      %v397 = vmul.f32 %v322, %v390
      %v398 = vmul.f32 %v323, %v394
      %v399 = vmul.f32 %v324, %v390
      %v400 = vmul.f32 %v325, %v394
      %v401 = vmul.f32 %v326, %v390
      %v402 = vmul.f32 %v327, %v394
      %v403 = vmul.f32 %v328, %v390
      %v404 = vmul.f32 %v329, %v394
      %v405 = vmul.f32 %v330, %v390
      %v406 = vmul.f32 %v331, %v394
      %v407 = vmul.f32 %v332, %v390
      %v408 = vmul.f32 %v333, %v394
      %v409 = vmul.f32 %v334, %v390
      %v410 = vmul.f32 %v335, %v394
      %v411 = vmul.f32 %v336, %v390
      %v412 = vmul.f32 %v337, %v394
      %v413 = vmul.f32 %v338, %v390
      %v414 = vmul.f32 %v339, %v394
      %v415 = vmul.f32 %v340, %v390
      %v416 = vmul.f32 %v341, %v394
      %v417 = vmul.f32 %v342, %v390
      %v418 = vmul.f32 %v343, %v394
      %v419 = vmul.f32 %v344, %v390
      %v420 = vmul.f32 %v345, %v394
      %v421 = vmul.f32 %v346, %v390
      %v422 = vmul.f32 %v347, %v394
      %v423 = vmul.f32 %v348, %v390
      %v424 = vmul.f32 %v349, %v394
      %v425 = vmul.f32 %v350, %v390
      %v426 = vmul.f32 %v351, %v394
      %v427 = vmul.f32 %v352, %v390
      %v428 = vmul.f32 %v353, %v394
      %v429 = vmul.f32 %v354, %v390
      %v430 = vmul.f32 %v355, %v394
      %v431 = vmul.f32 %v356, %v390
      %v432 = vmul.f32 %v357, %v394
      %v433 = vmul.f32 %v358, %v390
      %v434 = vmul.f32 %v359, %v394
      %v435 = vmul.f32 %v360, %v390
      %v436 = vmul.f32 %v361, %v394
      %v437 = vmul.f32 %v362, %v390
      %v438 = vmul.f32 %v363, %v394
      %v439 = vmul.f32 %v364, %v390
      %v440 = vmul.f32 %v365, %v394
      %v441 = vmul.f32 %v366, %v390
      %v442 = vmul.f32 %v367, %v394
      %v443 = vmul.f32 %v368, %v390
      %v444 = vmul.f32 %v369, %v394
      %v445 = vmul.f32 %v370, %v390
      %v446 = vmul.f32 %v371, %v394
      %v447 = vmul.f32 %v372, %v390
      %v448 = vmul.f32 %v373, %v394
      %v449 = vmul.f32 %v374, %v390
      %v450 = vmul.f32 %v375, %v394
      %v451 = vmul.f32 %v376, %v390
      %v452 = vmul.f32 %v377, %v394
      %v453 = vmul.f32 %v378, %v390
      %v454 = vmul.f32 %v379, %v394
      %v455 = vmul.f32 %v380, %v390
      %v456 = vmul.f32 %v381, %v394
      %v457 = vmul.f32 %v382, %v390
      %v458 = vmul.f32 %v383, %v394
      %v459 = vmul.f32 %v384, %v390
      %v460 = vmul.f32 %v385, %v394
      %v462 = vlaneseq
      %v463 = vshrl.u32 %v462, 7
      %v464 = vsub.s32 0, %v463
      %v465 = vrot.slane %v289, %v464
      %v466 = vlaneseq
      %v467 = vshrl.u32 %v466, 7
      %v468 = vsub.s32 1, %v467
      %v469 = vrot.slane %v289, %v468
      %v472 = vadd.f32 %v397, %v465
      %v473 = vadd.f32 %v398, %v469
      %v474 = vadd.f32 %v399, %v465
      %v475 = vadd.f32 %v400, %v469
      %v476 = vadd.f32 %v401, %v465
      %v477 = vadd.f32 %v402, %v469
      %v478 = vadd.f32 %v403, %v465
      %v479 = vadd.f32 %v404, %v469
      %v480 = vadd.f32 %v405, %v465
      %v481 = vadd.f32 %v406, %v469
      %v482 = vadd.f32 %v407, %v465
      %v483 = vadd.f32 %v408, %v469
      %v484 = vadd.f32 %v409, %v465
      %v485 = vadd.f32 %v410, %v469
      %v486 = vadd.f32 %v411, %v465
      %v487 = vadd.f32 %v412, %v469
      %v488 = vadd.f32 %v413, %v465
      %v489 = vadd.f32 %v414, %v469
      %v490 = vadd.f32 %v415, %v465
      %v491 = vadd.f32 %v416, %v469
      %v492 = vadd.f32 %v417, %v465
      %v493 = vadd.f32 %v418, %v469
      %v494 = vadd.f32 %v419, %v465
      %v495 = vadd.f32 %v420, %v469
      %v496 = vadd.f32 %v421, %v465
      %v497 = vadd.f32 %v422, %v469
      %v498 = vadd.f32 %v423, %v465
      %v499 = vadd.f32 %v424, %v469
      %v500 = vadd.f32 %v425, %v465
      %v501 = vadd.f32 %v426, %v469
      %v502 = vadd.f32 %v427, %v465
      %v503 = vadd.f32 %v428, %v469
      %v504 = vadd.f32 %v429, %v465
      %v505 = vadd.f32 %v430, %v469
      %v506 = vadd.f32 %v431, %v465
      %v507 = vadd.f32 %v432, %v469
      %v508 = vadd.f32 %v433, %v465
      %v509 = vadd.f32 %v434, %v469
      %v510 = vadd.f32 %v435, %v465
      %v511 = vadd.f32 %v436, %v469
      %v512 = vadd.f32 %v437, %v465
      %v513 = vadd.f32 %v438, %v469
      %v514 = vadd.f32 %v439, %v465
      %v515 = vadd.f32 %v440, %v469
      %v516 = vadd.f32 %v441, %v465
      %v517 = vadd.f32 %v442, %v469
      %v518 = vadd.f32 %v443, %v465
      %v519 = vadd.f32 %v444, %v469
      %v520 = vadd.f32 %v445, %v465
      %v521 = vadd.f32 %v446, %v469
      %v522 = vadd.f32 %v447, %v465
      %v523 = vadd.f32 %v448, %v469
      %v524 = vadd.f32 %v449, %v465
      %v525 = vadd.f32 %v450, %v469
      %v526 = vadd.f32 %v451, %v465
      %v527 = vadd.f32 %v452, %v469
      %v528 = vadd.f32 %v453, %v465
      %v529 = vadd.f32 %v454, %v469
      %v530 = vadd.f32 %v455, %v465
      %v531 = vadd.f32 %v456, %v469
      %v532 = vadd.f32 %v457, %v465
      %v533 = vadd.f32 %v458, %v469
      %v534 = vadd.f32 %v459, %v465
      %v535 = vadd.f32 %v460, %v469
      %v536 = vmax.f32 %v472, 0.0
      %v537 = vmax.f32 %v473, 0.0
      %v538 = vmax.f32 %v474, 0.0
      %v539 = vmax.f32 %v475, 0.0
      %v540 = vmax.f32 %v476, 0.0
      %v541 = vmax.f32 %v477, 0.0
      %v542 = vmax.f32 %v478, 0.0
      %v543 = vmax.f32 %v479, 0.0
      %v544 = vmax.f32 %v480, 0.0
      %v545 = vmax.f32 %v481, 0.0
      %v546 = vmax.f32 %v482, 0.0
      %v547 = vmax.f32 %v483, 0.0
      %v548 = vmax.f32 %v484, 0.0
      %v549 = vmax.f32 %v485, 0.0
      %v550 = vmax.f32 %v486, 0.0
      %v551 = vmax.f32 %v487, 0.0
      %v552 = vmax.f32 %v488, 0.0
      %v553 = vmax.f32 %v489, 0.0
      %v554 = vmax.f32 %v490, 0.0
      %v555 = vmax.f32 %v491, 0.0
      %v556 = vmax.f32 %v492, 0.0
      %v557 = vmax.f32 %v493, 0.0
      %v558 = vmax.f32 %v494, 0.0
      %v559 = vmax.f32 %v495, 0.0
      %v560 = vmax.f32 %v496, 0.0
      %v561 = vmax.f32 %v497, 0.0
      %v562 = vmax.f32 %v498, 0.0
      %v563 = vmax.f32 %v499, 0.0
      %v564 = vmax.f32 %v500, 0.0
      %v565 = vmax.f32 %v501, 0.0
      %v566 = vmax.f32 %v502, 0.0
      %v567 = vmax.f32 %v503, 0.0
      %v568 = vmax.f32 %v504, 0.0
      %v569 = vmax.f32 %v505, 0.0
      %v570 = vmax.f32 %v506, 0.0
      %v571 = vmax.f32 %v507, 0.0
      %v572 = vmax.f32 %v508, 0.0
      %v573 = vmax.f32 %v509, 0.0
      %v574 = vmax.f32 %v510, 0.0
      %v575 = vmax.f32 %v511, 0.0
      %v576 = vmax.f32 %v512, 0.0
      %v577 = vmax.f32 %v513, 0.0
      %v578 = vmax.f32 %v514, 0.0
      %v579 = vmax.f32 %v515, 0.0
      %v580 = vmax.f32 %v516, 0.0
      %v581 = vmax.f32 %v517, 0.0
      %v582 = vmax.f32 %v518, 0.0
      %v583 = vmax.f32 %v519, 0.0
      %v584 = vmax.f32 %v520, 0.0
      %v585 = vmax.f32 %v521, 0.0
      %v586 = vmax.f32 %v522, 0.0
      %v587 = vmax.f32 %v523, 0.0
      %v588 = vmax.f32 %v524, 0.0
      %v589 = vmax.f32 %v525, 0.0
      %v590 = vmax.f32 %v526, 0.0
      %v591 = vmax.f32 %v527, 0.0
      %v592 = vmax.f32 %v528, 0.0
      %v593 = vmax.f32 %v529, 0.0
      %v594 = vmax.f32 %v530, 0.0
      %v595 = vmax.f32 %v531, 0.0
      %v596 = vmax.f32 %v532, 0.0
      %v597 = vmax.f32 %v533, 0.0
      %v598 = vmax.f32 %v534, 0.0
      %v599 = vmax.f32 %v535, 0.0
      %v600 = vmax.f32 %v536, %v552
      %v601 = vmax.f32 %v537, %v553
      %v602 = vmax.f32 %v538, %v554
      %v603 = vmax.f32 %v539, %v555
      %v604 = vmax.f32 %v540, %v556
      %v605 = vmax.f32 %v541, %v557
      %v606 = vmax.f32 %v542, %v558
      %v607 = vmax.f32 %v543, %v559
      %v608 = vmax.f32 %v544, %v560
      %v609 = vmax.f32 %v545, %v561
      %v610 = vmax.f32 %v546, %v562
      %v611 = vmax.f32 %v547, %v563
      %v612 = vmax.f32 %v548, %v564
      %v613 = vmax.f32 %v549, %v565
      %v614 = vmax.f32 %v550, %v566
      %v615 = vmax.f32 %v551, %v567
      %v616 = vmax.f32 %v568, %v584
      %v617 = vmax.f32 %v569, %v585
      %v618 = vmax.f32 %v570, %v586
      %v619 = vmax.f32 %v571, %v587
      %v620 = vmax.f32 %v572, %v588
      %v621 = vmax.f32 %v573, %v589
      %v622 = vmax.f32 %v574, %v590
      %v623 = vmax.f32 %v575, %v591
      %v624 = vmax.f32 %v576, %v592
      %v625 = vmax.f32 %v577, %v593
      %v626 = vmax.f32 %v578, %v594
      %v627 = vmax.f32 %v579, %v595
      %v628 = vmax.f32 %v580, %v596
      %v629 = vmax.f32 %v581, %v597
      %v630 = vmax.f32 %v582, %v598
      %v631 = vmax.f32 %v583, %v599
      %v632 = vmax.f32 %v600, %v616
      %v633 = vmax.f32 %v601, %v617
      %v634 = vmax.f32 %v602, %v618
      %v635 = vmax.f32 %v603, %v619
      %v636 = vmax.f32 %v604, %v620
      %v637 = vmax.f32 %v605, %v621
      %v638 = vmax.f32 %v606, %v622
      %v639 = vmax.f32 %v607, %v623
      %v640 = vmax.f32 %v608, %v624
      %v641 = vmax.f32 %v609, %v625
      %v642 = vmax.f32 %v610, %v626
      %v643 = vmax.f32 %v611, %v627
      %v644 = vmax.f32 %v612, %v628
      %v645 = vmax.f32 %v613, %v629
      %v646 = vmax.f32 %v614, %v630
      %v647 = vmax.f32 %v615, %v631
      %vm664 = vcmask 1040384
      %v665 = vrot.slane %v632, 7
      %v666 = vrot.slane %v633, 7
      %v667 = vrot.slane %v634, 7
      %v668 = vsel %vm664, %v665, %v667
      %v669 = vrot.slane %v635, 7
      %v670 = vsel %vm664, %v666, %v669
      %v671 = vrot.slane %v636, 7
      %v672 = vsel %vm664, %v667, %v671
      %v673 = vrot.slane %v637, 7
      %v674 = vsel %vm664, %v669, %v673
      %v675 = vrot.slane %v638, 7
      %v676 = vsel %vm664, %v671, %v675
      %v677 = vrot.slane %v639, 7
      %v678 = vsel %vm664, %v673, %v677
      %v679 = vrot.slane %v640, 7
      %v680 = vsel %vm664, %v675, %v679
      %v681 = vrot.slane %v641, 7
      %v682 = vsel %vm664, %v677, %v681
      %v683 = vrot.slane %v642, 7
      %v684 = vsel %vm664, %v679, %v683
      %v685 = vrot.slane %v643, 7
      %v686 = vsel %vm664, %v681, %v685
      %v687 = vrot.slane %v644, 7
      %v688 = vsel %vm664, %v683, %v687
      %v689 = vrot.slane %v645, 7
      %v690 = vsel %vm664, %v685, %v689
      %v691 = vrot.slane %v646, 7
      %v692 = vsel %vm664, %v687, %v691
      %v693 = vrot.slane %v647, 7
      %v694 = vsel %vm664, %v689, %v693
      %v711 = vsel %vm664, 0.0, %v665
      %v712 = vsel %vm664, 0.0, %v666
      %vm713 = vcmask 1046528
      %v714 = vrot.slane %v632, 1
      %v715 = vrot.slane %v634, 1
      %v716 = vsel %vm713, %v714, %v715
      %v717 = vrot.slane %v633, 1
      %v718 = vrot.slane %v635, 1
      %v719 = vsel %vm713, %v717, %v718
      %v720 = vrot.slane %v636, 1
      %v721 = vsel %vm713, %v715, %v720
      %v722 = vrot.slane %v637, 1
      %v723 = vsel %vm713, %v718, %v722
      %v724 = vrot.slane %v638, 1
      %v725 = vsel %vm713, %v720, %v724
      %v726 = vrot.slane %v639, 1
      %v727 = vsel %vm713, %v722, %v726
      %v728 = vrot.slane %v640, 1
      %v729 = vsel %vm713, %v724, %v728
      %v730 = vrot.slane %v641, 1
      %v731 = vsel %vm713, %v726, %v730
      %v732 = vrot.slane %v642, 1
      %v733 = vsel %vm713, %v728, %v732
      %v734 = vrot.slane %v643, 1
      %v735 = vsel %vm713, %v730, %v734
      %v736 = vrot.slane %v644, 1
      %v737 = vsel %vm713, %v732, %v736
      %v738 = vrot.slane %v645, 1
      %v739 = vsel %vm713, %v734, %v738
      %v740 = vrot.slane %v646, 1
      %v741 = vsel %vm713, %v736, %v740
      %v742 = vrot.slane %v647, 1
      %v743 = vsel %vm713, %v738, %v742
      %v760 = vsel %vm713, %v740, 0.0
      %v761 = vsel %vm713, %v742, 0.0
      %v762 = vld [vmem:[%s3] sm:$0xff]
      %v763 = vld [vmem:[%s3 + $0x8] sm:$0xff]
      %v764 = vld [vmem:[%s3 + $0x10] sm:$0xff]
      %v765 = vld [vmem:[%s3 + $0x18] sm:$0xff]
      %v766 = vld [vmem:[%s3 + $0x20] sm:$0xff]
      %v767 = vld [vmem:[%s3 + $0x28] sm:$0xff]
      %v768 = vld [vmem:[%s3 + $0x30] sm:$0xff]
      %v769 = vld [vmem:[%s3 + $0x38] sm:$0xff]
      %v770 = vld [vmem:[%s3 + $0x40] sm:$0xff]
      %v771 = vld [vmem:[%s3 + $0x48] sm:$0xff]
      %v772 = vld [vmem:[%s3 + $0x50] sm:$0xff]
      %v773 = vld [vmem:[%s3 + $0x58] sm:$0xff]
      %v774 = vld [vmem:[%s3 + $0x60] sm:$0xff]
      %v775 = vld [vmem:[%s3 + $0x68] sm:$0xff]
      %v776 = vld [vmem:[%s3 + $0x70] sm:$0xff]
      %v777 = vld [vmem:[%s3 + $0x78] sm:$0xff]
      %v778 = vld [vmem:[%s3 + $0x80] sm:$0xff]
      %v779 = vld [vmem:[%s3 + $0x88] sm:$0xff]
      %v780 = vld [vmem:[%s3 + $0x90] sm:$0xff]
      %v781 = vld [vmem:[%s3 + $0x98] sm:$0xff]
      %v782 = vld [vmem:[%s3 + $0xa0] sm:$0xff]
      %v783 = vld [vmem:[%s3 + $0xa8] sm:$0xff]
      %v784 = vld [vmem:[%s3 + $0xb0] sm:$0xff]
      %v785 = vld [vmem:[%s3 + $0xb8] sm:$0xff]
      %v786 = vld [vmem:[%s3 + $0xc0] sm:$0xff]
      %v787 = vld [vmem:[%s3 + $0xc8] sm:$0xff]
      %v788 = vld [vmem:[%s3 + $0xd0] sm:$0xff]
      %v789 = vld [vmem:[%s3 + $0xd8] sm:$0xff]
      %v790 = vld [vmem:[%s3 + $0xe0] sm:$0xff]
      %v791 = vld [vmem:[%s3 + $0xe8] sm:$0xff]
      %v792 = vld [vmem:[%s3 + $0xf0] sm:$0xff]
      %v793 = vld [vmem:[%s3 + $0xf8] sm:$0xff]
      %v794 = vld [vmem:[%s3 + $0x100] sm:$0xff]
      %v795 = vld [vmem:[%s3 + $0x108] sm:$0xff]
      %v796 = vld [vmem:[%s3 + $0x110] sm:$0xff]
      %v797 = vld [vmem:[%s3 + $0x118] sm:$0xff]
      %v798 = vld [vmem:[%s3 + $0x120] sm:$0xff]
      %v799 = vld [vmem:[%s3 + $0x128] sm:$0xff]
      %v800 = vld [vmem:[%s3 + $0x130] sm:$0xff]
      %v801 = vld [vmem:[%s3 + $0x138] sm:$0xff]
      %v802 = vld [vmem:[%s3 + $0x140] sm:$0xff]
      %v803 = vld [vmem:[%s3 + $0x148] sm:$0xff]
      %v804 = vld [vmem:[%s3 + $0x150] sm:$0xff]
      %v805 = vld [vmem:[%s3 + $0x158] sm:$0xff]
      %v806 = vld [vmem:[%s3 + $0x160] sm:$0xff]
      %v807 = vld [vmem:[%s3 + $0x168] sm:$0xff]
      %v808 = vld [vmem:[%s3 + $0x170] sm:$0xff]
      %v809 = vld [vmem:[%s3 + $0x178] sm:$0xff]
      %v810 = vld [vmem:[%s3 + $0x180] sm:$0xff]
      %v811 = vld [vmem:[%s3 + $0x188] sm:$0xff]
      %v812 = vld [vmem:[%s3 + $0x190] sm:$0xff]
      %v813 = vld [vmem:[%s3 + $0x198] sm:$0xff]
      %v814 = vld [vmem:[%s3 + $0x1a0] sm:$0xff]
      %v815 = vld [vmem:[%s3 + $0x1a8] sm:$0xff]
      %v816 = vld [vmem:[%s3 + $0x1b0] sm:$0xff]
      %v817 = vld [vmem:[%s3 + $0x1b8] sm:$0xff]
      %v818 = vld [vmem:[%s3 + $0x1c0] sm:$0xff]
      %v819 = vld [vmem:[%s3 + $0x1c8] sm:$0xff]
      %v820 = vld [vmem:[%s3 + $0x1d0] sm:$0xff]
      %v821 = vld [vmem:[%s3 + $0x1d8] sm:$0xff]
      %v822 = vld [vmem:[%s3 + $0x1e0] sm:$0xff]
      %v823 = vld [vmem:[%s3 + $0x1e8] sm:$0xff]
      %v824 = vld [vmem:[%s3 + $0x1f0] sm:$0xff]
      %v825 = vld [vmem:[%s3 + $0x1f8] sm:$0xff]
      %v826 = vld [vmem:[%s3 + $0x200] sm:$0xff]
      %v827 = vld [vmem:[%s3 + $0x208] sm:$0xff]
      %v828 = vld [vmem:[%s3 + $0x210] sm:$0xff]
      %v829 = vld [vmem:[%s3 + $0x218] sm:$0xff]
      %v830 = vld [vmem:[%s3 + $0x220] sm:$0xff]
      %v831 = vld [vmem:[%s3 + $0x228] sm:$0xff]
      %v832 = vld [vmem:[%s3 + $0x230] sm:$0xff]
      %v833 = vld [vmem:[%s3 + $0x238] sm:$0xff]
      %v834 = vld [vmem:[%s3 + $0x240] sm:$0xff]
      %v835 = vld [vmem:[%s3 + $0x248] sm:$0xff]
      %v836 = vld [vmem:[%s3 + $0x250] sm:$0xff]
      %v837 = vld [vmem:[%s3 + $0x258] sm:$0xff]
      %v838 = vld [vmem:[%s3 + $0x260] sm:$0xff]
      %v839 = vld [vmem:[%s3 + $0x268] sm:$0xff]
      %v840 = vld [vmem:[%s3 + $0x270] sm:$0xff]
      %v841 = vld [vmem:[%s3 + $0x278] sm:$0xff]
      %v842 = vld [vmem:[%s3 + $0x280] sm:$0xff]
      %v843 = vld [vmem:[%s3 + $0x288] sm:$0xff]
      %v844 = vld [vmem:[%s3 + $0x290] sm:$0xff]
      %v845 = vld [vmem:[%s3 + $0x298] sm:$0xff]
      %v846 = vld [vmem:[%s3 + $0x2a0] sm:$0xff]
      %v847 = vld [vmem:[%s3 + $0x2a8] sm:$0xff]
      %v848 = vld [vmem:[%s3 + $0x2b0] sm:$0xff]
      %v849 = vld [vmem:[%s3 + $0x2b8] sm:$0xff]
      %v850 = vld [vmem:[%s3 + $0x2c0] sm:$0xff]
      %v851 = vld [vmem:[%s3 + $0x2c8] sm:$0xff]
      %v852 = vld [vmem:[%s3 + $0x2d0] sm:$0xff]
      %v853 = vld [vmem:[%s3 + $0x2d8] sm:$0xff]
      %v854 = vld [vmem:[%s3 + $0x2e0] sm:$0xff]
      %v855 = vld [vmem:[%s3 + $0x2e8] sm:$0xff]
      %v856 = vld [vmem:[%s3 + $0x2f0] sm:$0xff]
      %v857 = vld [vmem:[%s3 + $0x2f8] sm:$0xff]
      %v858 = vld [vmem:[%s3 + $0x300] sm:$0xff]
      %v859 = vld [vmem:[%s3 + $0x308] sm:$0xff]
      %v860 = vld [vmem:[%s3 + $0x310] sm:$0xff]
      %v861 = vld [vmem:[%s3 + $0x318] sm:$0xff]
      %v862 = vld [vmem:[%s3 + $0x320] sm:$0xff]
      %v863 = vld [vmem:[%s3 + $0x328] sm:$0xff]
      %v864 = vld [vmem:[%s3 + $0x330] sm:$0xff]
      %v865 = vld [vmem:[%s3 + $0x338] sm:$0xff]
      %v866 = vld [vmem:[%s3 + $0x340] sm:$0xff]
      %v867 = vld [vmem:[%s3 + $0x348] sm:$0xff]
      %v868 = vld [vmem:[%s3 + $0x350] sm:$0xff]
      %v869 = vld [vmem:[%s3 + $0x358] sm:$0xff]
      %v870 = vld [vmem:[%s3 + $0x360] sm:$0xff]
      %v871 = vld [vmem:[%s3 + $0x368] sm:$0xff]
      %v872 = vld [vmem:[%s3 + $0x370] sm:$0xff]
      %v873 = vld [vmem:[%s3 + $0x378] sm:$0xff]
      %v874 = vld [vmem:[%s3 + $0x380] sm:$0xff]
      %v875 = vld [vmem:[%s3 + $0x388] sm:$0xff]
      %v876 = vld [vmem:[%s3 + $0x390] sm:$0xff]
      %v877 = vld [vmem:[%s3 + $0x398] sm:$0xff]
      %v878 = vld [vmem:[%s3 + $0x3a0] sm:$0xff]
      %v879 = vld [vmem:[%s3 + $0x3a8] sm:$0xff]
      %v880 = vld [vmem:[%s3 + $0x3b0] sm:$0xff]
      %v881 = vld [vmem:[%s3 + $0x3b8] sm:$0xff]
      %v882 = vld [vmem:[%s3 + $0x3c0] sm:$0xff]
      %v883 = vld [vmem:[%s3 + $0x3c8] sm:$0xff]
      %v884 = vld [vmem:[%s3 + $0x3d0] sm:$0xff]
      %v885 = vld [vmem:[%s3 + $0x3d8] sm:$0xff]
      %v886 = vld [vmem:[%s3 + $0x3e0] sm:$0xff]
      %v887 = vld [vmem:[%s3 + $0x3e8] sm:$0xff]
      %v888 = vld [vmem:[%s3 + $0x3f0] sm:$0xff]
      %v889 = vld [vmem:[%s3 + $0x3f8] sm:$0xff]
      %v890 = vld [vmem:[%s3 + $0x400] sm:$0xff]
      %v891 = vld [vmem:[%s3 + $0x408] sm:$0xff]
      %v892 = vld [vmem:[%s3 + $0x410] sm:$0xff]
      %v893 = vld [vmem:[%s3 + $0x418] sm:$0xff]
      %v894 = vld [vmem:[%s3 + $0x420] sm:$0xff]
      %v895 = vld [vmem:[%s3 + $0x428] sm:$0xff]
      %v896 = vld [vmem:[%s3 + $0x430] sm:$0xff]
      %v897 = vld [vmem:[%s3 + $0x438] sm:$0xff]
      %v898 = vld [vmem:[%s3 + $0x440] sm:$0xff]
      %v899 = vld [vmem:[%s3 + $0x448] sm:$0xff]
      %v900 = vld [vmem:[%s3 + $0x450] sm:$0xff]
      %v901 = vld [vmem:[%s3 + $0x458] sm:$0xff]
      %v902 = vld [vmem:[%s3 + $0x460] sm:$0xff]
      %v903 = vld [vmem:[%s3 + $0x468] sm:$0xff]
      %v904 = vld [vmem:[%s3 + $0x470] sm:$0xff]
      %v905 = vld [vmem:[%s3 + $0x478] sm:$0xff]
      %v906 = vld [vmem:[%s3 + $0x480] sm:$0xff]
      %v907 = vld [vmem:[%s3 + $0x488] sm:$0xff]
      %v908 = vld [vmem:[%s3 + $0x490] sm:$0xff]
      %v909 = vld [vmem:[%s3 + $0x498] sm:$0xff]
      %v910 = vld [vmem:[%s3 + $0x4a0] sm:$0xff]
      %v911 = vld [vmem:[%s3 + $0x4a8] sm:$0xff]
      %v912 = vld [vmem:[%s3 + $0x4b0] sm:$0xff]
      %v913 = vld [vmem:[%s3 + $0x4b8] sm:$0xff]
      %v914 = vld [vmem:[%s3 + $0x4c0] sm:$0xff]
      %v915 = vld [vmem:[%s3 + $0x4c8] sm:$0xff]
      %v916 = vld [vmem:[%s3 + $0x4d0] sm:$0xff]
      %v917 = vld [vmem:[%s3 + $0x4d8] sm:$0xff]
      %v918 = vld [vmem:[%s3 + $0x4e0] sm:$0xff]
      %v919 = vld [vmem:[%s3 + $0x4e8] sm:$0xff]
      %v920 = vld [vmem:[%s3 + $0x4f0] sm:$0xff]
      %v921 = vld [vmem:[%s3 + $0x4f8] sm:$0xff]
      %v922 = vld [vmem:[%s3 + $0x500] sm:$0xff]
      %v923 = vld [vmem:[%s3 + $0x508] sm:$0xff]
      %v924 = vld [vmem:[%s3 + $0x510] sm:$0xff]
      %v925 = vld [vmem:[%s3 + $0x518] sm:$0xff]
      %v926 = vld [vmem:[%s3 + $0x520] sm:$0xff]
      %v927 = vld [vmem:[%s3 + $0x528] sm:$0xff]
      %v928 = vld [vmem:[%s3 + $0x530] sm:$0xff]
      %v929 = vld [vmem:[%s3 + $0x538] sm:$0xff]
      %v930 = vld [vmem:[%s3 + $0x540] sm:$0xff]
      %v931 = vld [vmem:[%s3 + $0x548] sm:$0xff]
      %v932 = vld [vmem:[%s3 + $0x550] sm:$0xff]
      %v933 = vld [vmem:[%s3 + $0x558] sm:$0xff]
      %v934 = vld [vmem:[%s3 + $0x560] sm:$0xff]
      %v935 = vld [vmem:[%s3 + $0x568] sm:$0xff]
      %v936 = vld [vmem:[%s3 + $0x570] sm:$0xff]
      %v937 = vld [vmem:[%s3 + $0x578] sm:$0xff]
      %v938 = vld [vmem:[%s3 + $0x580] sm:$0xff]
      %v939 = vld [vmem:[%s3 + $0x588] sm:$0xff]
      %v940 = vld [vmem:[%s3 + $0x590] sm:$0xff]
      %v941 = vld [vmem:[%s3 + $0x598] sm:$0xff]
      %v942 = vld [vmem:[%s3 + $0x5a0] sm:$0xff]
      %v943 = vld [vmem:[%s3 + $0x5a8] sm:$0xff]
      %v944 = vld [vmem:[%s3 + $0x5b0] sm:$0xff]
      %v945 = vld [vmem:[%s3 + $0x5b8] sm:$0xff]
      %v946 = vld [vmem:[%s3 + $0x5c0] sm:$0xff]
      %v947 = vld [vmem:[%s3 + $0x5c8] sm:$0xff]
      %v948 = vld [vmem:[%s3 + $0x5d0] sm:$0xff]
      %v949 = vld [vmem:[%s3 + $0x5d8] sm:$0xff]
      %v950 = vld [vmem:[%s3 + $0x5e0] sm:$0xff]
      %v951 = vld [vmem:[%s3 + $0x5e8] sm:$0xff]
      %v952 = vld [vmem:[%s3 + $0x5f0] sm:$0xff]
      %v953 = vld [vmem:[%s3 + $0x5f8] sm:$0xff]
      %954 = vmatprep.subr.mxu0 %v763
      %955 = vmatpush1.msra.mxu0 %v762
      %956 = vmatprep.subr.mxu0 %v765
      %957 = vmatpush1.msra.mxu0 %v764
      %958 = vmatprep.subr.mxu0 %v767
      %959 = vmatpush1.msra.mxu0 %v766
      %960 = vmatprep.subr.mxu0 %v769
      %961 = vmatpush1.msra.mxu0 %v768
      %962 = vmatprep.subr.mxu0 %v771
      %963 = vmatpush1.msra.mxu0 %v770
      %964 = vmatprep.subr.mxu0 %v773
      %965 = vmatpush1.msra.mxu0 %v772
      %966 = vmatprep.subr.mxu0 %v775
      %967 = vmatpush1.msra.mxu0 %v774
      %968 = vmatprep.subr.mxu0 %v777
      %969 = vmatpush1.msra.mxu0 %v776
      %970 = vmatprep.subr.mxu0 %v779
      %971 = vmatpush1.msra.mxu0 %v778
      %972 = vmatprep.subr.mxu0 %v781
      %973 = vmatpush1.msra.mxu0 %v780
      %974 = vmatprep.subr.mxu0 %v783
      %975 = vmatpush1.msra.mxu0 %v782
      %976 = vmatprep.subr.mxu0 %v785
      %977 = vmatpush1.msra.mxu0 %v784
      %978 = vmatprep.subr.mxu0 %v787
      %979 = vmatpush1.msra.mxu0 %v786
      %980 = vmatprep.subr.mxu0 %v789
      %981 = vmatpush1.msra.mxu0 %v788
      %982 = vmatprep.subr.mxu0 %v791
      %983 = vmatpush1.msra.mxu0 %v790
      %984 = vmatprep.subr.mxu0 %v793
      %985 = vmatpush1.msra.mxu0 %v792
      %986 = vmatprep.subr.mxu0 %v795
      %987 = vmatpush1.msra.mxu0 %v794
      %988 = vmatprep.subr.mxu0 %v797
      %989 = vmatpush1.msra.mxu0 %v796
      %990 = vmatprep.subr.mxu0 %v799
      %991 = vmatpush1.msra.mxu0 %v798
      %992 = vmatprep.subr.mxu0 %v801
      %993 = vmatpush1.msra.mxu0 %v800
      %994 = vmatprep.subr.mxu0 %v803
      %995 = vmatpush1.msra.mxu0 %v802
      %996 = vmatprep.subr.mxu0 %v805
      %997 = vmatpush1.msra.mxu0 %v804
      %998 = vmatprep.subr.mxu0 %v807
      %999 = vmatpush1.msra.mxu0 %v806
      %1000 = vmatprep.subr.mxu0 %v809
      %1001 = vmatpush1.msra.mxu0 %v808
      %1002 = vmatprep.subr.mxu0 %v811
      %1003 = vmatpush1.msra.mxu0 %v810
      %1004 = vmatprep.subr.mxu0 %v813
      %1005 = vmatpush1.msra.mxu0 %v812
      %1006 = vmatprep.subr.mxu0 %v815
      %1007 = vmatpush1.msra.mxu0 %v814
      %1008 = vmatprep.subr.mxu0 %v817
      %1009 = vmatpush1.msra.mxu0 %v816
      %1010 = vmatprep.subr.mxu0 %v819
      %1011 = vmatpush1.msra.mxu0 %v818
      %1012 = vmatprep.subr.mxu0 %v821
      %1013 = vmatpush1.msra.mxu0 %v820
      %1014 = vmatprep.subr.mxu0 %v823
      %1015 = vmatpush1.msra.mxu0 %v822
      %1016 = vmatprep.subr.mxu0 %v825
      %1017 = vmatpush1.msra.mxu0 %v824
      %1018 = vmatprep.mubr.f32.mxu0 %v712
      %1019 = vmatmul.mubr.f32.gmra.mrb[0].mxu0 %v711
      %v1020 = vpop.f32.mrb[0].mxu0
      %v1021 = vadd.f32 0.0, %v1020
      %v1022 = vpop.f32.mrb[0].mxu0
      %v1023 = vadd.f32 0.0, %v1022
      %1024 = vmatprep.mubr.f32.mxu0 %v670
      %1025 = vmatmul.mubr.f32.gmra.mrb[0].mxu0 %v668
      %v1026 = vpop.f32.mrb[0].mxu0
      %v1027 = vadd.f32 0.0, %v1026
      %v1028 = vpop.f32.mrb[0].mxu0
      %v1029 = vadd.f32 0.0, %v1028
      %1030 = vmatprep.mubr.f32.mxu0 %v674
      %1031 = vmatmul.mubr.f32.gmra.mrb[0].mxu0 %v672
      %v1032 = vpop.f32.mrb[0].mxu0
      %v1033 = vadd.f32 0.0, %v1032
      %v1034 = vpop.f32.mrb[0].mxu0
      %v1035 = vadd.f32 0.0, %v1034
      %1036 = vmatprep.mubr.f32.mxu0 %v678
      %1037 = vmatmul.mubr.f32.gmra.mrb[0].mxu0 %v676
      %v1038 = vpop.f32.mrb[0].mxu0
      %v1039 = vadd.f32 0.0, %v1038
      %v1040 = vpop.f32.mrb[0].mxu0
      %v1041 = vadd.f32 0.0, %v1040
      %1042 = vmatprep.mubr.f32.mxu0 %v682
      %1043 = vmatmul.mubr.f32.gmra.mrb[0].mxu0 %v680
      %v1044 = vpop.f32.mrb[0].mxu0
      %v1045 = vadd.f32 0.0, %v1044
      %v1046 = vpop.f32.mrb[0].mxu0
      %v1047 = vadd.f32 0.0, %v1046
      %1048 = vmatprep.mubr.f32.mxu0 %v686
      %1049 = vmatmul.mubr.f32.gmra.mrb[0].mxu0 %v684
      %v1050 = vpop.f32.mrb[0].mxu0
      %v1051 = vadd.f32 0.0, %v1050
      %v1052 = vpop.f32.mrb[0].mxu0
      %v1053 = vadd.f32 0.0, %v1052
      %1054 = vmatprep.mubr.f32.mxu0 %v690
      %1055 = vmatmul.mubr.f32.gmra.mrb[0].mxu0 %v688
      %v1056 = vpop.f32.mrb[0].mxu0
      %v1057 = vadd.f32 0.0, %v1056
      %v1058 = vpop.f32.mrb[0].mxu0
      %v1059 = vadd.f32 0.0, %v1058
      %1060 = vmatprep.mubr.f32.mxu0 %v694
      %1061 = vmatmul.mubr.f32.gmra.mrb[0].mxu0 %v692
      %v1062 = vpop.f32.mrb[0].mxu0
      %v1063 = vadd.f32 0.0, %v1062
      %v1064 = vpop.f32.mrb[0].mxu0
      %v1065 = vadd.f32 0.0, %v1064
      %1066 = vdwg.mxu0
      %1067 = vmatprep.subr.mxu0 %v827
      %1068 = vmatpush1.msra.mxu0 %v826
      %1069 = vmatprep.subr.mxu0 %v829
      %1070 = vmatpush1.msra.mxu0 %v828
      %1071 = vmatprep.subr.mxu0 %v831
      %1072 = vmatpush1.msra.mxu0 %v830
      %1073 = vmatprep.subr.mxu0 %v833
      %1074 = vmatpush1.msra.mxu0 %v832
      %1075 = vmatprep.subr.mxu0 %v835
      %1076 = vmatpush1.msra.mxu0 %v834
      %1077 = vmatprep.subr.mxu0 %v837
      %1078 = vmatpush1.msra.mxu0 %v836
      %1079 = vmatprep.subr.mxu0 %v839
      %1080 = vmatpush1.msra.mxu0 %v838
      %1081 = vmatprep.subr.mxu0 %v841
      %1082 = vmatpush1.msra.mxu0 %v840
      %1083 = vmatprep.subr.mxu0 %v843
      %1084 = vmatpush1.msra.mxu0 %v842
      %1085 = vmatprep.subr.mxu0 %v845
      %1086 = vmatpush1.msra.mxu0 %v844
      %1087 = vmatprep.subr.mxu0 %v847
      %1088 = vmatpush1.msra.mxu0 %v846
      %1089 = vmatprep.subr.mxu0 %v849
      %1090 = vmatpush1.msra.mxu0 %v848
      %1091 = vmatprep.subr.mxu0 %v851
      %1092 = vmatpush1.msra.mxu0 %v850
      %1093 = vmatprep.subr.mxu0 %v853
      %1094 = vmatpush1.msra.mxu0 %v852
      %1095 = vmatprep.subr.mxu0 %v855
      %1096 = vmatpush1.msra.mxu0 %v854
      %1097 = vmatprep.subr.mxu0 %v857
      %1098 = vmatpush1.msra.mxu0 %v856
      %1099 = vmatprep.subr.mxu0 %v859
      %1100 = vmatpush1.msra.mxu0 %v858
      %1101 = vmatprep.subr.mxu0 %v861
      %1102 = vmatpush1.msra.mxu0 %v860
      %1103 = vmatprep.subr.mxu0 %v863
      %1104 = vmatpush1.msra.mxu0 %v862
      %1105 = vmatprep.subr.mxu0 %v865
      %1106 = vmatpush1.msra.mxu0 %v864
      %1107 = vmatprep.subr.mxu0 %v867
      %1108 = vmatpush1.msra.mxu0 %v866
      %1109 = vmatprep.subr.mxu0 %v869
      %1110 = vmatpush1.msra.mxu0 %v868
      %1111 = vmatprep.subr.mxu0 %v871
      %1112 = vmatpush1.msra.mxu0 %v870
      %1113 = vmatprep.subr.mxu0 %v873
      %1114 = vmatpush1.msra.mxu0 %v872
      %1115 = vmatprep.subr.mxu0 %v875
      %1116 = vmatpush1.msra.mxu0 %v874
      %1117 = vmatprep.subr.mxu0 %v877
      %1118 = vmatpush1.msra.mxu0 %v876
      %1119 = vmatprep.subr.mxu0 %v879
      %1120 = vmatpush1.msra.mxu0 %v878
      %1121 = vmatprep.subr.mxu0 %v881
      %1122 = vmatpush1.msra.mxu0 %v880
      %1123 = vmatprep.subr.mxu0 %v883
      %1124 = vmatpush1.msra.mxu0 %v882
      %1125 = vmatprep.subr.mxu0 %v885
      %1126 = vmatpush1.msra.mxu0 %v884
      %1127 = vmatprep.subr.mxu0 %v887
      %1128 = vmatpush1.msra.mxu0 %v886
      %1129 = vmatprep.subr.mxu0 %v889
      %1130 = vmatpush1.msra.mxu0 %v888
      %1131 = vmatprep.mubr.f32.mxu0 %v633
      %1132 = vmatmul.mubr.f32.gmra.mrb[0].mxu0 %v632
      %v1133 = vpop.f32.mrb[0].mxu0
      %v1134 = vadd.f32 %v1021, %v1133
      %v1135 = vpop.f32.mrb[0].mxu0
      %v1136 = vadd.f32 %v1023, %v1135
      %1137 = vmatprep.mubr.f32.mxu0 %v635
      %1138 = vmatmul.mubr.f32.gmra.mrb[0].mxu0 %v634
      %v1139 = vpop.f32.mrb[0].mxu0
      %v1140 = vadd.f32 %v1027, %v1139
      %v1141 = vpop.f32.mrb[0].mxu0
      %v1142 = vadd.f32 %v1029, %v1141
      %1143 = vmatprep.mubr.f32.mxu0 %v637
      %1144 = vmatmul.mubr.f32.gmra.mrb[0].mxu0 %v636
      %v1145 = vpop.f32.mrb[0].mxu0
      %v1146 = vadd.f32 %v1033, %v1145
      %v1147 = vpop.f32.mrb[0].mxu0
      %v1148 = vadd.f32 %v1035, %v1147
      %1149 = vmatprep.mubr.f32.mxu0 %v639
      %1150 = vmatmul.mubr.f32.gmra.mrb[0].mxu0 %v638
      %v1151 = vpop.f32.mrb[0].mxu0
      %v1152 = vadd.f32 %v1039, %v1151
      %v1153 = vpop.f32.mrb[0].mxu0
      %v1154 = vadd.f32 %v1041, %v1153
      %1155 = vmatprep.mubr.f32.mxu0 %v641
      %1156 = vmatmul.mubr.f32.gmra.mrb[0].mxu0 %v640
      %v1157 = vpop.f32.mrb[0].mxu0
      %v1158 = vadd.f32 %v1045, %v1157
      %v1159 = vpop.f32.mrb[0].mxu0
      %v1160 = vadd.f32 %v1047, %v1159
      %1161 = vmatprep.mubr.f32.mxu0 %v643
      %1162 = vmatmul.mubr.f32.gmra.mrb[0].mxu0 %v642
      %v1163 = vpop.f32.mrb[0].mxu0
      %v1164 = vadd.f32 %v1051, %v1163
      %v1165 = vpop.f32.mrb[0].mxu0
      %v1166 = vadd.f32 %v1053, %v1165
      %1167 = vmatprep.mubr.f32.mxu0 %v645
      %1168 = vmatmul.mubr.f32.gmra.mrb[0].mxu0 %v644
      %v1169 = vpop.f32.mrb[0].mxu0
      %v1170 = vadd.f32 %v1057, %v1169
      %v1171 = vpop.f32.mrb[0].mxu0
      %v1172 = vadd.f32 %v1059, %v1171
      %1173 = vmatprep.mubr.f32.mxu0 %v647
      %1174 = vmatmul.mubr.f32.gmra.mrb[0].mxu0 %v646
      %v1175 = vpop.f32.mrb[0].mxu0
      %v1176 = vadd.f32 %v1063, %v1175
      %v1177 = vpop.f32.mrb[0].mxu0
      %v1178 = vadd.f32 %v1065, %v1177
      %1179 = vdwg.mxu0
      %1180 = vmatprep.subr.mxu0 %v891
      %1181 = vmatpush1.msra.mxu0 %v890
      %1182 = vmatprep.subr.mxu0 %v893
      %1183 = vmatpush1.msra.mxu0 %v892
      %1184 = vmatprep.subr.mxu0 %v895
      %1185 = vmatpush1.msra.mxu0 %v894
      %1186 = vmatprep.subr.mxu0 %v897
      %1187 = vmatpush1.msra.mxu0 %v896
      %1188 = vmatprep.subr.mxu0 %v899
      %1189 = vmatpush1.msra.mxu0 %v898
      %1190 = vmatprep.subr.mxu0 %v901
      %1191 = vmatpush1.msra.mxu0 %v900
      %1192 = vmatprep.subr.mxu0 %v903
      %1193 = vmatpush1.msra.mxu0 %v902
      %1194 = vmatprep.subr.mxu0 %v905
      %1195 = vmatpush1.msra.mxu0 %v904
      %1196 = vmatprep.subr.mxu0 %v907
      %1197 = vmatpush1.msra.mxu0 %v906
      %1198 = vmatprep.subr.mxu0 %v909
      %1199 = vmatpush1.msra.mxu0 %v908
      %1200 = vmatprep.subr.mxu0 %v911
      %1201 = vmatpush1.msra.mxu0 %v910
      %1202 = vmatprep.subr.mxu0 %v913
      %1203 = vmatpush1.msra.mxu0 %v912
      %1204 = vmatprep.subr.mxu0 %v915
      %1205 = vmatpush1.msra.mxu0 %v914
      %1206 = vmatprep.subr.mxu0 %v917
      %1207 = vmatpush1.msra.mxu0 %v916
      %1208 = vmatprep.subr.mxu0 %v919
      %1209 = vmatpush1.msra.mxu0 %v918
      %1210 = vmatprep.subr.mxu0 %v921
      %1211 = vmatpush1.msra.mxu0 %v920
      %1212 = vmatprep.subr.mxu0 %v923
      %1213 = vmatpush1.msra.mxu0 %v922
      %1214 = vmatprep.subr.mxu0 %v925
      %1215 = vmatpush1.msra.mxu0 %v924
      %1216 = vmatprep.subr.mxu0 %v927
      %1217 = vmatpush1.msra.mxu0 %v926
      %1218 = vmatprep.subr.mxu0 %v929
      %1219 = vmatpush1.msra.mxu0 %v928
      %1220 = vmatprep.subr.mxu0 %v931
      %1221 = vmatpush1.msra.mxu0 %v930
      %1222 = vmatprep.subr.mxu0 %v933
      %1223 = vmatpush1.msra.mxu0 %v932
      %1224 = vmatprep.subr.mxu0 %v935
      %1225 = vmatpush1.msra.mxu0 %v934
      %1226 = vmatprep.subr.mxu0 %v937
      %1227 = vmatpush1.msra.mxu0 %v936
      %1228 = vmatprep.subr.mxu0 %v939
      %1229 = vmatpush1.msra.mxu0 %v938
      %1230 = vmatprep.subr.mxu0 %v941
      %1231 = vmatpush1.msra.mxu0 %v940
      %1232 = vmatprep.subr.mxu0 %v943
      %1233 = vmatpush1.msra.mxu0 %v942
      %1234 = vmatprep.subr.mxu0 %v945
      %1235 = vmatpush1.msra.mxu0 %v944
      %1236 = vmatprep.subr.mxu0 %v947
      %1237 = vmatpush1.msra.mxu0 %v946
      %1238 = vmatprep.subr.mxu0 %v949
      %1239 = vmatpush1.msra.mxu0 %v948
      %1240 = vmatprep.subr.mxu0 %v951
      %1241 = vmatpush1.msra.mxu0 %v950
      %1242 = vmatprep.subr.mxu0 %v953
      %1243 = vmatpush1.msra.mxu0 %v952
      %1244 = vmatprep.mubr.f32.mxu0 %v719
      %1245 = vmatmul.mubr.f32.gmra.mrb[0].mxu0 %v716
      %v1246 = vpop.f32.mrb[0].mxu0
      %v1247 = vadd.f32 %v1134, %v1246
      %v1248 = vpop.f32.mrb[0].mxu0
      %v1249 = vadd.f32 %v1136, %v1248
      %1250 = vmatprep.mubr.f32.mxu0 %v723
      %1251 = vmatmul.mubr.f32.gmra.mrb[0].mxu0 %v721
      %v1252 = vpop.f32.mrb[0].mxu0
      %v1253 = vadd.f32 %v1140, %v1252
      %v1254 = vpop.f32.mrb[0].mxu0
      %v1255 = vadd.f32 %v1142, %v1254
      %1256 = vmatprep.mubr.f32.mxu0 %v727
      %1257 = vmatmul.mubr.f32.gmra.mrb[0].mxu0 %v725
      %v1258 = vpop.f32.mrb[0].mxu0
      %v1259 = vadd.f32 %v1146, %v1258
      %v1260 = vpop.f32.mrb[0].mxu0
      %v1261 = vadd.f32 %v1148, %v1260
      %1262 = vmatprep.mubr.f32.mxu0 %v731
      %1263 = vmatmul.mubr.f32.gmra.mrb[0].mxu0 %v729
      %v1264 = vpop.f32.mrb[0].mxu0
      %v1265 = vadd.f32 %v1152, %v1264
      %v1266 = vpop.f32.mrb[0].mxu0
      %v1267 = vadd.f32 %v1154, %v1266
      %1268 = vmatprep.mubr.f32.mxu0 %v735
      %1269 = vmatmul.mubr.f32.gmra.mrb[0].mxu0 %v733
      %v1270 = vpop.f32.mrb[0].mxu0
      %v1271 = vadd.f32 %v1158, %v1270
      %v1272 = vpop.f32.mrb[0].mxu0
      %v1273 = vadd.f32 %v1160, %v1272
      %1274 = vmatprep.mubr.f32.mxu0 %v739
      %1275 = vmatmul.mubr.f32.gmra.mrb[0].mxu0 %v737
      %v1276 = vpop.f32.mrb[0].mxu0
      %v1277 = vadd.f32 %v1164, %v1276
      %v1278 = vpop.f32.mrb[0].mxu0
      %v1279 = vadd.f32 %v1166, %v1278
      %1280 = vmatprep.mubr.f32.mxu0 %v743
      %1281 = vmatmul.mubr.f32.gmra.mrb[0].mxu0 %v741
      %v1282 = vpop.f32.mrb[0].mxu0
      %v1283 = vadd.f32 %v1170, %v1282
      %v1284 = vpop.f32.mrb[0].mxu0
      %v1285 = vadd.f32 %v1172, %v1284
      %1286 = vmatprep.mubr.f32.mxu0 %v761
      %1287 = vmatmul.mubr.f32.gmra.mrb[0].mxu0 %v760
      %v1288 = vpop.f32.mrb[0].mxu0
      %v1289 = vadd.f32 %v1176, %v1288
      %v1290 = vpop.f32.mrb[0].mxu0
      %v1291 = vadd.f32 %v1178, %v1290
      %1292 = vdwg.mxu0
      %v1293 = vpack.c.bf16 %v1253, %v1247
      %v1294 = vpack.c.bf16 %v1255, %v1249
      %v1295 = vpack.c.bf16 %v1265, %v1259
      %v1296 = vpack.c.bf16 %v1267, %v1261
      %v1297 = vpack.c.bf16 %v1277, %v1271
      %v1298 = vpack.c.bf16 %v1279, %v1273
      %v1299 = vpack.c.bf16 %v1289, %v1283
      %v1300 = vpack.c.bf16 %v1291, %v1285
      %v1309 = vunpack.c.l.b16 %v1293
      %v1310 = vunpack.c.l.b16 %v1294
      %v1311 = vunpack.c.h.b16 %v1293
      %v1312 = vunpack.c.h.b16 %v1294
      %v1313 = vunpack.c.l.b16 %v1295
      %v1314 = vunpack.c.l.b16 %v1296
      %v1315 = vunpack.c.h.b16 %v1295
      %v1316 = vunpack.c.h.b16 %v1296
      %v1317 = vunpack.c.l.b16 %v1297
      %v1318 = vunpack.c.l.b16 %v1298
      %v1319 = vunpack.c.h.b16 %v1297
      %v1320 = vunpack.c.h.b16 %v1298
      %v1321 = vunpack.c.l.b16 %v1299
      %v1322 = vunpack.c.l.b16 %v1300
      %v1323 = vunpack.c.h.b16 %v1299
      %v1324 = vunpack.c.h.b16 %v1300
      %v1325 = vpack.c.b16 %v1310, %v1309
      %v1326 = vpack.c.b16 %v1312, %v1311
      %v1327 = vpack.c.b16 %v1314, %v1313
      %v1328 = vpack.c.b16 %v1316, %v1315
      %v1329 = vpack.c.b16 %v1318, %v1317
      %v1330 = vpack.c.b16 %v1320, %v1319
      %v1331 = vpack.c.b16 %v1322, %v1321
      %v1332 = vpack.c.b16 %v1324, %v1323
      %1341 = vst [vmem:[%s264] sm:$0xff] %v1325
      %1342 = vst [vmem:[%s264 + $0x8] sm:$0xff] %v1326
      %1343 = vst [vmem:[%s264 + $0x10] sm:$0xff] %v1327
      %1344 = vst [vmem:[%s264 + $0x18] sm:$0xff] %v1328
      %1345 = vst [vmem:[%s264 + $0x20] sm:$0xff] %v1329
      %1346 = vst [vmem:[%s264 + $0x28] sm:$0xff] %v1330
      %1347 = vst [vmem:[%s264 + $0x30] sm:$0xff] %v1331
      %1348 = vst [vmem:[%s264 + $0x38] sm:$0xff] %v1332
      %v1349 = vadd.f32 %v1247, %v1253
      %v1350 = vadd.f32 %v1349, %v1259
      %v1351 = vadd.f32 %v1350, %v1265
      %v1352 = vadd.f32 %v1351, %v1271
      %v1353 = vadd.f32 %v1352, %v1277
      %v1354 = vadd.f32 %v1353, %v1283
      %v1355 = vadd.f32 %v1354, %v1289
      %v1356 = vrot.slane %v1355, 4
      %v1357 = vadd.f32 %v1355, %v1356
      %v1358 = vrot.slane %v1357, 2
      %v1359 = vadd.f32 %v1357, %v1358
      %v1360 = vrot.slane %v1359, 1
      %v1361 = vadd.f32 %v1359, %v1360
      %v1362 = vadd.f32 %v1249, %v1255
      %v1363 = vadd.f32 %v1362, %v1261
      %v1364 = vadd.f32 %v1363, %v1267
      %v1365 = vadd.f32 %v1364, %v1273
      %v1366 = vadd.f32 %v1365, %v1279
      %v1367 = vadd.f32 %v1366, %v1285
      %v1368 = vadd.f32 %v1367, %v1291
      %v1369 = vrot.slane %v1368, 4
      %v1370 = vadd.f32 %v1368, %v1369
      %v1371 = vrot.slane %v1370, 2
      %v1372 = vadd.f32 %v1370, %v1371
      %v1373 = vrot.slane %v1372, 1
      %v1374 = vadd.f32 %v1372, %v1373
      %v1377 = vcombine.low %v1361, %v1374
      %v1379 = vunpack.c.l.s4 1966171168
      %v1380 = vunpack.c.0.s8 %v1379
      %v1381 = vlaneseq
      %v1382 = vshrl.u32 %v1381, 7
      %v1383 = vsub.s32 %v1380, %v1382
      %v1384 = vrot.slane %v1377, %v1383
      %v1386 = vunpack.c.l.s4 1966171168
      %v1387 = vunpack.c.0.s8 %v1386
      %v1388 = vlaneseq
      %v1389 = vshrl.u32 %v1388, 7
      %v1390 = vsub.s32 %v1387, %v1389
      %v1391 = vrot.slane %v1384, %v1390
      %v1393 = vlaneseq
      %vm1394 = vcmp.ge.s32.totalorder %v1393, 0
      %vm1395 = vcmp.lt.s32.totalorder %v1393, 256
      %vm1396 = vmand %vm1394, %vm1395
      %1397 = vst.msk [vmem:[%s268] sm:$0x3] %vm1396, %v1391
      %v1398 = vmul.f32 %v1247, %v1247
      %v1399 = vmul.f32 %v1249, %v1249
      %v1400 = vmul.f32 %v1253, %v1253
      %v1401 = vmul.f32 %v1255, %v1255
      %v1402 = vmul.f32 %v1259, %v1259
      %v1403 = vmul.f32 %v1261, %v1261
      %v1404 = vmul.f32 %v1265, %v1265
      %v1405 = vmul.f32 %v1267, %v1267
      %v1406 = vmul.f32 %v1271, %v1271
      %v1407 = vmul.f32 %v1273, %v1273
      %v1408 = vmul.f32 %v1277, %v1277
      %v1409 = vmul.f32 %v1279, %v1279
      %v1410 = vmul.f32 %v1283, %v1283
      %v1411 = vmul.f32 %v1285, %v1285
      %v1412 = vmul.f32 %v1289, %v1289
      %v1413 = vmul.f32 %v1291, %v1291
      %v1414 = vadd.f32 %v1398, %v1400
      %v1415 = vadd.f32 %v1414, %v1402
      %v1416 = vadd.f32 %v1415, %v1404
      %v1417 = vadd.f32 %v1416, %v1406
      %v1418 = vadd.f32 %v1417, %v1408
      %v1419 = vadd.f32 %v1418, %v1410
      %v1420 = vadd.f32 %v1419, %v1412
      %v1421 = vrot.slane %v1420, 4
      %v1422 = vadd.f32 %v1420, %v1421
      %v1423 = vrot.slane %v1422, 2
      %v1424 = vadd.f32 %v1422, %v1423
      %v1425 = vrot.slane %v1424, 1
      %v1426 = vadd.f32 %v1424, %v1425
      %v1427 = vadd.f32 %v1399, %v1401
      %v1428 = vadd.f32 %v1427, %v1403
      %v1429 = vadd.f32 %v1428, %v1405
      %v1430 = vadd.f32 %v1429, %v1407
      %v1431 = vadd.f32 %v1430, %v1409
      %v1432 = vadd.f32 %v1431, %v1411
      %v1433 = vadd.f32 %v1432, %v1413
      %v1434 = vrot.slane %v1433, 4
      %v1435 = vadd.f32 %v1433, %v1434
      %v1436 = vrot.slane %v1435, 2
      %v1437 = vadd.f32 %v1435, %v1436
      %v1438 = vrot.slane %v1437, 1
      %v1439 = vadd.f32 %v1437, %v1438
      %v1442 = vcombine.low %v1426, %v1439
      %v1444 = vunpack.c.l.s4 1966171168
      %v1445 = vunpack.c.0.s8 %v1444
      %v1446 = vlaneseq
      %v1447 = vshrl.u32 %v1446, 7
      %v1448 = vsub.s32 %v1445, %v1447
      %v1449 = vrot.slane %v1442, %v1448
      %v1451 = vunpack.c.l.s4 1966171168
      %v1452 = vunpack.c.0.s8 %v1451
      %v1453 = vlaneseq
      %v1454 = vshrl.u32 %v1453, 7
      %v1455 = vsub.s32 %v1452, %v1454
      %v1456 = vrot.slane %v1449, %v1455
      %1458 = vst.msk [vmem:[%s272] sm:$0x3] %vm1396, %v1456
      %p1459 = scmp.lt.s32.totalorder %s18, 1
      %s1460 = scalar_select %p1459, %s18, 1
      %s1461 = smul.addr %s1460, 16
      %s1462 = smul.addr %s1461, 4
      %s1463 = scalar_lea.vmem %s4, %s1462
      %p1464 = scmp.lt.s32.totalorder %s18, 1
      %s1465 = scalar_select %p1464, %s18, 1
      %s1466 = smul.addr %s1465, 2
      %s1467 = scalar_lea.vmem %s5, %s1466
      %p1468 = scmp.lt.s32.totalorder %s18, 1
      %s1469 = scalar_select %p1468, %s18, 1
      %s1470 = smul.addr %s1469, 2
      %s1471 = scalar_lea.vmem %s6, %s1470
      // Predicated region
      $region37: #{forward.4} parent=35 // pred_check
        %p1472 = pneg %p125
      $region38: #{forward.4} parent=35 // pred_check_branch
        %1474 = sbr.rel (%p1472) target = $region40
      $region39: #{forward.4} parent=35 // pred_region
        _
      $region40: #{forward.4} parent=35 // pred_fallthru
        _
      // Predicated region
      $region41: #{forward.4} parent=35 // pred_check
        %p1475 = pneg %p151
      $region42: #{forward.4} parent=35 // pred_check_branch
        %1477 = sbr.rel (%p1475) target = $region44
      $region43: #{forward.4} parent=35 // pred_region
        _
      $region44: #{forward.4} parent=35 // pred_fallthru
        _
      // Predicated region
      $region45: #{forward.4} parent=35 // pred_check
        %p1478 = pneg %p177
      $region46: #{forward.4} parent=35 // pred_check_branch
        %1480 = sbr.rel (%p1478) target = $region48
      $region47: #{forward.4} parent=35 // pred_region
        _
      $region48: #{forward.4} parent=35 // pred_fallthru
        _
    $region36: #{forward.4} parent=5 // pred_fallthru
      _
    %p1481 = scmp.le.s32.totalorder 2, %s13
    // Predicated region
    $region49: #{forward.4} parent=5 // pred_check
      %p1482 = pneg %p1481
    $region50: #{forward.4} parent=5 // pred_check_branch
      %1484 = sbr.rel (%p1482) target = $region52
    $region51: #{forward.4} parent=5 // pred_region
      %s1485 = ssub.s32 %s13, 2
      // Predicated region
      $region53: #{forward.4} parent=51 // pred_check
        %p1486 = pneg %p131
      $region54: #{forward.4} parent=51 // pred_check_branch
        %1488 = sbr.rel (%p1486) target = $region56
      $region55: #{forward.4} parent=51 // pred_region
        %p1489 = scmp.lt.s32.totalorder %s19, 1
        %s1490 = scalar_select %p1489, %s19, 1
        %s1491 = smul.addr %s1490, 16
        %s1492 = smul.addr %s1491, 4
        %s1493 = scalar_lea.vmem %s4, %s1492
      $region56: #{forward.4} parent=51 // pred_fallthru
        _
      // Predicated region
      $region57: #{forward.4} parent=51 // pred_check
        %p1494 = pneg %p157
      $region58: #{forward.4} parent=51 // pred_check_branch
        %1496 = sbr.rel (%p1494) target = $region60
      $region59: #{forward.4} parent=51 // pred_region
        %p1497 = scmp.lt.s32.totalorder %s19, 1
        %s1498 = scalar_select %p1497, %s19, 1
        %s1499 = smul.addr %s1498, 2
        %s1500 = scalar_lea.vmem %s5, %s1499
      $region60: #{forward.4} parent=51 // pred_fallthru
        _
      // Predicated region
      $region61: #{forward.4} parent=51 // pred_check
        %p1501 = pneg %p183
      $region62: #{forward.4} parent=51 // pred_check_branch
        %1503 = sbr.rel (%p1501) target = $region64
      $region63: #{forward.4} parent=51 // pred_region
        %p1504 = scmp.lt.s32.totalorder %s19, 1
        %s1505 = scalar_select %p1504, %s19, 1
        %s1506 = smul.addr %s1505, 2
        %s1507 = scalar_lea.vmem %s6, %s1506
      $region64: #{forward.4} parent=51 // pred_fallthru
        _
    $region52: #{forward.4} parent=5 // pred_fallthru
      _
  $region6: #{forward.4} parent=0 // loop_footer
    %s17 = sadd.s32 1, %s13
  $region7: #{forward.4} parent=0 // loop_footer_branch
    %12 = sbr.rel target = $region3
  $region8: #{forward.4} parent=0 // loop_exit
    _

// kernel: forward.3
$region0: #{forward.3}
  #allocation0 [shape = 'u32[]', space=smem, size = 0x4, offset = 0x4, fixed_abs, tag = 'smem constant byte address 0x4 - core index']
  #allocation1 [shape = 'u32[144,128]{1,0:T(1,128)}', space=vmem, size = 0x12000, scoped, tag = 'internal scratch']
  %s0 = inlined_call_operand.vmem [shape: f32[2,4,65,128], index: 0, kind: input, shape index: {}]
  %s1 = inlined_call_operand.vmem [shape: f32[128,256], index: 1, kind: input, shape index: {}]
  %s2 = inlined_call_operand.vmem [shape: bf16[2,4,65,256], index: 2, kind: output, shape index: {0}]
  %s3 = inlined_call_operand.vmem [shape: f32[2,1,256], index: 3, kind: output, shape index: {1}]
  %s4 = inlined_call_operand.vmem [shape: f32[2,1,256], index: 4, kind: output, shape index: {2}]
  %5 = xla_tuple %s2, %s3, %s4
  %s6 = sld [smem:[#allocation0]]
  $region57: #{forward.3} parent=0
    _
  %s8 = ssub.s32 1, %s6
  %s9 = scalar_select 0, %s8, %s6
  loop: start=0, step=1, limit=4
  $region2: #{forward.3} parent=0 // loop_pre_header
    _
  $region3: #{forward.3} parent=0 // loop_header
    %s11 = sphi 0, %s15
    %p12 = scmp.ge.s32.totalorder %s11, 4
    %s21 = sphi 0, %s23
    %s24 = sphi 0, %s21
    %s25 = sphi 0, %s24
    %s41 = sphi 0, %s25
    %s45 = sphi 0, %s45
    %s47 = sphi 0, %s45
    %s48 = sphi 0, %s47
    %s62 = sphi 0, %s48
    %s68 = sphi 0, %s70
    %s71 = sphi 0, %s68
    %s72 = sphi 0, %s71
    %s88 = sphi 0, %s72
    %s94 = sphi 0, %s96
    %s97 = sphi 0, %s94
    %s98 = sphi 0, %s97
    %s114 = sphi 0, %s98
    %s120 = sphi 0, %s122
    %s123 = sphi 0, %s120
    %s124 = sphi 0, %s123
    %s140 = sphi 0, %s124
  $region4: #{forward.3} parent=0 // loop_header_branch
    %14 = sbr.rel (%p12) target = $region8
  $region5: #{forward.3} parent=0 // loop_body
    %s16 = ssub.s32 %s11, 1
    %s17 = ssub.s32 %s11, 2
    %s18 = sadd.s32 %s11, 1
    %s19 = ssub.s32 %s11, %s18
    %p20 = scmp.eq.s32.totalorder %s19, 0
    %s22 = sadd.s32 %s21, 1
    %s23 = scalar_select %p20, %s21, %s22
    %p26 = pneg %p20
    %p27 = scmp.eq.s32.totalorder %s11, 1
    %p28 = por %p26, %p27
    %p29 = scmp.ne.s32.totalorder %s21, %s24
    %p30 = scmp.eq.s32.totalorder %s11, 0
    %p31 = por %p29, %p30
    %p32 = scmp.ne.s32.totalorder %s21, %s24
    %p33 = scmp.eq.s32.totalorder %s16, 1
    %p34 = por %p32, %p33
    %p35 = scmp.ne.s32.totalorder %s24, %s25
    %p36 = scmp.eq.s32.totalorder %s16, 0
    %p37 = por %p35, %p36
    %p38 = scmp.ne.s32.totalorder %s24, %s25
    %p39 = scmp.eq.s32.totalorder %s17, 1
    %p40 = por %p38, %p39
    %p42 = scmp.ne.s32.totalorder %s25, %s41
    %p43 = scmp.eq.s32.totalorder %s17, 0
    %p44 = por %p42, %p43
    %s46 = sadd.s32 %s45, 1
    %p49 = scmp.eq.s32.totalorder %s11, 1
    %p50 = scmp.ne.s32.totalorder %s45, %s47
    %p51 = scmp.eq.s32.totalorder %s11, 0
    %p52 = por %p50, %p51
    %p53 = scmp.ne.s32.totalorder %s45, %s47
    %p54 = scmp.eq.s32.totalorder %s16, 1
    %p55 = por %p53, %p54
    %p56 = scmp.ne.s32.totalorder %s47, %s48
    %p57 = scmp.eq.s32.totalorder %s16, 0
    %p58 = por %p56, %p57
    %p59 = scmp.ne.s32.totalorder %s47, %s48
    %p60 = scmp.eq.s32.totalorder %s17, 1
    %p61 = por %p59, %p60
    %p63 = scmp.ne.s32.totalorder %s48, %s62
    %p64 = scmp.eq.s32.totalorder %s17, 0
    %p65 = por %p63, %p64
    %s66 = ssub.s32 %s11, %s18
    %p67 = scmp.eq.s32.totalorder %s66, 0
    %s69 = sadd.s32 %s68, 1
    %s70 = scalar_select %p67, %s68, %s69
    %p73 = pneg %p67
    %p74 = scmp.eq.s32.totalorder %s11, 1
    %p75 = por %p73, %p74
    %p76 = scmp.ne.s32.totalorder %s68, %s71
    %p77 = scmp.eq.s32.totalorder %s11, 0
    %p78 = por %p76, %p77
    %p79 = scmp.ne.s32.totalorder %s68, %s71
    %p80 = scmp.eq.s32.totalorder %s16, 1
    %p81 = por %p79, %p80
    %p82 = scmp.ne.s32.totalorder %s71, %s72
    %p83 = scmp.eq.s32.totalorder %s16, 0
    %p84 = por %p82, %p83
    %p85 = scmp.ne.s32.totalorder %s71, %s72
    %p86 = scmp.eq.s32.totalorder %s17, 1
    %p87 = por %p85, %p86
    %p89 = scmp.ne.s32.totalorder %s72, %s88
    %p90 = scmp.eq.s32.totalorder %s17, 0
    %p91 = por %p89, %p90
    %s92 = ssub.s32 %s11, %s18
    %p93 = scmp.eq.s32.totalorder %s92, 0
    %s95 = sadd.s32 %s94, 1
    %s96 = scalar_select %p93, %s94, %s95
    %p99 = pneg %p93
    %p100 = scmp.eq.s32.totalorder %s11, 1
    %p101 = por %p99, %p100
    %p102 = scmp.ne.s32.totalorder %s94, %s97
    %p103 = scmp.eq.s32.totalorder %s11, 0
    %p104 = por %p102, %p103
    %p105 = scmp.ne.s32.totalorder %s94, %s97
    %p106 = scmp.eq.s32.totalorder %s16, 1
    %p107 = por %p105, %p106
    %p108 = scmp.ne.s32.totalorder %s97, %s98
    %p109 = scmp.eq.s32.totalorder %s16, 0
    %p110 = por %p108, %p109
    %p111 = scmp.ne.s32.totalorder %s97, %s98
    %p112 = scmp.eq.s32.totalorder %s17, 1
    %p113 = por %p111, %p112
    %p115 = scmp.ne.s32.totalorder %s98, %s114
    %p116 = scmp.eq.s32.totalorder %s17, 0
    %p117 = por %p115, %p116
    %s118 = ssub.s32 %s11, %s18
    %p119 = scmp.eq.s32.totalorder %s118, 0
    %s121 = sadd.s32 %s120, 1
    %s122 = scalar_select %p119, %s120, %s121
    %p125 = pneg %p119
    %p126 = scmp.eq.s32.totalorder %s11, 1
    %p127 = por %p125, %p126
    %p128 = scmp.ne.s32.totalorder %s120, %s123
    %p129 = scmp.eq.s32.totalorder %s11, 0
    %p130 = por %p128, %p129
    %p131 = scmp.ne.s32.totalorder %s120, %s123
    %p132 = scmp.eq.s32.totalorder %s16, 1
    %p133 = por %p131, %p132
    %p134 = scmp.ne.s32.totalorder %s123, %s124
    %p135 = scmp.eq.s32.totalorder %s16, 0
    %p136 = por %p134, %p135
    %p137 = scmp.ne.s32.totalorder %s123, %s124
    %p138 = scmp.eq.s32.totalorder %s17, 1
    %p139 = por %p137, %p138
    %p141 = scmp.ne.s32.totalorder %s124, %s140
    %p142 = scmp.eq.s32.totalorder %s17, 0
    %p143 = por %p141, %p142
    %p144 = scmp.le.s32.totalorder 1, %s11
    %p145 = scmp.lt.s32.totalorder %s11, 3
    %p146 = pnand %p144, %p145
    %p147 = pneg %p146
    // Predicated region
    $region9: #{forward.3} parent=5 // pred_check
      _
    $region10: #{forward.3} parent=5 // pred_check_branch
      %149 = sbr.rel (%p146) target = $region12
    $region11: #{forward.3} parent=5 // pred_region
      %s150 = ssub.s32 %s11, 1
      // Predicated region
      $region13: #{forward.3} parent=11 // pred_check
        %p151 = pneg %p58
      $region14: #{forward.3} parent=11 // pred_check_branch
        %153 = sbr.rel (%p151) target = $region16
      $region15: #{forward.3} parent=11 // pred_region
        _
      $region16: #{forward.3} parent=11 // pred_fallthru
        _
    $region12: #{forward.3} parent=5 // pred_fallthru
      _
    %p154 = scmp.lt.s32.totalorder %s11, 2
    // Predicated region
    $region17: #{forward.3} parent=5 // pred_check
      %p155 = pneg %p154
    $region18: #{forward.3} parent=5 // pred_check_branch
      %157 = sbr.rel (%p155) target = $region20
    $region19: #{forward.3} parent=5 // pred_region
      // Predicated region
      $region21: #{forward.3} parent=19 // pred_check
        %p158 = pneg %p31
      $region22: #{forward.3} parent=19 // pred_check_branch
        %160 = sbr.rel (%p158) target = $region24
      $region23: #{forward.3} parent=19 // pred_region
        %p161 = scmp.lt.s32.totalorder %s11, 1
        %s162 = scalar_select %p161, %s11, 1
        %s163 = smul.addr %s162, 36
        %s164 = smul.addr %s163, 8
        %s165 = scalar_lea.vmem %s0, %s164
      $region24: #{forward.3} parent=19 // pred_fallthru
        _
    $region20: #{forward.3} parent=5 // pred_fallthru
      _
    %p166 = scmp.le.s32.totalorder 1, %s11
    %p167 = scmp.lt.s32.totalorder %s11, 3
    %p168 = pnand %p166, %p167
    %p169 = pneg %p168
    // Predicated region
    $region25: #{forward.3} parent=5 // pred_check
      _
    $region26: #{forward.3} parent=5 // pred_check_branch
      %171 = sbr.rel (%p168) target = $region28
    $region27: #{forward.3} parent=5 // pred_region
      %s172 = ssub.s32 %s11, 1
      %p173 = scmp.lt.s32.totalorder %s16, 1
      %s174 = scalar_select %p173, %s16, 1
      %s175 = smul.addr %s174, 36
      %s176 = smul.addr %s175, 8
      %s177 = scalar_lea.vmem %s0, %s176
      %p178 = pneg %p37
      %p179 = pneg %p34
      %p180 = pneg %p58
      %p181 = pneg %p55
      %p182 = pneg %p84
      %p183 = pneg %p81
      %p184 = scmp.lt.s32.totalorder %s16, 1
      %s185 = scalar_select %p184, %s16, 1
      %s186 = smul.addr %s185, 72
      %s187 = smul.addr %s186, 4
      %s188 = scalar_lea.vmem %s2, %s187
      %p189 = pneg %p110
      %p190 = pneg %p107
      %p191 = scmp.lt.s32.totalorder %s16, 1
      %s192 = scalar_select %p191, %s16, 1
      %s193 = smul.addr %s192, 2
      %s194 = scalar_lea.vmem %s3, %s193
      %p195 = pneg %p136
      %p196 = pneg %p133
      %p197 = scmp.lt.s32.totalorder %s16, 1
      %s198 = scalar_select %p197, %s16, 1
      %s199 = smul.addr %s198, 2
      %s200 = scalar_lea.vmem %s4, %s199
      %p201 = scmp.lt.s32.totalorder %s16, 1
      %s202 = scalar_select %p201, %s16, 1
      %s203 = smul.addr %s202, 36
      %s204 = smul.addr %s203, 8
      %s205 = scalar_lea.vmem %s0, %s204
      %p206 = scmp.lt.s32.totalorder %s16, 1
      %s207 = scalar_select %p206, %s16, 1
      %s208 = smul.addr %s207, 72
      %s209 = smul.addr %s208, 4
      %s210 = scalar_lea.vmem %s2, %s209
      %p211 = scmp.lt.s32.totalorder %s16, 1
      %s212 = scalar_select %p211, %s16, 1
      %s213 = smul.addr %s212, 2
      %s214 = scalar_lea.vmem %s3, %s213
      %p215 = scmp.lt.s32.totalorder %s16, 1
      %s216 = scalar_select %p215, %s16, 1
      %s217 = smul.addr %s216, 2
      %s218 = scalar_lea.vmem %s4, %s217
      %v219 = vld [vmem:[%s1] sm:$0xff]
      %v220 = vld [vmem:[%s1 + $0x8] sm:$0xff]
      %v221 = vld [vmem:[%s1 + $0x10] sm:$0xff]
      %v222 = vld [vmem:[%s1 + $0x18] sm:$0xff]
      %v223 = vld [vmem:[%s1 + $0x20] sm:$0xff]
      %v224 = vld [vmem:[%s1 + $0x28] sm:$0xff]
      %v225 = vld [vmem:[%s1 + $0x30] sm:$0xff]
      %v226 = vld [vmem:[%s1 + $0x38] sm:$0xff]
      %v227 = vld [vmem:[%s1 + $0x40] sm:$0xff]
      %v228 = vld [vmem:[%s1 + $0x48] sm:$0xff]
      %v229 = vld [vmem:[%s1 + $0x50] sm:$0xff]
      %v230 = vld [vmem:[%s1 + $0x58] sm:$0xff]
      %v231 = vld [vmem:[%s1 + $0x60] sm:$0xff]
      %v232 = vld [vmem:[%s1 + $0x68] sm:$0xff]
      %v233 = vld [vmem:[%s1 + $0x70] sm:$0xff]
      %v234 = vld [vmem:[%s1 + $0x78] sm:$0xff]
      %v235 = vld [vmem:[%s1 + $0x80] sm:$0xff]
      %v236 = vld [vmem:[%s1 + $0x88] sm:$0xff]
      %v237 = vld [vmem:[%s1 + $0x90] sm:$0xff]
      %v238 = vld [vmem:[%s1 + $0x98] sm:$0xff]
      %v239 = vld [vmem:[%s1 + $0xa0] sm:$0xff]
      %v240 = vld [vmem:[%s1 + $0xa8] sm:$0xff]
      %v241 = vld [vmem:[%s1 + $0xb0] sm:$0xff]
      %v242 = vld [vmem:[%s1 + $0xb8] sm:$0xff]
      %v243 = vld [vmem:[%s1 + $0xc0] sm:$0xff]
      %v244 = vld [vmem:[%s1 + $0xc8] sm:$0xff]
      %v245 = vld [vmem:[%s1 + $0xd0] sm:$0xff]
      %v246 = vld [vmem:[%s1 + $0xd8] sm:$0xff]
      %v247 = vld [vmem:[%s1 + $0xe0] sm:$0xff]
      %v248 = vld [vmem:[%s1 + $0xe8] sm:$0xff]
      %v249 = vld [vmem:[%s1 + $0xf0] sm:$0xff]
      %v250 = vld [vmem:[%s1 + $0xf8] sm:$0xff]
      %v251 = vld [vmem:[%s205] sm:$0xff]
      %v252 = vld [vmem:[%s205 + $0x8] sm:$0xff]
      %v253 = vld [vmem:[%s205 + $0x10] sm:$0xff]
      %v254 = vld [vmem:[%s205 + $0x18] sm:$0xff]
      %v255 = vld [vmem:[%s205 + $0x20] sm:$0xff]
      %v256 = vld [vmem:[%s205 + $0x28] sm:$0xff]
      %v257 = vld [vmem:[%s205 + $0x30] sm:$0xff]
      %v258 = vld [vmem:[%s205 + $0x38] sm:$0xff]
      %v259 = vld [vmem:[%s205 + $0x40] sm:$0x1]
      %260 = vmatprep.subr.mxu0 %v220
      %261 = vmatpush1.msra.mxu0 %v219
      %262 = vmatprep.subr.mxu0 %v222
      %263 = vmatpush1.msra.mxu0 %v221
      %264 = vmatprep.subr.mxu0 %v224
      %265 = vmatpush1.msra.mxu0 %v223
      %266 = vmatprep.subr.mxu0 %v226
      %267 = vmatpush1.msra.mxu0 %v225
      %268 = vmatprep.subr.mxu0 %v228
      %269 = vmatpush1.msra.mxu0 %v227
      %270 = vmatprep.subr.mxu0 %v230
      %271 = vmatpush1.msra.mxu0 %v229
      %272 = vmatprep.subr.mxu0 %v232
      %273 = vmatpush1.msra.mxu0 %v231
      %274 = vmatprep.subr.mxu0 %v234
      %275 = vmatpush1.msra.mxu0 %v233
      %276 = vmatprep.subr.mxu0 %v236
      %277 = vmatpush1.msra.mxu0 %v235
      %278 = vmatprep.subr.mxu0 %v238
      %279 = vmatpush1.msra.mxu0 %v237
      %280 = vmatprep.subr.mxu0 %v240
      %281 = vmatpush1.msra.mxu0 %v239
      %282 = vmatprep.subr.mxu0 %v242
      %283 = vmatpush1.msra.mxu0 %v241
      %284 = vmatprep.subr.mxu0 %v244
      %285 = vmatpush1.msra.mxu0 %v243
      %286 = vmatprep.subr.mxu0 %v246
      %287 = vmatpush1.msra.mxu0 %v245
      %288 = vmatprep.subr.mxu0 %v248
      %289 = vmatpush1.msra.mxu0 %v247
      %290 = vmatprep.subr.mxu0 %v250
      %291 = vmatpush1.msra.mxu0 %v249
      %292 = vmatprep.subr.mxu0 0.0
      %293 = vmatpush1.msra.mxu0 0.0
      %294 = vmatprep.subr.mxu0 0.0
      %295 = vmatpush1.msra.mxu0 0.0
      %296 = vmatprep.subr.mxu0 0.0
      %297 = vmatpush1.msra.mxu0 0.0
      %298 = vmatprep.subr.mxu0 0.0
      %299 = vmatpush1.msra.mxu0 0.0
      %300 = vmatprep.subr.mxu0 0.0
      %301 = vmatpush1.msra.mxu0 0.0
      %302 = vmatprep.subr.mxu0 0.0
      %303 = vmatpush1.msra.mxu0 0.0
      %304 = vmatprep.subr.mxu0 0.0
      %305 = vmatpush1.msra.mxu0 0.0
      %306 = vmatprep.subr.mxu0 0.0
      %307 = vmatpush1.msra.mxu0 0.0
      %308 = vmatprep.subr.mxu0 0.0
      %309 = vmatpush1.msra.mxu0 0.0
      %310 = vmatprep.subr.mxu0 0.0
      %311 = vmatpush1.msra.mxu0 0.0
      %312 = vmatprep.subr.mxu0 0.0
      %313 = vmatpush1.msra.mxu0 0.0
      %314 = vmatprep.subr.mxu0 0.0
      %315 = vmatpush1.msra.mxu0 0.0
      %316 = vmatprep.subr.mxu0 0.0
      %317 = vmatpush1.msra.mxu0 0.0
      %318 = vmatprep.subr.mxu0 0.0
      %319 = vmatpush1.msra.mxu0 0.0
      %320 = vmatprep.subr.mxu0 0.0
      %321 = vmatpush1.msra.mxu0 0.0
      %322 = vmatprep.subr.mxu0 0.0
      %323 = vmatpush1.msra.mxu0 0.0
      %324 = vmatprep.mubr.f32.mxu0 0.0
      %325 = vmatmul.mubr.f32.gmra.mrb[0].mxu0 %v251
      %v326 = vpop.f32.mrb[0].mxu0
      %v327 = vadd.f32 0.0, %v326
      %v328 = vpop.f32.mrb[0].mxu0
      %v329 = vadd.f32 0.0, %v328
      %330 = vmatprep.mubr.f32.mxu0 0.0
      %331 = vmatmul.mubr.f32.gmra.mrb[0].mxu0 %v252
      %v332 = vpop.f32.mrb[0].mxu0
      %v333 = vadd.f32 0.0, %v332
      %v334 = vpop.f32.mrb[0].mxu0
      %v335 = vadd.f32 0.0, %v334
      %336 = vmatprep.mubr.f32.mxu0 0.0
      %337 = vmatmul.mubr.f32.gmra.mrb[0].mxu0 %v253
      %v338 = vpop.f32.mrb[0].mxu0
      %v339 = vadd.f32 0.0, %v338
      %v340 = vpop.f32.mrb[0].mxu0
      %v341 = vadd.f32 0.0, %v340
      %342 = vmatprep.mubr.f32.mxu0 0.0
      %343 = vmatmul.mubr.f32.gmra.mrb[0].mxu0 %v254
      %v344 = vpop.f32.mrb[0].mxu0
      %v345 = vadd.f32 0.0, %v344
      %v346 = vpop.f32.mrb[0].mxu0
      %v347 = vadd.f32 0.0, %v346
      %348 = vmatprep.mubr.f32.mxu0 0.0
      %349 = vmatmul.mubr.f32.gmra.mrb[0].mxu0 %v255
      %v350 = vpop.f32.mrb[0].mxu0
      %v351 = vadd.f32 0.0, %v350
      %v352 = vpop.f32.mrb[0].mxu0
      %v353 = vadd.f32 0.0, %v352
      %354 = vmatprep.mubr.f32.mxu0 0.0
      %355 = vmatmul.mubr.f32.gmra.mrb[0].mxu0 %v256
      %v356 = vpop.f32.mrb[0].mxu0
      %v357 = vadd.f32 0.0, %v356
      %v358 = vpop.f32.mrb[0].mxu0
      %v359 = vadd.f32 0.0, %v358
      %360 = vmatprep.mubr.f32.mxu0 0.0
      %361 = vmatmul.mubr.f32.gmra.mrb[0].mxu0 %v257
      %v362 = vpop.f32.mrb[0].mxu0
      %v363 = vadd.f32 0.0, %v362
      %v364 = vpop.f32.mrb[0].mxu0
      %v365 = vadd.f32 0.0, %v364
      %366 = vmatprep.mubr.f32.mxu0 0.0
      %367 = vmatmul.mubr.f32.gmra.mrb[0].mxu0 %v258
      %v368 = vpop.f32.mrb[0].mxu0
      %v369 = vadd.f32 0.0, %v368
      %v370 = vpop.f32.mrb[0].mxu0
      %v371 = vadd.f32 0.0, %v370
      %372 = vmatprep.mubr.f32.mxu0 0.0
      %373 = vmatmul.mubr.f32.gmra.mrb[0].mxu0 %v259
      %v374 = vpop.f32.mrb[0].mxu0
      %v375 = vadd.f32 0.0, %v374
      %v376 = vpop.f32.mrb[0].mxu0
      %v377 = vadd.f32 0.0, %v376
      %378 = vdwg.mxu0
      %v379 = vpack.c.bf16 %v333, %v327
      %v380 = vpack.c.bf16 %v335, %v329
      %v381 = vpack.c.bf16 %v345, %v339
      %v382 = vpack.c.bf16 %v347, %v341
      %v383 = vpack.c.bf16 %v357, %v351
      %v384 = vpack.c.bf16 %v359, %v353
      %v385 = vpack.c.bf16 %v369, %v363
      %v386 = vpack.c.bf16 %v371, %v365
      %v387 = vpack.c.bf16 %v375, %v375
      %v388 = vpack.c.bf16 %v377, %v377
      %v399 = vunpack.c.l.b16 %v379
      %v400 = vunpack.c.l.b16 %v380
      %v401 = vunpack.c.h.b16 %v379
      %v402 = vunpack.c.h.b16 %v380
      %v403 = vunpack.c.l.b16 %v381
      %v404 = vunpack.c.l.b16 %v382
      %v405 = vunpack.c.h.b16 %v381
      %v406 = vunpack.c.h.b16 %v382
      %v407 = vunpack.c.l.b16 %v383
      %v408 = vunpack.c.l.b16 %v384
      %v409 = vunpack.c.h.b16 %v383
      %v410 = vunpack.c.h.b16 %v384
      %v411 = vunpack.c.l.b16 %v385
      %v412 = vunpack.c.l.b16 %v386
      %v413 = vunpack.c.h.b16 %v385
      %v414 = vunpack.c.h.b16 %v386
      %v415 = vunpack.c.l.b16 %v387
      %v416 = vunpack.c.l.b16 %v388
      %v417 = vpack.c.b16 %v400, %v399
      %v418 = vpack.c.b16 %v402, %v401
      %v419 = vpack.c.b16 %v404, %v403
      %v420 = vpack.c.b16 %v406, %v405
      %v421 = vpack.c.b16 %v408, %v407
      %v422 = vpack.c.b16 %v410, %v409
      %v423 = vpack.c.b16 %v412, %v411
      %v424 = vpack.c.b16 %v414, %v413
      %v425 = vpack.c.b16 %v416, %v415
      %435 = vst [vmem:[%s210] sm:$0xff] %v417
      %436 = vst [vmem:[%s210 + $0x8] sm:$0xff] %v418
      %437 = vst [vmem:[%s210 + $0x10] sm:$0xff] %v419
      %438 = vst [vmem:[%s210 + $0x18] sm:$0xff] %v420
      %439 = vst [vmem:[%s210 + $0x20] sm:$0xff] %v421
      %440 = vst [vmem:[%s210 + $0x28] sm:$0xff] %v422
      %441 = vst [vmem:[%s210 + $0x30] sm:$0xff] %v423
      %442 = vst [vmem:[%s210 + $0x38] sm:$0xff] %v424
      %vm443 = vcmask 1040384
      %vm444 = vsmask.f32 256
      %vm445 = vmand %vm443, %vm444
      %vm446 = vcmask 1044484
      %vm447 = vsmask.f32 4352
      %vm448 = vmand %vm446, %vm447
      %vm449 = vmor %vm448, %vm445
      %v450 = vld [vmem:[%s210 + $0x40] sm:$0x11]
      %v451 = vsel %vm449, %v425, %v450
      %452 = vst [vmem:[%s210 + $0x40] sm:$0x11] %v451
      %v453 = vadd.f32 %v327, %v333
      %v454 = vadd.f32 %v453, %v339
      %v455 = vadd.f32 %v454, %v345
      %v456 = vadd.f32 %v455, %v351
      %v457 = vadd.f32 %v456, %v357
      %v458 = vadd.f32 %v457, %v363
      %v459 = vadd.f32 %v458, %v369
      %vm460 = vcmask 1040384
      %v461 = vsel %vm460, %v375, 0.0
      %v462 = vadd.f32 %v459, %v461
      %v463 = vrot.slane %v462, 4
      %v464 = vadd.f32 %v462, %v463
      %v465 = vrot.slane %v464, 2
      %v466 = vadd.f32 %v464, %v465
      %v467 = vrot.slane %v466, 1
      %v468 = vadd.f32 %v466, %v467
      %v469 = vadd.f32 %v329, %v335
      %v470 = vadd.f32 %v469, %v341
      %v471 = vadd.f32 %v470, %v347
      %v472 = vadd.f32 %v471, %v353
      %v473 = vadd.f32 %v472, %v359
      %v474 = vadd.f32 %v473, %v365
      %v475 = vadd.f32 %v474, %v371
      %v476 = vsel %vm460, %v377, 0.0
      %v477 = vadd.f32 %v475, %v476
      %v478 = vrot.slane %v477, 4
      %v479 = vadd.f32 %v477, %v478
      %v480 = vrot.slane %v479, 2
      %v481 = vadd.f32 %v479, %v480
      %v482 = vrot.slane %v481, 1
      %v483 = vadd.f32 %v481, %v482
      %v484 = vadd.f32 %v468, 0.0
      %v485 = vadd.f32 %v483, 0.0
      %v486 = vmul.f32 %v327, %v327
      %v487 = vmul.f32 %v329, %v329
      %v488 = vmul.f32 %v333, %v333
      %v489 = vmul.f32 %v335, %v335
      %v490 = vmul.f32 %v339, %v339
      %v491 = vmul.f32 %v341, %v341
      %v492 = vmul.f32 %v345, %v345
      %v493 = vmul.f32 %v347, %v347
      %v494 = vmul.f32 %v351, %v351
      %v495 = vmul.f32 %v353, %v353
      %v496 = vmul.f32 %v357, %v357
      %v497 = vmul.f32 %v359, %v359
      %v498 = vmul.f32 %v363, %v363
      %v499 = vmul.f32 %v365, %v365
      %v500 = vmul.f32 %v369, %v369
      %v501 = vmul.f32 %v371, %v371
      %v502 = vmul.f32 %v375, %v375
      %v503 = vmul.f32 %v377, %v377
      %v504 = vadd.f32 %v486, %v488
      %v505 = vadd.f32 %v504, %v490
      %v506 = vadd.f32 %v505, %v492
      %v507 = vadd.f32 %v506, %v494
      %v508 = vadd.f32 %v507, %v496
      %v509 = vadd.f32 %v508, %v498
      %v510 = vadd.f32 %v509, %v500
      %v511 = vsel %vm460, %v502, 0.0
      %v512 = vadd.f32 %v510, %v511
      %v513 = vrot.slane %v512, 4
      %v514 = vadd.f32 %v512, %v513
      %v515 = vrot.slane %v514, 2
      %v516 = vadd.f32 %v514, %v515
      %v517 = vrot.slane %v516, 1
      %v518 = vadd.f32 %v516, %v517
      %v519 = vadd.f32 %v487, %v489
      %v520 = vadd.f32 %v519, %v491
      %v521 = vadd.f32 %v520, %v493
      %v522 = vadd.f32 %v521, %v495
      %v523 = vadd.f32 %v522, %v497
      %v524 = vadd.f32 %v523, %v499
      %v525 = vadd.f32 %v524, %v501
      %v526 = vsel %vm460, %v503, 0.0
      %v527 = vadd.f32 %v525, %v526
      %v528 = vrot.slane %v527, 4
      %v529 = vadd.f32 %v527, %v528
      %v530 = vrot.slane %v529, 2
      %v531 = vadd.f32 %v529, %v530
      %v532 = vrot.slane %v531, 1
      %v533 = vadd.f32 %v531, %v532
      %v534 = vadd.f32 %v518, 0.0
      %v535 = vadd.f32 %v533, 0.0
      %s536 = scalar_lea.vmem %s205, 72
      %v537 = vld [vmem:[%s536] sm:$0xff]
      %v538 = vld [vmem:[%s536 + $0x8] sm:$0xff]
      %v539 = vld [vmem:[%s536 + $0x10] sm:$0xff]
      %v540 = vld [vmem:[%s536 + $0x18] sm:$0xff]
      %v541 = vld [vmem:[%s536 + $0x20] sm:$0xff]
      %v542 = vld [vmem:[%s536 + $0x28] sm:$0xff]
      %v543 = vld [vmem:[%s536 + $0x30] sm:$0xff]
      %v544 = vld [vmem:[%s536 + $0x38] sm:$0xff]
      %v545 = vld [vmem:[%s536 + $0x40] sm:$0x1]
      %546 = vmatprep.subr.mxu0 %v220
      %547 = vmatpush1.msra.mxu0 %v219
      %548 = vmatprep.subr.mxu0 %v222
      %549 = vmatpush1.msra.mxu0 %v221
      %550 = vmatprep.subr.mxu0 %v224
      %551 = vmatpush1.msra.mxu0 %v223
      %552 = vmatprep.subr.mxu0 %v226
      %553 = vmatpush1.msra.mxu0 %v225
      %554 = vmatprep.subr.mxu0 %v228
      %555 = vmatpush1.msra.mxu0 %v227
      %556 = vmatprep.subr.mxu0 %v230
      %557 = vmatpush1.msra.mxu0 %v229
      %558 = vmatprep.subr.mxu0 %v232
      %559 = vmatpush1.msra.mxu0 %v231
      %560 = vmatprep.subr.mxu0 %v234
      %561 = vmatpush1.msra.mxu0 %v233
      %562 = vmatprep.subr.mxu0 %v236
      %563 = vmatpush1.msra.mxu0 %v235
      %564 = vmatprep.subr.mxu0 %v238
      %565 = vmatpush1.msra.mxu0 %v237
      %566 = vmatprep.subr.mxu0 %v240
      %567 = vmatpush1.msra.mxu0 %v239
      %568 = vmatprep.subr.mxu0 %v242
      %569 = vmatpush1.msra.mxu0 %v241
      %570 = vmatprep.subr.mxu0 %v244
      %571 = vmatpush1.msra.mxu0 %v243
      %572 = vmatprep.subr.mxu0 %v246
      %573 = vmatpush1.msra.mxu0 %v245
      %574 = vmatprep.subr.mxu0 %v248
      %575 = vmatpush1.msra.mxu0 %v247
      %576 = vmatprep.subr.mxu0 %v250
      %577 = vmatpush1.msra.mxu0 %v249
      %578 = vmatprep.subr.mxu0 0.0
      %579 = vmatpush1.msra.mxu0 0.0
      %580 = vmatprep.subr.mxu0 0.0
      %581 = vmatpush1.msra.mxu0 0.0
      %582 = vmatprep.subr.mxu0 0.0
      %583 = vmatpush1.msra.mxu0 0.0
      %584 = vmatprep.subr.mxu0 0.0
      %585 = vmatpush1.msra.mxu0 0.0
      %586 = vmatprep.subr.mxu0 0.0
      %587 = vmatpush1.msra.mxu0 0.0
      %588 = vmatprep.subr.mxu0 0.0
      %589 = vmatpush1.msra.mxu0 0.0
      %590 = vmatprep.subr.mxu0 0.0
      %591 = vmatpush1.msra.mxu0 0.0
      %592 = vmatprep.subr.mxu0 0.0
      %593 = vmatpush1.msra.mxu0 0.0
      %594 = vmatprep.subr.mxu0 0.0
      %595 = vmatpush1.msra.mxu0 0.0
      %596 = vmatprep.subr.mxu0 0.0
      %597 = vmatpush1.msra.mxu0 0.0
      %598 = vmatprep.subr.mxu0 0.0
      %599 = vmatpush1.msra.mxu0 0.0
      %600 = vmatprep.subr.mxu0 0.0
      %601 = vmatpush1.msra.mxu0 0.0
      %602 = vmatprep.subr.mxu0 0.0
      %603 = vmatpush1.msra.mxu0 0.0
      %604 = vmatprep.subr.mxu0 0.0
      %605 = vmatpush1.msra.mxu0 0.0
      %606 = vmatprep.subr.mxu0 0.0
      %607 = vmatpush1.msra.mxu0 0.0
      %608 = vmatprep.subr.mxu0 0.0
      %609 = vmatpush1.msra.mxu0 0.0
      %610 = vmatprep.mubr.f32.mxu0 0.0
      %611 = vmatmul.mubr.f32.gmra.mrb[0].mxu0 %v537
      %v612 = vpop.f32.mrb[0].mxu0
      %v613 = vadd.f32 0.0, %v612
      %v614 = vpop.f32.mrb[0].mxu0
      %v615 = vadd.f32 0.0, %v614
      %616 = vmatprep.mubr.f32.mxu0 0.0
      %617 = vmatmul.mubr.f32.gmra.mrb[0].mxu0 %v538
      %v618 = vpop.f32.mrb[0].mxu0
      %v619 = vadd.f32 0.0, %v618
      %v620 = vpop.f32.mrb[0].mxu0
      %v621 = vadd.f32 0.0, %v620
      %622 = vmatprep.mubr.f32.mxu0 0.0
      %623 = vmatmul.mubr.f32.gmra.mrb[0].mxu0 %v539
      %v624 = vpop.f32.mrb[0].mxu0
      %v625 = vadd.f32 0.0, %v624
      %v626 = vpop.f32.mrb[0].mxu0
      %v627 = vadd.f32 0.0, %v626
      %628 = vmatprep.mubr.f32.mxu0 0.0
      %629 = vmatmul.mubr.f32.gmra.mrb[0].mxu0 %v540
      %v630 = vpop.f32.mrb[0].mxu0
      %v631 = vadd.f32 0.0, %v630
      %v632 = vpop.f32.mrb[0].mxu0
      %v633 = vadd.f32 0.0, %v632
      %634 = vmatprep.mubr.f32.mxu0 0.0
      %635 = vmatmul.mubr.f32.gmra.mrb[0].mxu0 %v541
      %v636 = vpop.f32.mrb[0].mxu0
      %v637 = vadd.f32 0.0, %v636
      %v638 = vpop.f32.mrb[0].mxu0
      %v639 = vadd.f32 0.0, %v638
      %640 = vmatprep.mubr.f32.mxu0 0.0
      %641 = vmatmul.mubr.f32.gmra.mrb[0].mxu0 %v542
      %v642 = vpop.f32.mrb[0].mxu0
      %v643 = vadd.f32 0.0, %v642
      %v644 = vpop.f32.mrb[0].mxu0
      %v645 = vadd.f32 0.0, %v644
      %646 = vmatprep.mubr.f32.mxu0 0.0
      %647 = vmatmul.mubr.f32.gmra.mrb[0].mxu0 %v543
      %v648 = vpop.f32.mrb[0].mxu0
      %v649 = vadd.f32 0.0, %v648
      %v650 = vpop.f32.mrb[0].mxu0
      %v651 = vadd.f32 0.0, %v650
      %652 = vmatprep.mubr.f32.mxu0 0.0
      %653 = vmatmul.mubr.f32.gmra.mrb[0].mxu0 %v544
      %v654 = vpop.f32.mrb[0].mxu0
      %v655 = vadd.f32 0.0, %v654
      %v656 = vpop.f32.mrb[0].mxu0
      %v657 = vadd.f32 0.0, %v656
      %658 = vmatprep.mubr.f32.mxu0 0.0
      %659 = vmatmul.mubr.f32.gmra.mrb[0].mxu0 %v545
      %v660 = vpop.f32.mrb[0].mxu0
      %v661 = vadd.f32 0.0, %v660
      %v662 = vpop.f32.mrb[0].mxu0
      %v663 = vadd.f32 0.0, %v662
      %664 = vdwg.mxu0
      %v665 = vpack.c.bf16 %v619, %v613
      %v666 = vpack.c.bf16 %v621, %v615
      %v667 = vpack.c.bf16 %v631, %v625
      %v668 = vpack.c.bf16 %v633, %v627
      %v669 = vpack.c.bf16 %v643, %v637
      %v670 = vpack.c.bf16 %v645, %v639
      %v671 = vpack.c.bf16 %v655, %v649
      %v672 = vpack.c.bf16 %v657, %v651
      %v673 = vpack.c.bf16 %v661, %v661
      %v674 = vpack.c.bf16 %v663, %v663
      %v685 = vunpack.c.l.b16 %v665
      %v686 = vunpack.c.l.b16 %v666
      %v687 = vunpack.c.h.b16 %v665
      %v688 = vunpack.c.h.b16 %v666
      %v689 = vunpack.c.l.b16 %v667
      %v690 = vunpack.c.l.b16 %v668
      %v691 = vunpack.c.h.b16 %v667
      %v692 = vunpack.c.h.b16 %v668
      %v693 = vunpack.c.l.b16 %v669
      %v694 = vunpack.c.l.b16 %v670
      %v695 = vunpack.c.h.b16 %v669
      %v696 = vunpack.c.h.b16 %v670
      %v697 = vunpack.c.l.b16 %v671
      %v698 = vunpack.c.l.b16 %v672
      %v699 = vunpack.c.h.b16 %v671
      %v700 = vunpack.c.h.b16 %v672
      %v701 = vunpack.c.l.b16 %v673
      %v702 = vunpack.c.l.b16 %v674
      %v703 = vpack.c.b16 %v686, %v685
      %v704 = vpack.c.b16 %v688, %v687
      %v705 = vpack.c.b16 %v690, %v689
      %v706 = vpack.c.b16 %v692, %v691
      %v707 = vpack.c.b16 %v694, %v693
      %v708 = vpack.c.b16 %v696, %v695
      %v709 = vpack.c.b16 %v698, %v697
      %v710 = vpack.c.b16 %v700, %v699
      %v711 = vpack.c.b16 %v702, %v701
      %s721 = scalar_lea.vmem %s210, 72
      %722 = vst [vmem:[%s721] sm:$0xff] %v703
      %723 = vst [vmem:[%s721 + $0x8] sm:$0xff] %v704
      %724 = vst [vmem:[%s721 + $0x10] sm:$0xff] %v705
      %725 = vst [vmem:[%s721 + $0x18] sm:$0xff] %v706
      %726 = vst [vmem:[%s721 + $0x20] sm:$0xff] %v707
      %727 = vst [vmem:[%s721 + $0x28] sm:$0xff] %v708
      %728 = vst [vmem:[%s721 + $0x30] sm:$0xff] %v709
      %729 = vst [vmem:[%s721 + $0x38] sm:$0xff] %v710
      %v730 = vld [vmem:[%s721 + $0x40] sm:$0x11]
      %v731 = vsel %vm449, %v711, %v730
      %732 = vst [vmem:[%s721 + $0x40] sm:$0x11] %v731
      %v733 = vadd.f32 %v613, %v619
      %v734 = vadd.f32 %v733, %v625
      %v735 = vadd.f32 %v734, %v631
      %v736 = vadd.f32 %v735, %v637
      %v737 = vadd.f32 %v736, %v643
      %v738 = vadd.f32 %v737, %v649
      %v739 = vadd.f32 %v738, %v655
      %v740 = vsel %vm460, %v661, 0.0
      %v741 = vadd.f32 %v739, %v740
      %v742 = vrot.slane %v741, 4
      %v743 = vadd.f32 %v741, %v742
      %v744 = vrot.slane %v743, 2
      %v745 = vadd.f32 %v743, %v744
      %v746 = vrot.slane %v745, 1
      %v747 = vadd.f32 %v745, %v746
      %v748 = vadd.f32 %v615, %v621
      %v749 = vadd.f32 %v748, %v627
      %v750 = vadd.f32 %v749, %v633
      %v751 = vadd.f32 %v750, %v639
      %v752 = vadd.f32 %v751, %v645
      %v753 = vadd.f32 %v752, %v651
      %v754 = vadd.f32 %v753, %v657
      %v755 = vsel %vm460, %v663, 0.0
      %v756 = vadd.f32 %v754, %v755
      %v757 = vrot.slane %v756, 4
      %v758 = vadd.f32 %v756, %v757
      %v759 = vrot.slane %v758, 2
      %v760 = vadd.f32 %v758, %v759
      %v761 = vrot.slane %v760, 1
      %v762 = vadd.f32 %v760, %v761
      %v763 = vadd.f32 %v484, %v747
      %v764 = vadd.f32 %v485, %v762
      %v765 = vmul.f32 %v613, %v613
      %v766 = vmul.f32 %v615, %v615
      %v767 = vmul.f32 %v619, %v619
      %v768 = vmul.f32 %v621, %v621
      %v769 = vmul.f32 %v625, %v625
      %v770 = vmul.f32 %v627, %v627
      %v771 = vmul.f32 %v631, %v631
      %v772 = vmul.f32 %v633, %v633
      %v773 = vmul.f32 %v637, %v637
      %v774 = vmul.f32 %v639, %v639
      %v775 = vmul.f32 %v643, %v643
      %v776 = vmul.f32 %v645, %v645
      %v777 = vmul.f32 %v649, %v649
      %v778 = vmul.f32 %v651, %v651
      %v779 = vmul.f32 %v655, %v655
      %v780 = vmul.f32 %v657, %v657
      %v781 = vmul.f32 %v661, %v661
      %v782 = vmul.f32 %v663, %v663
      %v783 = vadd.f32 %v765, %v767
      %v784 = vadd.f32 %v783, %v769
      %v785 = vadd.f32 %v784, %v771
      %v786 = vadd.f32 %v785, %v773
      %v787 = vadd.f32 %v786, %v775
      %v788 = vadd.f32 %v787, %v777
      %v789 = vadd.f32 %v788, %v779
      %v790 = vsel %vm460, %v781, 0.0
      %v791 = vadd.f32 %v789, %v790
      %v792 = vrot.slane %v791, 4
      %v793 = vadd.f32 %v791, %v792
      %v794 = vrot.slane %v793, 2
      %v795 = vadd.f32 %v793, %v794
      %v796 = vrot.slane %v795, 1
      %v797 = vadd.f32 %v795, %v796
      %v798 = vadd.f32 %v766, %v768
      %v799 = vadd.f32 %v798, %v770
      %v800 = vadd.f32 %v799, %v772
      %v801 = vadd.f32 %v800, %v774
      %v802 = vadd.f32 %v801, %v776
      %v803 = vadd.f32 %v802, %v778
      %v804 = vadd.f32 %v803, %v780
      %v805 = vsel %vm460, %v782, 0.0
      %v806 = vadd.f32 %v804, %v805
      %v807 = vrot.slane %v806, 4
      %v808 = vadd.f32 %v806, %v807
      %v809 = vrot.slane %v808, 2
      %v810 = vadd.f32 %v808, %v809
      %v811 = vrot.slane %v810, 1
      %v812 = vadd.f32 %v810, %v811
      %v813 = vadd.f32 %v534, %v797
      %v814 = vadd.f32 %v535, %v812
      %s815 = scalar_lea.vmem %s205, 144
      %v816 = vld [vmem:[%s815] sm:$0xff]
      %v817 = vld [vmem:[%s815 + $0x8] sm:$0xff]
      %v818 = vld [vmem:[%s815 + $0x10] sm:$0xff]
      %v819 = vld [vmem:[%s815 + $0x18] sm:$0xff]
      %v820 = vld [vmem:[%s815 + $0x20] sm:$0xff]
      %v821 = vld [vmem:[%s815 + $0x28] sm:$0xff]
      %v822 = vld [vmem:[%s815 + $0x30] sm:$0xff]
      %v823 = vld [vmem:[%s815 + $0x38] sm:$0xff]
      %v824 = vld [vmem:[%s815 + $0x40] sm:$0x1]
      %825 = vmatprep.subr.mxu0 %v220
      %826 = vmatpush1.msra.mxu0 %v219
      %827 = vmatprep.subr.mxu0 %v222
      %828 = vmatpush1.msra.mxu0 %v221
      %829 = vmatprep.subr.mxu0 %v224
      %830 = vmatpush1.msra.mxu0 %v223
      %831 = vmatprep.subr.mxu0 %v226
      %832 = vmatpush1.msra.mxu0 %v225
      %833 = vmatprep.subr.mxu0 %v228
      %834 = vmatpush1.msra.mxu0 %v227
      %835 = vmatprep.subr.mxu0 %v230
      %836 = vmatpush1.msra.mxu0 %v229
      %837 = vmatprep.subr.mxu0 %v232
      %838 = vmatpush1.msra.mxu0 %v231
      %839 = vmatprep.subr.mxu0 %v234
      %840 = vmatpush1.msra.mxu0 %v233
      %841 = vmatprep.subr.mxu0 %v236
      %842 = vmatpush1.msra.mxu0 %v235
      %843 = vmatprep.subr.mxu0 %v238
      %844 = vmatpush1.msra.mxu0 %v237
      %845 = vmatprep.subr.mxu0 %v240
      %846 = vmatpush1.msra.mxu0 %v239
      %847 = vmatprep.subr.mxu0 %v242
      %848 = vmatpush1.msra.mxu0 %v241
      %849 = vmatprep.subr.mxu0 %v244
      %850 = vmatpush1.msra.mxu0 %v243
      %851 = vmatprep.subr.mxu0 %v246
      %852 = vmatpush1.msra.mxu0 %v245
      %853 = vmatprep.subr.mxu0 %v248
      %854 = vmatpush1.msra.mxu0 %v247
      %855 = vmatprep.subr.mxu0 %v250
      %856 = vmatpush1.msra.mxu0 %v249
      %857 = vmatprep.subr.mxu0 0.0
      %858 = vmatpush1.msra.mxu0 0.0
      %859 = vmatprep.subr.mxu0 0.0
      %860 = vmatpush1.msra.mxu0 0.0
      %861 = vmatprep.subr.mxu0 0.0
      %862 = vmatpush1.msra.mxu0 0.0
      %863 = vmatprep.subr.mxu0 0.0
      %864 = vmatpush1.msra.mxu0 0.0
      %865 = vmatprep.subr.mxu0 0.0
      %866 = vmatpush1.msra.mxu0 0.0
      %867 = vmatprep.subr.mxu0 0.0
      %868 = vmatpush1.msra.mxu0 0.0
      %869 = vmatprep.subr.mxu0 0.0
      %870 = vmatpush1.msra.mxu0 0.0
      %871 = vmatprep.subr.mxu0 0.0
      %872 = vmatpush1.msra.mxu0 0.0
      %873 = vmatprep.subr.mxu0 0.0
      %874 = vmatpush1.msra.mxu0 0.0
      %875 = vmatprep.subr.mxu0 0.0
      %876 = vmatpush1.msra.mxu0 0.0
      %877 = vmatprep.subr.mxu0 0.0
      %878 = vmatpush1.msra.mxu0 0.0
      %879 = vmatprep.subr.mxu0 0.0
      %880 = vmatpush1.msra.mxu0 0.0
      %881 = vmatprep.subr.mxu0 0.0
      %882 = vmatpush1.msra.mxu0 0.0
      %883 = vmatprep.subr.mxu0 0.0
      %884 = vmatpush1.msra.mxu0 0.0
      %885 = vmatprep.subr.mxu0 0.0
      %886 = vmatpush1.msra.mxu0 0.0
      %887 = vmatprep.subr.mxu0 0.0
      %888 = vmatpush1.msra.mxu0 0.0
      %889 = vmatprep.mubr.f32.mxu0 0.0
      %890 = vmatmul.mubr.f32.gmra.mrb[0].mxu0 %v816
      %v891 = vpop.f32.mrb[0].mxu0
      %v892 = vadd.f32 0.0, %v891
      %v893 = vpop.f32.mrb[0].mxu0
      %v894 = vadd.f32 0.0, %v893
      %895 = vmatprep.mubr.f32.mxu0 0.0
      %896 = vmatmul.mubr.f32.gmra.mrb[0].mxu0 %v817
      %v897 = vpop.f32.mrb[0].mxu0
      %v898 = vadd.f32 0.0, %v897
      %v899 = vpop.f32.mrb[0].mxu0
      %v900 = vadd.f32 0.0, %v899
      %901 = vmatprep.mubr.f32.mxu0 0.0
      %902 = vmatmul.mubr.f32.gmra.mrb[0].mxu0 %v818
      %v903 = vpop.f32.mrb[0].mxu0
      %v904 = vadd.f32 0.0, %v903
      %v905 = vpop.f32.mrb[0].mxu0
      %v906 = vadd.f32 0.0, %v905
      %907 = vmatprep.mubr.f32.mxu0 0.0
      %908 = vmatmul.mubr.f32.gmra.mrb[0].mxu0 %v819
      %v909 = vpop.f32.mrb[0].mxu0
      %v910 = vadd.f32 0.0, %v909
      %v911 = vpop.f32.mrb[0].mxu0
      %v912 = vadd.f32 0.0, %v911
      %913 = vmatprep.mubr.f32.mxu0 0.0
      %914 = vmatmul.mubr.f32.gmra.mrb[0].mxu0 %v820
      %v915 = vpop.f32.mrb[0].mxu0
      %v916 = vadd.f32 0.0, %v915
      %v917 = vpop.f32.mrb[0].mxu0
      %v918 = vadd.f32 0.0, %v917
      %919 = vmatprep.mubr.f32.mxu0 0.0
      %920 = vmatmul.mubr.f32.gmra.mrb[0].mxu0 %v821
      %v921 = vpop.f32.mrb[0].mxu0
      %v922 = vadd.f32 0.0, %v921
      %v923 = vpop.f32.mrb[0].mxu0
      %v924 = vadd.f32 0.0, %v923
      %925 = vmatprep.mubr.f32.mxu0 0.0
      %926 = vmatmul.mubr.f32.gmra.mrb[0].mxu0 %v822
      %v927 = vpop.f32.mrb[0].mxu0
      %v928 = vadd.f32 0.0, %v927
      %v929 = vpop.f32.mrb[0].mxu0
      %v930 = vadd.f32 0.0, %v929
      %931 = vmatprep.mubr.f32.mxu0 0.0
      %932 = vmatmul.mubr.f32.gmra.mrb[0].mxu0 %v823
      %v933 = vpop.f32.mrb[0].mxu0
      %v934 = vadd.f32 0.0, %v933
      %v935 = vpop.f32.mrb[0].mxu0
      %v936 = vadd.f32 0.0, %v935
      %937 = vmatprep.mubr.f32.mxu0 0.0
      %938 = vmatmul.mubr.f32.gmra.mrb[0].mxu0 %v824
      %v939 = vpop.f32.mrb[0].mxu0
      %v940 = vadd.f32 0.0, %v939
      %v941 = vpop.f32.mrb[0].mxu0
      %v942 = vadd.f32 0.0, %v941
      %943 = vdwg.mxu0
      %v944 = vpack.c.bf16 %v898, %v892
      %v945 = vpack.c.bf16 %v900, %v894
      %v946 = vpack.c.bf16 %v910, %v904
      %v947 = vpack.c.bf16 %v912, %v906
      %v948 = vpack.c.bf16 %v922, %v916
      %v949 = vpack.c.bf16 %v924, %v918
      %v950 = vpack.c.bf16 %v934, %v928
      %v951 = vpack.c.bf16 %v936, %v930
      %v952 = vpack.c.bf16 %v940, %v940
      %v953 = vpack.c.bf16 %v942, %v942
      %v964 = vunpack.c.l.b16 %v944
      %v965 = vunpack.c.l.b16 %v945
      %v966 = vunpack.c.h.b16 %v944
      %v967 = vunpack.c.h.b16 %v945
      %v968 = vunpack.c.l.b16 %v946
      %v969 = vunpack.c.l.b16 %v947
      %v970 = vunpack.c.h.b16 %v946
      %v971 = vunpack.c.h.b16 %v947
      %v972 = vunpack.c.l.b16 %v948
      %v973 = vunpack.c.l.b16 %v949
      %v974 = vunpack.c.h.b16 %v948
      %v975 = vunpack.c.h.b16 %v949
      %v976 = vunpack.c.l.b16 %v950
      %v977 = vunpack.c.l.b16 %v951
      %v978 = vunpack.c.h.b16 %v950
      %v979 = vunpack.c.h.b16 %v951
      %v980 = vunpack.c.l.b16 %v952
      %v981 = vunpack.c.l.b16 %v953
      %v982 = vpack.c.b16 %v965, %v964
      %v983 = vpack.c.b16 %v967, %v966
      %v984 = vpack.c.b16 %v969, %v968
      %v985 = vpack.c.b16 %v971, %v970
      %v986 = vpack.c.b16 %v973, %v972
      %v987 = vpack.c.b16 %v975, %v974
      %v988 = vpack.c.b16 %v977, %v976
      %v989 = vpack.c.b16 %v979, %v978
      %v990 = vpack.c.b16 %v981, %v980
      %s1000 = scalar_lea.vmem %s210, 144
      %1001 = vst [vmem:[%s1000] sm:$0xff] %v982
      %1002 = vst [vmem:[%s1000 + $0x8] sm:$0xff] %v983
      %1003 = vst [vmem:[%s1000 + $0x10] sm:$0xff] %v984
      %1004 = vst [vmem:[%s1000 + $0x18] sm:$0xff] %v985
      %1005 = vst [vmem:[%s1000 + $0x20] sm:$0xff] %v986
      %1006 = vst [vmem:[%s1000 + $0x28] sm:$0xff] %v987
      %1007 = vst [vmem:[%s1000 + $0x30] sm:$0xff] %v988
      %1008 = vst [vmem:[%s1000 + $0x38] sm:$0xff] %v989
      %v1009 = vld [vmem:[%s1000 + $0x40] sm:$0x11]
      %v1010 = vsel %vm449, %v990, %v1009
      %1011 = vst [vmem:[%s1000 + $0x40] sm:$0x11] %v1010
      %v1012 = vadd.f32 %v892, %v898
      %v1013 = vadd.f32 %v1012, %v904
      %v1014 = vadd.f32 %v1013, %v910
      %v1015 = vadd.f32 %v1014, %v916
      %v1016 = vadd.f32 %v1015, %v922
      %v1017 = vadd.f32 %v1016, %v928
      %v1018 = vadd.f32 %v1017, %v934
      %v1019 = vsel %vm460, %v940, 0.0
      %v1020 = vadd.f32 %v1018, %v1019
      %v1021 = vrot.slane %v1020, 4
      %v1022 = vadd.f32 %v1020, %v1021
      %v1023 = vrot.slane %v1022, 2
      %v1024 = vadd.f32 %v1022, %v1023
      %v1025 = vrot.slane %v1024, 1
      %v1026 = vadd.f32 %v1024, %v1025
      %v1027 = vadd.f32 %v894, %v900
      %v1028 = vadd.f32 %v1027, %v906
      %v1029 = vadd.f32 %v1028, %v912
      %v1030 = vadd.f32 %v1029, %v918
      %v1031 = vadd.f32 %v1030, %v924
      %v1032 = vadd.f32 %v1031, %v930
      %v1033 = vadd.f32 %v1032, %v936
      %v1034 = vsel %vm460, %v942, 0.0
      %v1035 = vadd.f32 %v1033, %v1034
      %v1036 = vrot.slane %v1035, 4
      %v1037 = vadd.f32 %v1035, %v1036
      %v1038 = vrot.slane %v1037, 2
      %v1039 = vadd.f32 %v1037, %v1038
      %v1040 = vrot.slane %v1039, 1
      %v1041 = vadd.f32 %v1039, %v1040
      %v1042 = vadd.f32 %v763, %v1026
      %v1043 = vadd.f32 %v764, %v1041
      %v1044 = vmul.f32 %v892, %v892
      %v1045 = vmul.f32 %v894, %v894
      %v1046 = vmul.f32 %v898, %v898
      %v1047 = vmul.f32 %v900, %v900
      %v1048 = vmul.f32 %v904, %v904
      %v1049 = vmul.f32 %v906, %v906
      %v1050 = vmul.f32 %v910, %v910
      %v1051 = vmul.f32 %v912, %v912
      %v1052 = vmul.f32 %v916, %v916
      %v1053 = vmul.f32 %v918, %v918
      %v1054 = vmul.f32 %v922, %v922
      %v1055 = vmul.f32 %v924, %v924
      %v1056 = vmul.f32 %v928, %v928
      %v1057 = vmul.f32 %v930, %v930
      %v1058 = vmul.f32 %v934, %v934
      %v1059 = vmul.f32 %v936, %v936
      %v1060 = vmul.f32 %v940, %v940
      %v1061 = vmul.f32 %v942, %v942
      %v1062 = vadd.f32 %v1044, %v1046
      %v1063 = vadd.f32 %v1062, %v1048
      %v1064 = vadd.f32 %v1063, %v1050
      %v1065 = vadd.f32 %v1064, %v1052
      %v1066 = vadd.f32 %v1065, %v1054
      %v1067 = vadd.f32 %v1066, %v1056
      %v1068 = vadd.f32 %v1067, %v1058
      %v1069 = vsel %vm460, %v1060, 0.0
      %v1070 = vadd.f32 %v1068, %v1069
      %v1071 = vrot.slane %v1070, 4
      %v1072 = vadd.f32 %v1070, %v1071
      %v1073 = vrot.slane %v1072, 2
      %v1074 = vadd.f32 %v1072, %v1073
      %v1075 = vrot.slane %v1074, 1
      %v1076 = vadd.f32 %v1074, %v1075
      %v1077 = vadd.f32 %v1045, %v1047
      %v1078 = vadd.f32 %v1077, %v1049
      %v1079 = vadd.f32 %v1078, %v1051
      %v1080 = vadd.f32 %v1079, %v1053
      %v1081 = vadd.f32 %v1080, %v1055
      %v1082 = vadd.f32 %v1081, %v1057
      %v1083 = vadd.f32 %v1082, %v1059
      %v1084 = vsel %vm460, %v1061, 0.0
      %v1085 = vadd.f32 %v1083, %v1084
      %v1086 = vrot.slane %v1085, 4
      %v1087 = vadd.f32 %v1085, %v1086
      %v1088 = vrot.slane %v1087, 2
      %v1089 = vadd.f32 %v1087, %v1088
      %v1090 = vrot.slane %v1089, 1
      %v1091 = vadd.f32 %v1089, %v1090
      %v1092 = vadd.f32 %v813, %v1076
      %v1093 = vadd.f32 %v814, %v1091
      %s1094 = scalar_lea.vmem %s205, 216
      %v1095 = vld [vmem:[%s1094] sm:$0xff]
      %v1096 = vld [vmem:[%s1094 + $0x8] sm:$0xff]
      %v1097 = vld [vmem:[%s1094 + $0x10] sm:$0xff]
      %v1098 = vld [vmem:[%s1094 + $0x18] sm:$0xff]
      %v1099 = vld [vmem:[%s1094 + $0x20] sm:$0xff]
      %v1100 = vld [vmem:[%s1094 + $0x28] sm:$0xff]
      %v1101 = vld [vmem:[%s1094 + $0x30] sm:$0xff]
      %v1102 = vld [vmem:[%s1094 + $0x38] sm:$0xff]
      %v1103 = vld [vmem:[%s1094 + $0x40] sm:$0x1]
      %1104 = vmatprep.subr.mxu0 %v220
      %1105 = vmatpush1.msra.mxu0 %v219
      %1106 = vmatprep.subr.mxu0 %v222
      %1107 = vmatpush1.msra.mxu0 %v221
      %1108 = vmatprep.subr.mxu0 %v224
      %1109 = vmatpush1.msra.mxu0 %v223
      %1110 = vmatprep.subr.mxu0 %v226
      %1111 = vmatpush1.msra.mxu0 %v225
      %1112 = vmatprep.subr.mxu0 %v228
      %1113 = vmatpush1.msra.mxu0 %v227
      %1114 = vmatprep.subr.mxu0 %v230
      %1115 = vmatpush1.msra.mxu0 %v229
      %1116 = vmatprep.subr.mxu0 %v232
      %1117 = vmatpush1.msra.mxu0 %v231
      %1118 = vmatprep.subr.mxu0 %v234
      %1119 = vmatpush1.msra.mxu0 %v233
      %1120 = vmatprep.subr.mxu0 %v236
      %1121 = vmatpush1.msra.mxu0 %v235
      %1122 = vmatprep.subr.mxu0 %v238
      %1123 = vmatpush1.msra.mxu0 %v237
      %1124 = vmatprep.subr.mxu0 %v240
      %1125 = vmatpush1.msra.mxu0 %v239
      %1126 = vmatprep.subr.mxu0 %v242
      %1127 = vmatpush1.msra.mxu0 %v241
      %1128 = vmatprep.subr.mxu0 %v244
      %1129 = vmatpush1.msra.mxu0 %v243
      %1130 = vmatprep.subr.mxu0 %v246
      %1131 = vmatpush1.msra.mxu0 %v245
      %1132 = vmatprep.subr.mxu0 %v248
      %1133 = vmatpush1.msra.mxu0 %v247
      %1134 = vmatprep.subr.mxu0 %v250
      %1135 = vmatpush1.msra.mxu0 %v249
      %1136 = vmatprep.subr.mxu0 0.0
      %1137 = vmatpush1.msra.mxu0 0.0
      %1138 = vmatprep.subr.mxu0 0.0
      %1139 = vmatpush1.msra.mxu0 0.0
      %1140 = vmatprep.subr.mxu0 0.0
      %1141 = vmatpush1.msra.mxu0 0.0
      %1142 = vmatprep.subr.mxu0 0.0
      %1143 = vmatpush1.msra.mxu0 0.0
      %1144 = vmatprep.subr.mxu0 0.0
      %1145 = vmatpush1.msra.mxu0 0.0
      %1146 = vmatprep.subr.mxu0 0.0
      %1147 = vmatpush1.msra.mxu0 0.0
      %1148 = vmatprep.subr.mxu0 0.0
      %1149 = vmatpush1.msra.mxu0 0.0
      %1150 = vmatprep.subr.mxu0 0.0
      %1151 = vmatpush1.msra.mxu0 0.0
      %1152 = vmatprep.subr.mxu0 0.0
      %1153 = vmatpush1.msra.mxu0 0.0
      %1154 = vmatprep.subr.mxu0 0.0
      %1155 = vmatpush1.msra.mxu0 0.0
      %1156 = vmatprep.subr.mxu0 0.0
      %1157 = vmatpush1.msra.mxu0 0.0
      %1158 = vmatprep.subr.mxu0 0.0
      %1159 = vmatpush1.msra.mxu0 0.0
      %1160 = vmatprep.subr.mxu0 0.0
      %1161 = vmatpush1.msra.mxu0 0.0
      %1162 = vmatprep.subr.mxu0 0.0
      %1163 = vmatpush1.msra.mxu0 0.0
      %1164 = vmatprep.subr.mxu0 0.0
      %1165 = vmatpush1.msra.mxu0 0.0
      %1166 = vmatprep.subr.mxu0 0.0
      %1167 = vmatpush1.msra.mxu0 0.0
      %1168 = vmatprep.mubr.f32.mxu0 0.0
      %1169 = vmatmul.mubr.f32.gmra.mrb[0].mxu0 %v1095
      %v1170 = vpop.f32.mrb[0].mxu0
      %v1171 = vadd.f32 0.0, %v1170
      %v1172 = vpop.f32.mrb[0].mxu0
      %v1173 = vadd.f32 0.0, %v1172
      %1174 = vmatprep.mubr.f32.mxu0 0.0
      %1175 = vmatmul.mubr.f32.gmra.mrb[0].mxu0 %v1096
      %v1176 = vpop.f32.mrb[0].mxu0
      %v1177 = vadd.f32 0.0, %v1176
      %v1178 = vpop.f32.mrb[0].mxu0
      %v1179 = vadd.f32 0.0, %v1178
      %1180 = vmatprep.mubr.f32.mxu0 0.0
      %1181 = vmatmul.mubr.f32.gmra.mrb[0].mxu0 %v1097
      %v1182 = vpop.f32.mrb[0].mxu0
      %v1183 = vadd.f32 0.0, %v1182
      %v1184 = vpop.f32.mrb[0].mxu0
      %v1185 = vadd.f32 0.0, %v1184
      %1186 = vmatprep.mubr.f32.mxu0 0.0
      %1187 = vmatmul.mubr.f32.gmra.mrb[0].mxu0 %v1098
      %v1188 = vpop.f32.mrb[0].mxu0
      %v1189 = vadd.f32 0.0, %v1188
      %v1190 = vpop.f32.mrb[0].mxu0
      %v1191 = vadd.f32 0.0, %v1190
      %1192 = vmatprep.mubr.f32.mxu0 0.0
      %1193 = vmatmul.mubr.f32.gmra.mrb[0].mxu0 %v1099
      %v1194 = vpop.f32.mrb[0].mxu0
      %v1195 = vadd.f32 0.0, %v1194
      %v1196 = vpop.f32.mrb[0].mxu0
      %v1197 = vadd.f32 0.0, %v1196
      %1198 = vmatprep.mubr.f32.mxu0 0.0
      %1199 = vmatmul.mubr.f32.gmra.mrb[0].mxu0 %v1100
      %v1200 = vpop.f32.mrb[0].mxu0
      %v1201 = vadd.f32 0.0, %v1200
      %v1202 = vpop.f32.mrb[0].mxu0
      %v1203 = vadd.f32 0.0, %v1202
      %1204 = vmatprep.mubr.f32.mxu0 0.0
      %1205 = vmatmul.mubr.f32.gmra.mrb[0].mxu0 %v1101
      %v1206 = vpop.f32.mrb[0].mxu0
      %v1207 = vadd.f32 0.0, %v1206
      %v1208 = vpop.f32.mrb[0].mxu0
      %v1209 = vadd.f32 0.0, %v1208
      %1210 = vmatprep.mubr.f32.mxu0 0.0
      %1211 = vmatmul.mubr.f32.gmra.mrb[0].mxu0 %v1102
      %v1212 = vpop.f32.mrb[0].mxu0
      %v1213 = vadd.f32 0.0, %v1212
      %v1214 = vpop.f32.mrb[0].mxu0
      %v1215 = vadd.f32 0.0, %v1214
      %1216 = vmatprep.mubr.f32.mxu0 0.0
      %1217 = vmatmul.mubr.f32.gmra.mrb[0].mxu0 %v1103
      %v1218 = vpop.f32.mrb[0].mxu0
      %v1219 = vadd.f32 0.0, %v1218
      %v1220 = vpop.f32.mrb[0].mxu0
      %v1221 = vadd.f32 0.0, %v1220
      %1222 = vdwg.mxu0
      %v1223 = vpack.c.bf16 %v1177, %v1171
      %v1224 = vpack.c.bf16 %v1179, %v1173
      %v1225 = vpack.c.bf16 %v1189, %v1183
      %v1226 = vpack.c.bf16 %v1191, %v1185
      %v1227 = vpack.c.bf16 %v1201, %v1195
      %v1228 = vpack.c.bf16 %v1203, %v1197
      %v1229 = vpack.c.bf16 %v1213, %v1207
      %v1230 = vpack.c.bf16 %v1215, %v1209
      %v1231 = vpack.c.bf16 %v1219, %v1219
      %v1232 = vpack.c.bf16 %v1221, %v1221
      %v1243 = vunpack.c.l.b16 %v1223
      %v1244 = vunpack.c.l.b16 %v1224
      %v1245 = vunpack.c.h.b16 %v1223
      %v1246 = vunpack.c.h.b16 %v1224
      %v1247 = vunpack.c.l.b16 %v1225
      %v1248 = vunpack.c.l.b16 %v1226
      %v1249 = vunpack.c.h.b16 %v1225
      %v1250 = vunpack.c.h.b16 %v1226
      %v1251 = vunpack.c.l.b16 %v1227
      %v1252 = vunpack.c.l.b16 %v1228
      %v1253 = vunpack.c.h.b16 %v1227
      %v1254 = vunpack.c.h.b16 %v1228
      %v1255 = vunpack.c.l.b16 %v1229
      %v1256 = vunpack.c.l.b16 %v1230
      %v1257 = vunpack.c.h.b16 %v1229
      %v1258 = vunpack.c.h.b16 %v1230
      %v1259 = vunpack.c.l.b16 %v1231
      %v1260 = vunpack.c.l.b16 %v1232
      %v1261 = vpack.c.b16 %v1244, %v1243
      %v1262 = vpack.c.b16 %v1246, %v1245
      %v1263 = vpack.c.b16 %v1248, %v1247
      %v1264 = vpack.c.b16 %v1250, %v1249
      %v1265 = vpack.c.b16 %v1252, %v1251
      %v1266 = vpack.c.b16 %v1254, %v1253
      %v1267 = vpack.c.b16 %v1256, %v1255
      %v1268 = vpack.c.b16 %v1258, %v1257
      %v1269 = vpack.c.b16 %v1260, %v1259
      %s1279 = scalar_lea.vmem %s210, 216
      %1280 = vst [vmem:[%s1279] sm:$0xff] %v1261
      %1281 = vst [vmem:[%s1279 + $0x8] sm:$0xff] %v1262
      %1282 = vst [vmem:[%s1279 + $0x10] sm:$0xff] %v1263
      %1283 = vst [vmem:[%s1279 + $0x18] sm:$0xff] %v1264
      %1284 = vst [vmem:[%s1279 + $0x20] sm:$0xff] %v1265
      %1285 = vst [vmem:[%s1279 + $0x28] sm:$0xff] %v1266
      %1286 = vst [vmem:[%s1279 + $0x30] sm:$0xff] %v1267
      %1287 = vst [vmem:[%s1279 + $0x38] sm:$0xff] %v1268
      %v1288 = vld [vmem:[%s1279 + $0x40] sm:$0x11]
      %v1289 = vsel %vm449, %v1269, %v1288
      %1290 = vst [vmem:[%s1279 + $0x40] sm:$0x11] %v1289
      %v1291 = vadd.f32 %v1171, %v1177
      %v1292 = vadd.f32 %v1291, %v1183
      %v1293 = vadd.f32 %v1292, %v1189
      %v1294 = vadd.f32 %v1293, %v1195
      %v1295 = vadd.f32 %v1294, %v1201
      %v1296 = vadd.f32 %v1295, %v1207
      %v1297 = vadd.f32 %v1296, %v1213
      %v1298 = vsel %vm460, %v1219, 0.0
      %v1299 = vadd.f32 %v1297, %v1298
      %v1300 = vrot.slane %v1299, 4
      %v1301 = vadd.f32 %v1299, %v1300
      %v1302 = vrot.slane %v1301, 2
      %v1303 = vadd.f32 %v1301, %v1302
      %v1304 = vrot.slane %v1303, 1
      %v1305 = vadd.f32 %v1303, %v1304
      %v1306 = vadd.f32 %v1173, %v1179
      %v1307 = vadd.f32 %v1306, %v1185
      %v1308 = vadd.f32 %v1307, %v1191
      %v1309 = vadd.f32 %v1308, %v1197
      %v1310 = vadd.f32 %v1309, %v1203
      %v1311 = vadd.f32 %v1310, %v1209
      %v1312 = vadd.f32 %v1311, %v1215
      %v1313 = vsel %vm460, %v1221, 0.0
      %v1314 = vadd.f32 %v1312, %v1313
      %v1315 = vrot.slane %v1314, 4
      %v1316 = vadd.f32 %v1314, %v1315
      %v1317 = vrot.slane %v1316, 2
      %v1318 = vadd.f32 %v1316, %v1317
      %v1319 = vrot.slane %v1318, 1
      %v1320 = vadd.f32 %v1318, %v1319
      %v1321 = vadd.f32 %v1042, %v1305
      %v1322 = vadd.f32 %v1043, %v1320
      %v1323 = vmul.f32 %v1171, %v1171
      %v1324 = vmul.f32 %v1173, %v1173
      %v1325 = vmul.f32 %v1177, %v1177
      %v1326 = vmul.f32 %v1179, %v1179
      %v1327 = vmul.f32 %v1183, %v1183
      %v1328 = vmul.f32 %v1185, %v1185
      %v1329 = vmul.f32 %v1189, %v1189
      %v1330 = vmul.f32 %v1191, %v1191
      %v1331 = vmul.f32 %v1195, %v1195
      %v1332 = vmul.f32 %v1197, %v1197
      %v1333 = vmul.f32 %v1201, %v1201
      %v1334 = vmul.f32 %v1203, %v1203
      %v1335 = vmul.f32 %v1207, %v1207
      %v1336 = vmul.f32 %v1209, %v1209
      %v1337 = vmul.f32 %v1213, %v1213
      %v1338 = vmul.f32 %v1215, %v1215
      %v1339 = vmul.f32 %v1219, %v1219
      %v1340 = vmul.f32 %v1221, %v1221
      %v1341 = vadd.f32 %v1323, %v1325
      %v1342 = vadd.f32 %v1341, %v1327
      %v1343 = vadd.f32 %v1342, %v1329
      %v1344 = vadd.f32 %v1343, %v1331
      %v1345 = vadd.f32 %v1344, %v1333
      %v1346 = vadd.f32 %v1345, %v1335
      %v1347 = vadd.f32 %v1346, %v1337
      %v1348 = vsel %vm460, %v1339, 0.0
      %v1349 = vadd.f32 %v1347, %v1348
      %v1350 = vrot.slane %v1349, 4
      %v1351 = vadd.f32 %v1349, %v1350
      %v1352 = vrot.slane %v1351, 2
      %v1353 = vadd.f32 %v1351, %v1352
      %v1354 = vrot.slane %v1353, 1
      %v1355 = vadd.f32 %v1353, %v1354
      %v1356 = vadd.f32 %v1324, %v1326
      %v1357 = vadd.f32 %v1356, %v1328
      %v1358 = vadd.f32 %v1357, %v1330
      %v1359 = vadd.f32 %v1358, %v1332
      %v1360 = vadd.f32 %v1359, %v1334
      %v1361 = vadd.f32 %v1360, %v1336
      %v1362 = vadd.f32 %v1361, %v1338
      %v1363 = vsel %vm460, %v1340, 0.0
      %v1364 = vadd.f32 %v1362, %v1363
      %v1365 = vrot.slane %v1364, 4
      %v1366 = vadd.f32 %v1364, %v1365
      %v1367 = vrot.slane %v1366, 2
      %v1368 = vadd.f32 %v1366, %v1367
      %v1369 = vrot.slane %v1368, 1
      %v1370 = vadd.f32 %v1368, %v1369
      %v1371 = vadd.f32 %v1092, %v1355
      %v1372 = vadd.f32 %v1093, %v1370
      %v1375 = vcombine.low %v1321, %v1322
      %v1377 = vunpack.c.l.s4 1966171168
      %v1378 = vunpack.c.0.s8 %v1377
      %v1379 = vlaneseq
      %v1380 = vshrl.u32 %v1379, 7
      %v1381 = vsub.s32 %v1378, %v1380
      %v1382 = vrot.slane %v1375, %v1381
      %v1384 = vunpack.c.l.s4 1966171168
      %v1385 = vunpack.c.0.s8 %v1384
      %v1386 = vlaneseq
      %v1387 = vshrl.u32 %v1386, 7
      %v1388 = vsub.s32 %v1385, %v1387
      %v1389 = vrot.slane %v1382, %v1388
      %v1391 = vlaneseq
      %vm1392 = vcmp.ge.s32.totalorder %v1391, 0
      %vm1393 = vcmp.lt.s32.totalorder %v1391, 256
      %vm1394 = vmand %vm1392, %vm1393
      %1395 = vst.msk [vmem:[%s214] sm:$0x3] %vm1394, %v1389
      %v1398 = vcombine.low %v1371, %v1372
      %v1400 = vunpack.c.l.s4 1966171168
      %v1401 = vunpack.c.0.s8 %v1400
      %v1402 = vlaneseq
      %v1403 = vshrl.u32 %v1402, 7
      %v1404 = vsub.s32 %v1401, %v1403
      %v1405 = vrot.slane %v1398, %v1404
      %v1407 = vunpack.c.l.s4 1966171168
      %v1408 = vunpack.c.0.s8 %v1407
      %v1409 = vlaneseq
      %v1410 = vshrl.u32 %v1409, 7
      %v1411 = vsub.s32 %v1408, %v1410
      %v1412 = vrot.slane %v1405, %v1411
      %1414 = vst.msk [vmem:[%s218] sm:$0x3] %vm1394, %v1412
      %p1415 = scmp.lt.s32.totalorder %s16, 1
      %s1416 = scalar_select %p1415, %s16, 1
      %s1417 = smul.addr %s1416, 72
      %s1418 = smul.addr %s1417, 4
      %s1419 = scalar_lea.vmem %s2, %s1418
      %p1420 = scmp.lt.s32.totalorder %s16, 1
      %s1421 = scalar_select %p1420, %s16, 1
      %s1422 = smul.addr %s1421, 2
      %s1423 = scalar_lea.vmem %s3, %s1422
      %p1424 = scmp.lt.s32.totalorder %s16, 1
      %s1425 = scalar_select %p1424, %s16, 1
      %s1426 = smul.addr %s1425, 2
      %s1427 = scalar_lea.vmem %s4, %s1426
      // Predicated region
      $region29: #{forward.3} parent=27 // pred_check
        %p1428 = pneg %p81
      $region30: #{forward.3} parent=27 // pred_check_branch
        %1430 = sbr.rel (%p1428) target = $region32
      $region31: #{forward.3} parent=27 // pred_region
        _
      $region32: #{forward.3} parent=27 // pred_fallthru
        _
      // Predicated region
      $region33: #{forward.3} parent=27 // pred_check
        %p1431 = pneg %p107
      $region34: #{forward.3} parent=27 // pred_check_branch
        %1433 = sbr.rel (%p1431) target = $region36
      $region35: #{forward.3} parent=27 // pred_region
        _
      $region36: #{forward.3} parent=27 // pred_fallthru
        _
      // Predicated region
      $region37: #{forward.3} parent=27 // pred_check
        %p1434 = pneg %p133
      $region38: #{forward.3} parent=27 // pred_check_branch
        %1436 = sbr.rel (%p1434) target = $region40
      $region39: #{forward.3} parent=27 // pred_region
        _
      $region40: #{forward.3} parent=27 // pred_fallthru
        _
    $region28: #{forward.3} parent=5 // pred_fallthru
      _
    %p1437 = scmp.le.s32.totalorder 2, %s11
    // Predicated region
    $region41: #{forward.3} parent=5 // pred_check
      %p1438 = pneg %p1437
    $region42: #{forward.3} parent=5 // pred_check_branch
      %1440 = sbr.rel (%p1438) target = $region44
    $region43: #{forward.3} parent=5 // pred_region
      %s1441 = ssub.s32 %s11, 2
      // Predicated region
      $region45: #{forward.3} parent=43 // pred_check
        %p1442 = pneg %p87
      $region46: #{forward.3} parent=43 // pred_check_branch
        %1444 = sbr.rel (%p1442) target = $region48
      $region47: #{forward.3} parent=43 // pred_region
        %p1445 = scmp.lt.s32.totalorder %s17, 1
        %s1446 = scalar_select %p1445, %s17, 1
        %s1447 = smul.addr %s1446, 72
        %s1448 = smul.addr %s1447, 4
        %s1449 = scalar_lea.vmem %s2, %s1448
      $region48: #{forward.3} parent=43 // pred_fallthru
        _
      // Predicated region
      $region49: #{forward.3} parent=43 // pred_check
        %p1450 = pneg %p113
      $region50: #{forward.3} parent=43 // pred_check_branch
        %1452 = sbr.rel (%p1450) target = $region52
      $region51: #{forward.3} parent=43 // pred_region
        %p1453 = scmp.lt.s32.totalorder %s17, 1
        %s1454 = scalar_select %p1453, %s17, 1
        %s1455 = smul.addr %s1454, 2
        %s1456 = scalar_lea.vmem %s3, %s1455
      $region52: #{forward.3} parent=43 // pred_fallthru
        _
      // Predicated region
      $region53: #{forward.3} parent=43 // pred_check
        %p1457 = pneg %p139
      $region54: #{forward.3} parent=43 // pred_check_branch
        %1459 = sbr.rel (%p1457) target = $region56
      $region55: #{forward.3} parent=43 // pred_region
        %p1460 = scmp.lt.s32.totalorder %s17, 1
        %s1461 = scalar_select %p1460, %s17, 1
        %s1462 = smul.addr %s1461, 2
        %s1463 = scalar_lea.vmem %s4, %s1462
      $region56: #{forward.3} parent=43 // pred_fallthru
        _
    $region44: #{forward.3} parent=5 // pred_fallthru
      _
  $region6: #{forward.3} parent=0 // loop_footer
    %s15 = sadd.s32 1, %s11
  $region7: #{forward.3} parent=0 // loop_footer_branch
    %10 = sbr.rel target = $region3
  $region8: #{forward.3} parent=0 // loop_exit
    _

</llo_original>
